<compile_context>
chip_gen: v7x
topology: tpu7x:2x2x1
jax: 0.10.0
libtpu: 0.0.40
codegen_flags: <defaults>
</compile_context>

<pallas_src>
import functools

import jax
import jax.numpy as jnp
from jax.experimental import pallas as pl
from jax.experimental.pallas import tpu as pltpu

NUM_CHANNELS = 4
SEQ_LEN = 40          # conv1(k=3) -> 38, conv2(k=3) -> 36  =>  fc1 in = 32*36
CLASSES = 8
C1 = 32
C2 = 32
K = 3
L2_FINAL = SEQ_LEN - 2 * (K - 1)   # 36
NP = 128                            # lane-dense padded class dimension
TB_MAX = 128                        # batch tile (rows of the tall matmuls = TB*L)
BATCH_ALIGN = 16                    # bf16 sublane packing -> tile-exact reshapes


def cnn_a_kernel(x_ref, w1_ref, b1_ref, w2_ref, b2_ref, wfc_ref, bfc_ref,
                 logits_ref, logsm_ref, *, classes):
    # x_ref: (L, TB, Cin) bf16, length-major so conv taps are leading-dim slices.
    L, TB, Cin = x_ref.shape
    k_sz = w1_ref.shape[0]
    c1 = w1_ref.shape[2]
    c2 = w2_ref.shape[2]
    L1 = L - (k_sz - 1)
    L2 = L1 - (k_sz - 1)

    x = x_ref[...]                                     # (L, TB, Cin) bf16

    # ---- conv1: K accumulated tall matmuls, M = L1*TB, f32 accumulation ----
    acc1 = None
    for k in range(k_sz):
        lhs = x[k:k + L1].reshape(L1 * TB, Cin)        # exact tile merge (TB % 16 == 0)
        d = jnp.dot(lhs, w1_ref[k], preferred_element_type=jnp.float32)
        acc1 = d if acc1 is None else acc1 + d
    h1 = jnp.maximum(acc1 + b1_ref[...], 0.0).astype(jnp.bfloat16)
    h1 = h1.reshape(L1, TB, c1)                        # (L1, TB, C1)

    # ---- conv2: same per-tap accumulation ----
    acc2 = None
    for k in range(k_sz):
        lhs = h1[k:k + L2].reshape(L2 * TB, c1)
        d = jnp.dot(lhs, w2_ref[k], preferred_element_type=jnp.float32)
        acc2 = d if acc2 is None else acc2 + d
    h2 = jnp.maximum(acc2 + b2_ref[...], 0.0).astype(jnp.bfloat16)   # (L2*TB, C2)

    # ---- fc1: torch flatten(x,1) folded into wfc layout: wfc_ref[l][c, n] = Wfc[n, c*L2+l]
    logits = None
    for l in range(L2):
        d = jnp.dot(h2[l * TB:(l + 1) * TB], wfc_ref[l],
                    preferred_element_type=jnp.float32)
        logits = d if logits is None else logits + d
    logits = logits + bfc_ref[...]                     # (TB, NP) f32, lane-dense store
    logits_ref[...] = logits

    # ---- log_softmax over the valid class lanes (pad lanes masked out) ----
    lane = jax.lax.broadcasted_iota(jnp.int32, logits.shape, dimension=1)
    z = jnp.where(lane < classes, logits, jnp.float32(-1e30))
    m = jnp.max(z, axis=-1, keepdims=True)
    s = z - m
    lse = jnp.log(jnp.sum(jnp.exp(s), axis=-1, keepdims=True))
    logsm_ref[...] = s - lse


def init_params(key, num_channels, classes):
    """Deterministic PyTorch-default-style uniform(-1/sqrt(fan_in), +) init."""
    ks = jax.random.split(key, 6)

    def u(k, shape, fan_in):
        bound = 1.0 / jnp.sqrt(jnp.float32(fan_in))
        return jax.random.uniform(k, shape, jnp.float32, -bound, bound)

    w1 = u(ks[0], (C1, num_channels, K), num_channels * K)
    b1 = u(ks[1], (C1,), num_channels * K)
    w2 = u(ks[2], (C2, C1, K), C1 * K)
    b2 = u(ks[3], (C2,), C1 * K)
    wfc = u(ks[4], (classes, C2 * L2_FINAL), C2 * L2_FINAL)
    bfc = u(ks[5], (classes,), C2 * L2_FINAL)
    return w1, b1, w2, b2, wfc, bfc


@jax.jit
def cnn_a_forward(x, w1, b1, w2, b2, wfc, bfc):
    B, Cin, L = x.shape
    c1, _, k_sz = w1.shape
    c2 = w2.shape[0]
    classes = wfc.shape[0]
    L1 = L - (k_sz - 1)
    L2 = L1 - (k_sz - 1)

    # ---- batch padding / tiling (TB multiple of 16 => tile-exact in-kernel reshapes) ----
    Ba = -(-B // BATCH_ALIGN) * BATCH_ALIGN
    TB = min(TB_MAX, Ba)
    Bp = -(-Ba // TB) * TB
    x_p = jnp.pad(x, ((0, Bp - B), (0, 0), (0, 0)))

    # ---- wrapper-side constant layout transforms + bf16 casts for the MXU ----
    x_r = jnp.transpose(x_p, (2, 0, 1)).astype(jnp.bfloat16)          # (L, Bp, Cin)
    w1_t = jnp.transpose(w1, (2, 1, 0)).astype(jnp.bfloat16)          # (K, Cin, C1)
    w2_t = jnp.transpose(w2, (2, 1, 0)).astype(jnp.bfloat16)          # (K, C1, C2)
    wfc3 = jnp.transpose(wfc.reshape(classes, c2, L2), (2, 1, 0))     # (L2, C2, classes)
    wfc3 = jnp.pad(wfc3, ((0, 0), (0, 0), (0, NP - classes))).astype(jnp.bfloat16)
    b1_r = b1.reshape(1, c1).astype(jnp.float32)
    b2_r = b2.reshape(1, c2).astype(jnp.float32)
    bfc_r = jnp.pad(bfc.reshape(1, classes), ((0, 0), (0, NP - classes))).astype(jnp.float32)

    flops = 2 * Bp * (L1 * k_sz * Cin * c1 + L2 * k_sz * c1 * c2 + L2 * c2 * NP)
    bytes_accessed = (L * Bp * Cin * 2
                      + (k_sz * Cin * c1 + k_sz * c1 * c2 + L2 * c2 * NP) * 2
                      + (c1 + c2 + NP) * 4
                      + 2 * Bp * NP * 4)
    cost = pl.CostEstimate(flops=flops, transcendentals=Bp * NP,
                           bytes_accessed=bytes_accessed)

    kernel = functools.partial(cnn_a_kernel, classes=classes)

    logits_p, logsm_p = pl.pallas_call(
        kernel,
        out_shape=(jax.ShapeDtypeStruct((Bp, NP), jnp.float32),
                   jax.ShapeDtypeStruct((Bp, NP), jnp.float32)),
        grid=(Bp // TB,),
        in_specs=[
            pl.BlockSpec((L, TB, Cin), lambda i: (0, i, 0)),
            pl.BlockSpec((k_sz, Cin, c1), lambda i: (0, 0, 0)),
            pl.BlockSpec((1, c1), lambda i: (0, 0)),
            pl.BlockSpec((k_sz, c1, c2), lambda i: (0, 0, 0)),
            pl.BlockSpec((1, c2), lambda i: (0, 0)),
            pl.BlockSpec((L2, c2, NP), lambda i: (0, 0, 0)),
            pl.BlockSpec((1, NP), lambda i: (0, 0)),
        ],
        out_specs=(pl.BlockSpec((TB, NP), lambda i: (i, 0)),
                   pl.BlockSpec((TB, NP), lambda i: (i, 0))),
        compiler_params=pltpu.CompilerParams(
            dimension_semantics=("parallel",),
            vmem_limit_bytes=32 * 1024 * 1024),
        cost_estimate=cost,
    )(x_r, w1_t, b1_r, w2_t, b2_r, wfc3, bfc_r)

    # un-pad batch rows and class lanes
    return logits_p[:B, :classes], logsm_p[:B, :classes]


def cnn_a_reference(x, w1, b1, w2, b2, wfc, bfc):
    """Pure-JAX f32 reference of the PyTorch forward pass (for validation)."""
    dn = ("NCH", "OIH", "NCH")
    y = jax.lax.conv_general_dilated(x, w1, (1,), "VALID", dimension_numbers=dn)
    y = jax.nn.relu(y + b1[None, :, None])
    y = jax.lax.conv_general_dilated(y, w2, (1,), "VALID", dimension_numbers=dn)
    y = jax.nn.relu(y + b2[None, :, None])
    y = y.reshape(y.shape[0], -1)                       # torch.flatten(x, 1)
    logits = y @ wfc.T + bfc
    return logits, jax.nn.log_softmax(logits, axis=-1)


if __name__ == "__main__":
    key = jax.random.PRNGKey(0)
    kx, kp = jax.random.split(key)

    # Input consistent with the module: fc1 expects 32*36 => sequence length 40.
    x = jax.random.normal(kx, (2, NUM_CHANNELS, SEQ_LEN), dtype=jnp.float32)
    params = init_params(kp, NUM_CHANNELS, CLASSES)

    logits, logsm = cnn_a_forward(x, *params)
    jax.block_until_ready((logits, logsm))

    assert logits.shape == (2, CLASSES) and logsm.shape == (2, CLASSES)
    assert bool(jnp.all(jnp.isfinite(logits))) and bool(jnp.all(jnp.isfinite(logsm)))
    # log-softmax rows must exp-sum to 1
    assert bool(jnp.allclose(jnp.sum(jnp.exp(logsm), axis=-1), 1.0, atol=1e-2))

    # Validate against a pure-JAX f32 reference (bf16 MXU operands -> loose tolerance).
    ref_logits, ref_logsm = cnn_a_reference(x, *params)
    assert bool(jnp.allclose(logits, ref_logits, atol=5e-2, rtol=5e-2))
    assert bool(jnp.allclose(logsm, ref_logsm, atol=5e-2, rtol=5e-2))

    print("KERNEL_OK")
</pallas_src>

<mosaic_0001>
module attributes {stable_mosaic.version = 11 : i64} {
  func.func @cnn_a_kernel(%arg0: i32, %arg1: memref<40x16x4xbf16, #tpu.memory_space<vmem>>, %arg2: memref<3x4x32xbf16, #tpu.memory_space<vmem>>, %arg3: memref<1x32xf32, #tpu.memory_space<vmem>>, %arg4: memref<3x32x32xbf16, #tpu.memory_space<vmem>>, %arg5: memref<1x32xf32, #tpu.memory_space<vmem>>, %arg6: memref<36x32x128xbf16, #tpu.memory_space<vmem>>, %arg7: memref<1x128xf32, #tpu.memory_space<vmem>>, %arg8: memref<16x128xf32, #tpu.memory_space<vmem>>, %arg9: memref<16x128xf32, #tpu.memory_space<vmem>>) attributes {dimension_semantics = [#tpu.dimension_semantics<parallel>], iteration_bounds = array<i64: 1>, scalar_prefetch = 0 : i64, scratch_operands = 0 : i64, tpu.core_type = #tpu.core_type<tc>, window_params = [{transform_indices = @transform_0, window_bounds = array<i64: 40, 16, 4>}, {pipeline_mode = #tpu.pipeline_mode<synchronous>, transform_indices = @transform_1, window_bounds = array<i64: 3, 4, 32>}, {pipeline_mode = #tpu.pipeline_mode<synchronous>, transform_indices = @transform_2, window_bounds = array<i64: 1, 32>}, {pipeline_mode = #tpu.pipeline_mode<synchronous>, transform_indices = @transform_3, window_bounds = array<i64: 3, 32, 32>}, {pipeline_mode = #tpu.pipeline_mode<synchronous>, transform_indices = @transform_4, window_bounds = array<i64: 1, 32>}, {pipeline_mode = #tpu.pipeline_mode<synchronous>, transform_indices = @transform_5, window_bounds = array<i64: 36, 32, 128>}, {pipeline_mode = #tpu.pipeline_mode<synchronous>, transform_indices = @transform_6, window_bounds = array<i64: 1, 128>}, {transform_indices = @transform_7, window_bounds = array<i64: 16, 128>}, {transform_indices = @transform_8, window_bounds = array<i64: 16, 128>}]} {
    %c0 = arith.constant 0 : index
    %c0_0 = arith.constant 0 : index
    %c0_1 = arith.constant 0 : index
    %0 = vector.load %arg1[%c0, %c0_0, %c0_1] : memref<40x16x4xbf16, #tpu.memory_space<vmem>>, vector<40x16x4xbf16>
    %1 = vector.extract_strided_slice %0 {offsets = [0, 0, 0], sizes = [38, 16, 4], strides = [1, 1, 1]} : vector<40x16x4xbf16> to vector<38x16x4xbf16>
    %2 = vector.shape_cast %1 : vector<38x16x4xbf16> to vector<608x4xbf16>
    %c0_2 = arith.constant 0 : index
    %c0_3 = arith.constant 0 : index
    %c0_4 = arith.constant 0 : index
    %3 = vector.load %arg2[%c0_2, %c0_3, %c0_4] : memref<3x4x32xbf16, #tpu.memory_space<vmem>>, vector<1x4x32xbf16>
    %4 = vector.shape_cast %3 : vector<1x4x32xbf16> to vector<4x32xbf16>
    %cst = arith.constant dense<0.000000e+00> : vector<608x32xf32>
    %5 = tpu.matmul %2, %4, %cst {dimension_numbers = #tpu.dot_dimension_numbers<[1], [0], [0], [1], [0, 0, 1, 1], [], []>} : vector<608x4xbf16>, vector<4x32xbf16>, vector<608x32xf32> -> vector<608x32xf32>
    %6 = vector.extract_strided_slice %0 {offsets = [1, 0, 0], sizes = [38, 16, 4], strides = [1, 1, 1]} : vector<40x16x4xbf16> to vector<38x16x4xbf16>
    %7 = vector.shape_cast %6 : vector<38x16x4xbf16> to vector<608x4xbf16>
    %c1 = arith.constant 1 : index
    %c0_5 = arith.constant 0 : index
    %c0_6 = arith.constant 0 : index
    %8 = vector.load %arg2[%c1, %c0_5, %c0_6] : memref<3x4x32xbf16, #tpu.memory_space<vmem>>, vector<1x4x32xbf16>
    %9 = vector.shape_cast %8 : vector<1x4x32xbf16> to vector<4x32xbf16>
    %cst_7 = arith.constant dense<0.000000e+00> : vector<608x32xf32>
    %10 = tpu.matmul %7, %9, %cst_7 {dimension_numbers = #tpu.dot_dimension_numbers<[1], [0], [0], [1], [0, 0, 1, 1], [], []>} : vector<608x4xbf16>, vector<4x32xbf16>, vector<608x32xf32> -> vector<608x32xf32>
    %11 = arith.addf %5, %10 : vector<608x32xf32>
    %12 = vector.extract_strided_slice %0 {offsets = [2, 0, 0], sizes = [38, 16, 4], strides = [1, 1, 1]} : vector<40x16x4xbf16> to vector<38x16x4xbf16>
    %13 = vector.shape_cast %12 : vector<38x16x4xbf16> to vector<608x4xbf16>
    %c2 = arith.constant 2 : index
    %c0_8 = arith.constant 0 : index
    %c0_9 = arith.constant 0 : index
    %14 = vector.load %arg2[%c2, %c0_8, %c0_9] : memref<3x4x32xbf16, #tpu.memory_space<vmem>>, vector<1x4x32xbf16>
    %15 = vector.shape_cast %14 : vector<1x4x32xbf16> to vector<4x32xbf16>
    %cst_10 = arith.constant dense<0.000000e+00> : vector<608x32xf32>
    %16 = tpu.matmul %13, %15, %cst_10 {dimension_numbers = #tpu.dot_dimension_numbers<[1], [0], [0], [1], [0, 0, 1, 1], [], []>} : vector<608x4xbf16>, vector<4x32xbf16>, vector<608x32xf32> -> vector<608x32xf32>
    %17 = arith.addf %11, %16 : vector<608x32xf32>
    %c0_11 = arith.constant 0 : index
    %c0_12 = arith.constant 0 : index
    %18 = vector.load %arg3[%c0_11, %c0_12] : memref<1x32xf32, #tpu.memory_space<vmem>>, vector<1x32xf32>
    %19 = vector.broadcast %18 : vector<1x32xf32> to vector<608x32xf32>
    %20 = arith.addf %17, %19 : vector<608x32xf32>
    %cst_13 = arith.constant 0.000000e+00 : f32
    %21 = vector.broadcast %cst_13 : f32 to vector<608x32xf32>
    %22 = arith.maximumf %20, %21 : vector<608x32xf32>
    %23 = arith.truncf %22 : vector<608x32xf32> to vector<608x32xbf16>
    %24 = vector.shape_cast %23 : vector<608x32xbf16> to vector<38x16x32xbf16>
    %25 = vector.extract_strided_slice %24 {offsets = [0, 0, 0], sizes = [36, 16, 32], strides = [1, 1, 1]} : vector<38x16x32xbf16> to vector<36x16x32xbf16>
    %26 = vector.shape_cast %25 : vector<36x16x32xbf16> to vector<576x32xbf16>
    %c0_14 = arith.constant 0 : index
    %c0_15 = arith.constant 0 : index
    %c0_16 = arith.constant 0 : index
    %27 = vector.load %arg4[%c0_14, %c0_15, %c0_16] : memref<3x32x32xbf16, #tpu.memory_space<vmem>>, vector<1x32x32xbf16>
    %28 = vector.shape_cast %27 : vector<1x32x32xbf16> to vector<32x32xbf16>
    %cst_17 = arith.constant dense<0.000000e+00> : vector<576x32xf32>
    %29 = tpu.matmul %26, %28, %cst_17 {dimension_numbers = #tpu.dot_dimension_numbers<[1], [0], [0], [1], [0, 0, 1, 1], [], []>} : vector<576x32xbf16>, vector<32x32xbf16>, vector<576x32xf32> -> vector<576x32xf32>
    %30 = vector.extract_strided_slice %24 {offsets = [1, 0, 0], sizes = [36, 16, 32], strides = [1, 1, 1]} : vector<38x16x32xbf16> to vector<36x16x32xbf16>
    %31 = vector.shape_cast %30 : vector<36x16x32xbf16> to vector<576x32xbf16>
    %c1_18 = arith.constant 1 : index
    %c0_19 = arith.constant 0 : index
    %c0_20 = arith.constant 0 : index
    %32 = vector.load %arg4[%c1_18, %c0_19, %c0_20] : memref<3x32x32xbf16, #tpu.memory_space<vmem>>, vector<1x32x32xbf16>
    %33 = vector.shape_cast %32 : vector<1x32x32xbf16> to vector<32x32xbf16>
    %cst_21 = arith.constant dense<0.000000e+00> : vector<576x32xf32>
    %34 = tpu.matmul %31, %33, %cst_21 {dimension_numbers = #tpu.dot_dimension_numbers<[1], [0], [0], [1], [0, 0, 1, 1], [], []>} : vector<576x32xbf16>, vector<32x32xbf16>, vector<576x32xf32> -> vector<576x32xf32>
    %35 = arith.addf %29, %34 : vector<576x32xf32>
    %36 = vector.extract_strided_slice %24 {offsets = [2, 0, 0], sizes = [36, 16, 32], strides = [1, 1, 1]} : vector<38x16x32xbf16> to vector<36x16x32xbf16>
    %37 = vector.shape_cast %36 : vector<36x16x32xbf16> to vector<576x32xbf16>
    %c2_22 = arith.constant 2 : index
    %c0_23 = arith.constant 0 : index
    %c0_24 = arith.constant 0 : index
    %38 = vector.load %arg4[%c2_22, %c0_23, %c0_24] : memref<3x32x32xbf16, #tpu.memory_space<vmem>>, vector<1x32x32xbf16>
    %39 = vector.shape_cast %38 : vector<1x32x32xbf16> to vector<32x32xbf16>
    %cst_25 = arith.constant dense<0.000000e+00> : vector<576x32xf32>
    %40 = tpu.matmul %37, %39, %cst_25 {dimension_numbers = #tpu.dot_dimension_numbers<[1], [0], [0], [1], [0, 0, 1, 1], [], []>} : vector<576x32xbf16>, vector<32x32xbf16>, vector<576x32xf32> -> vector<576x32xf32>
    %41 = arith.addf %35, %40 : vector<576x32xf32>
    %c0_26 = arith.constant 0 : index
    %c0_27 = arith.constant 0 : index
    %42 = vector.load %arg5[%c0_26, %c0_27] : memref<1x32xf32, #tpu.memory_space<vmem>>, vector<1x32xf32>
    %43 = vector.broadcast %42 : vector<1x32xf32> to vector<576x32xf32>
    %44 = arith.addf %41, %43 : vector<576x32xf32>
    %cst_28 = arith.constant 0.000000e+00 : f32
    %45 = vector.broadcast %cst_28 : f32 to vector<576x32xf32>
    %46 = arith.maximumf %44, %45 : vector<576x32xf32>
    %47 = arith.truncf %46 : vector<576x32xf32> to vector<576x32xbf16>
    %48 = vector.extract_strided_slice %47 {offsets = [0, 0], sizes = [16, 32], strides = [1, 1]} : vector<576x32xbf16> to vector<16x32xbf16>
    %c0_29 = arith.constant 0 : index
    %c0_30 = arith.constant 0 : index
    %c0_31 = arith.constant 0 : index
    %49 = vector.load %arg6[%c0_29, %c0_30, %c0_31] : memref<36x32x128xbf16, #tpu.memory_space<vmem>>, vector<1x32x128xbf16>
    %50 = vector.shape_cast %49 : vector<1x32x128xbf16> to vector<32x128xbf16>
    %cst_32 = arith.constant dense<0.000000e+00> : vector<16x128xf32>
    %51 = tpu.matmul %48, %50, %cst_32 {dimension_numbers = #tpu.dot_dimension_numbers<[1], [0], [0], [1], [0, 0, 1, 1], [], []>} : vector<16x32xbf16>, vector<32x128xbf16>, vector<16x128xf32> -> vector<16x128xf32>
    %52 = vector.extract_strided_slice %47 {offsets = [16, 0], sizes = [16, 32], strides = [1, 1]} : vector<576x32xbf16> to vector<16x32xbf16>
    %c1_33 = arith.constant 1 : index
    %c0_34 = arith.constant 0 : index
    %c0_35 = arith.constant 0 : index
    %53 = vector.load %arg6[%c1_33, %c0_34, %c0_35] : memref<36x32x128xbf16, #tpu.memory_space<vmem>>, vector<1x32x128xbf16>
    %54 = vector.shape_cast %53 : vector<1x32x128xbf16> to vector<32x128xbf16>
    %cst_36 = arith.constant dense<0.000000e+00> : vector<16x128xf32>
    %55 = tpu.matmul %52, %54, %cst_36 {dimension_numbers = #tpu.dot_dimension_numbers<[1], [0], [0], [1], [0, 0, 1, 1], [], []>} : vector<16x32xbf16>, vector<32x128xbf16>, vector<16x128xf32> -> vector<16x128xf32>
    %56 = arith.addf %51, %55 : vector<16x128xf32>
    %57 = vector.extract_strided_slice %47 {offsets = [32, 0], sizes = [16, 32], strides = [1, 1]} : vector<576x32xbf16> to vector<16x32xbf16>
    %c2_37 = arith.constant 2 : index
    %c0_38 = arith.constant 0 : index
    %c0_39 = arith.constant 0 : index
    %58 = vector.load %arg6[%c2_37, %c0_38, %c0_39] : memref<36x32x128xbf16, #tpu.memory_space<vmem>>, vector<1x32x128xbf16>
    %59 = vector.shape_cast %58 : vector<1x32x128xbf16> to vector<32x128xbf16>
    %cst_40 = arith.constant dense<0.000000e+00> : vector<16x128xf32>
    %60 = tpu.matmul %57, %59, %cst_40 {dimension_numbers = #tpu.dot_dimension_numbers<[1], [0], [0], [1], [0, 0, 1, 1], [], []>} : vector<16x32xbf16>, vector<32x128xbf16>, vector<16x128xf32> -> vector<16x128xf32>
    %61 = arith.addf %56, %60 : vector<16x128xf32>
    %62 = vector.extract_strided_slice %47 {offsets = [48, 0], sizes = [16, 32], strides = [1, 1]} : vector<576x32xbf16> to vector<16x32xbf16>
    %c3 = arith.constant 3 : index
    %c0_41 = arith.constant 0 : index
    %c0_42 = arith.constant 0 : index
    %63 = vector.load %arg6[%c3, %c0_41, %c0_42] : memref<36x32x128xbf16, #tpu.memory_space<vmem>>, vector<1x32x128xbf16>
    %64 = vector.shape_cast %63 : vector<1x32x128xbf16> to vector<32x128xbf16>
    %cst_43 = arith.constant dense<0.000000e+00> : vector<16x128xf32>
    %65 = tpu.matmul %62, %64, %cst_43 {dimension_numbers = #tpu.dot_dimension_numbers<[1], [0], [0], [1], [0, 0, 1, 1], [], []>} : vector<16x32xbf16>, vector<32x128xbf16>, vector<16x128xf32> -> vector<16x128xf32>
    %66 = arith.addf %61, %65 : vector<16x128xf32>
    %67 = vector.extract_strided_slice %47 {offsets = [64, 0], sizes = [16, 32], strides = [1, 1]} : vector<576x32xbf16> to vector<16x32xbf16>
    %c4 = arith.constant 4 : index
    %c0_44 = arith.constant 0 : index
    %c0_45 = arith.constant 0 : index
    %68 = vector.load %arg6[%c4, %c0_44, %c0_45] : memref<36x32x128xbf16, #tpu.memory_space<vmem>>, vector<1x32x128xbf16>
    %69 = vector.shape_cast %68 : vector<1x32x128xbf16> to vector<32x128xbf16>
    %cst_46 = arith.constant dense<0.000000e+00> : vector<16x128xf32>
    %70 = tpu.matmul %67, %69, %cst_46 {dimension_numbers = #tpu.dot_dimension_numbers<[1], [0], [0], [1], [0, 0, 1, 1], [], []>} : vector<16x32xbf16>, vector<32x128xbf16>, vector<16x128xf32> -> vector<16x128xf32>
    %71 = arith.addf %66, %70 : vector<16x128xf32>
    %72 = vector.extract_strided_slice %47 {offsets = [80, 0], sizes = [16, 32], strides = [1, 1]} : vector<576x32xbf16> to vector<16x32xbf16>
    %c5 = arith.constant 5 : index
    %c0_47 = arith.constant 0 : index
    %c0_48 = arith.constant 0 : index
    %73 = vector.load %arg6[%c5, %c0_47, %c0_48] : memref<36x32x128xbf16, #tpu.memory_space<vmem>>, vector<1x32x128xbf16>
    %74 = vector.shape_cast %73 : vector<1x32x128xbf16> to vector<32x128xbf16>
    %cst_49 = arith.constant dense<0.000000e+00> : vector<16x128xf32>
    %75 = tpu.matmul %72, %74, %cst_49 {dimension_numbers = #tpu.dot_dimension_numbers<[1], [0], [0], [1], [0, 0, 1, 1], [], []>} : vector<16x32xbf16>, vector<32x128xbf16>, vector<16x128xf32> -> vector<16x128xf32>
    %76 = arith.addf %71, %75 : vector<16x128xf32>
    %77 = vector.extract_strided_slice %47 {offsets = [96, 0], sizes = [16, 32], strides = [1, 1]} : vector<576x32xbf16> to vector<16x32xbf16>
    %c6 = arith.constant 6 : index
    %c0_50 = arith.constant 0 : index
    %c0_51 = arith.constant 0 : index
    %78 = vector.load %arg6[%c6, %c0_50, %c0_51] : memref<36x32x128xbf16, #tpu.memory_space<vmem>>, vector<1x32x128xbf16>
    %79 = vector.shape_cast %78 : vector<1x32x128xbf16> to vector<32x128xbf16>
    %cst_52 = arith.constant dense<0.000000e+00> : vector<16x128xf32>
    %80 = tpu.matmul %77, %79, %cst_52 {dimension_numbers = #tpu.dot_dimension_numbers<[1], [0], [0], [1], [0, 0, 1, 1], [], []>} : vector<16x32xbf16>, vector<32x128xbf16>, vector<16x128xf32> -> vector<16x128xf32>
    %81 = arith.addf %76, %80 : vector<16x128xf32>
    %82 = vector.extract_strided_slice %47 {offsets = [112, 0], sizes = [16, 32], strides = [1, 1]} : vector<576x32xbf16> to vector<16x32xbf16>
    %c7 = arith.constant 7 : index
    %c0_53 = arith.constant 0 : index
    %c0_54 = arith.constant 0 : index
    %83 = vector.load %arg6[%c7, %c0_53, %c0_54] : memref<36x32x128xbf16, #tpu.memory_space<vmem>>, vector<1x32x128xbf16>
    %84 = vector.shape_cast %83 : vector<1x32x128xbf16> to vector<32x128xbf16>
    %cst_55 = arith.constant dense<0.000000e+00> : vector<16x128xf32>
    %85 = tpu.matmul %82, %84, %cst_55 {dimension_numbers = #tpu.dot_dimension_numbers<[1], [0], [0], [1], [0, 0, 1, 1], [], []>} : vector<16x32xbf16>, vector<32x128xbf16>, vector<16x128xf32> -> vector<16x128xf32>
    %86 = arith.addf %81, %85 : vector<16x128xf32>
    %87 = vector.extract_strided_slice %47 {offsets = [128, 0], sizes = [16, 32], strides = [1, 1]} : vector<576x32xbf16> to vector<16x32xbf16>
    %c8 = arith.constant 8 : index
    %c0_56 = arith.constant 0 : index
    %c0_57 = arith.constant 0 : index
    %88 = vector.load %arg6[%c8, %c0_56, %c0_57] : memref<36x32x128xbf16, #tpu.memory_space<vmem>>, vector<1x32x128xbf16>
    %89 = vector.shape_cast %88 : vector<1x32x128xbf16> to vector<32x128xbf16>
    %cst_58 = arith.constant dense<0.000000e+00> : vector<16x128xf32>
    %90 = tpu.matmul %87, %89, %cst_58 {dimension_numbers = #tpu.dot_dimension_numbers<[1], [0], [0], [1], [0, 0, 1, 1], [], []>} : vector<16x32xbf16>, vector<32x128xbf16>, vector<16x128xf32> -> vector<16x128xf32>
    %91 = arith.addf %86, %90 : vector<16x128xf32>
    %92 = vector.extract_strided_slice %47 {offsets = [144, 0], sizes = [16, 32], strides = [1, 1]} : vector<576x32xbf16> to vector<16x32xbf16>
    %c9 = arith.constant 9 : index
    %c0_59 = arith.constant 0 : index
    %c0_60 = arith.constant 0 : index
    %93 = vector.load %arg6[%c9, %c0_59, %c0_60] : memref<36x32x128xbf16, #tpu.memory_space<vmem>>, vector<1x32x128xbf16>
    %94 = vector.shape_cast %93 : vector<1x32x128xbf16> to vector<32x128xbf16>
    %cst_61 = arith.constant dense<0.000000e+00> : vector<16x128xf32>
    %95 = tpu.matmul %92, %94, %cst_61 {dimension_numbers = #tpu.dot_dimension_numbers<[1], [0], [0], [1], [0, 0, 1, 1], [], []>} : vector<16x32xbf16>, vector<32x128xbf16>, vector<16x128xf32> -> vector<16x128xf32>
    %96 = arith.addf %91, %95 : vector<16x128xf32>
    %97 = vector.extract_strided_slice %47 {offsets = [160, 0], sizes = [16, 32], strides = [1, 1]} : vector<576x32xbf16> to vector<16x32xbf16>
    %c10 = arith.constant 10 : index
    %c0_62 = arith.constant 0 : index
    %c0_63 = arith.constant 0 : index
    %98 = vector.load %arg6[%c10, %c0_62, %c0_63] : memref<36x32x128xbf16, #tpu.memory_space<vmem>>, vector<1x32x128xbf16>
    %99 = vector.shape_cast %98 : vector<1x32x128xbf16> to vector<32x128xbf16>
    %cst_64 = arith.constant dense<0.000000e+00> : vector<16x128xf32>
    %100 = tpu.matmul %97, %99, %cst_64 {dimension_numbers = #tpu.dot_dimension_numbers<[1], [0], [0], [1], [0, 0, 1, 1], [], []>} : vector<16x32xbf16>, vector<32x128xbf16>, vector<16x128xf32> -> vector<16x128xf32>
    %101 = arith.addf %96, %100 : vector<16x128xf32>
    %102 = vector.extract_strided_slice %47 {offsets = [176, 0], sizes = [16, 32], strides = [1, 1]} : vector<576x32xbf16> to vector<16x32xbf16>
    %c11 = arith.constant 11 : index
    %c0_65 = arith.constant 0 : index
    %c0_66 = arith.constant 0 : index
    %103 = vector.load %arg6[%c11, %c0_65, %c0_66] : memref<36x32x128xbf16, #tpu.memory_space<vmem>>, vector<1x32x128xbf16>
    %104 = vector.shape_cast %103 : vector<1x32x128xbf16> to vector<32x128xbf16>
    %cst_67 = arith.constant dense<0.000000e+00> : vector<16x128xf32>
    %105 = tpu.matmul %102, %104, %cst_67 {dimension_numbers = #tpu.dot_dimension_numbers<[1], [0], [0], [1], [0, 0, 1, 1], [], []>} : vector<16x32xbf16>, vector<32x128xbf16>, vector<16x128xf32> -> vector<16x128xf32>
    %106 = arith.addf %101, %105 : vector<16x128xf32>
    %107 = vector.extract_strided_slice %47 {offsets = [192, 0], sizes = [16, 32], strides = [1, 1]} : vector<576x32xbf16> to vector<16x32xbf16>
    %c12 = arith.constant 12 : index
    %c0_68 = arith.constant 0 : index
    %c0_69 = arith.constant 0 : index
    %108 = vector.load %arg6[%c12, %c0_68, %c0_69] : memref<36x32x128xbf16, #tpu.memory_space<vmem>>, vector<1x32x128xbf16>
    %109 = vector.shape_cast %108 : vector<1x32x128xbf16> to vector<32x128xbf16>
    %cst_70 = arith.constant dense<0.000000e+00> : vector<16x128xf32>
    %110 = tpu.matmul %107, %109, %cst_70 {dimension_numbers = #tpu.dot_dimension_numbers<[1], [0], [0], [1], [0, 0, 1, 1], [], []>} : vector<16x32xbf16>, vector<32x128xbf16>, vector<16x128xf32> -> vector<16x128xf32>
    %111 = arith.addf %106, %110 : vector<16x128xf32>
    %112 = vector.extract_strided_slice %47 {offsets = [208, 0], sizes = [16, 32], strides = [1, 1]} : vector<576x32xbf16> to vector<16x32xbf16>
    %c13 = arith.constant 13 : index
    %c0_71 = arith.constant 0 : index
    %c0_72 = arith.constant 0 : index
    %113 = vector.load %arg6[%c13, %c0_71, %c0_72] : memref<36x32x128xbf16, #tpu.memory_space<vmem>>, vector<1x32x128xbf16>
    %114 = vector.shape_cast %113 : vector<1x32x128xbf16> to vector<32x128xbf16>
    %cst_73 = arith.constant dense<0.000000e+00> : vector<16x128xf32>
    %115 = tpu.matmul %112, %114, %cst_73 {dimension_numbers = #tpu.dot_dimension_numbers<[1], [0], [0], [1], [0, 0, 1, 1], [], []>} : vector<16x32xbf16>, vector<32x128xbf16>, vector<16x128xf32> -> vector<16x128xf32>
    %116 = arith.addf %111, %115 : vector<16x128xf32>
    %117 = vector.extract_strided_slice %47 {offsets = [224, 0], sizes = [16, 32], strides = [1, 1]} : vector<576x32xbf16> to vector<16x32xbf16>
    %c14 = arith.constant 14 : index
    %c0_74 = arith.constant 0 : index
    %c0_75 = arith.constant 0 : index
    %118 = vector.load %arg6[%c14, %c0_74, %c0_75] : memref<36x32x128xbf16, #tpu.memory_space<vmem>>, vector<1x32x128xbf16>
    %119 = vector.shape_cast %118 : vector<1x32x128xbf16> to vector<32x128xbf16>
    %cst_76 = arith.constant dense<0.000000e+00> : vector<16x128xf32>
    %120 = tpu.matmul %117, %119, %cst_76 {dimension_numbers = #tpu.dot_dimension_numbers<[1], [0], [0], [1], [0, 0, 1, 1], [], []>} : vector<16x32xbf16>, vector<32x128xbf16>, vector<16x128xf32> -> vector<16x128xf32>
    %121 = arith.addf %116, %120 : vector<16x128xf32>
    %122 = vector.extract_strided_slice %47 {offsets = [240, 0], sizes = [16, 32], strides = [1, 1]} : vector<576x32xbf16> to vector<16x32xbf16>
    %c15 = arith.constant 15 : index
    %c0_77 = arith.constant 0 : index
    %c0_78 = arith.constant 0 : index
    %123 = vector.load %arg6[%c15, %c0_77, %c0_78] : memref<36x32x128xbf16, #tpu.memory_space<vmem>>, vector<1x32x128xbf16>
    %124 = vector.shape_cast %123 : vector<1x32x128xbf16> to vector<32x128xbf16>
    %cst_79 = arith.constant dense<0.000000e+00> : vector<16x128xf32>
    %125 = tpu.matmul %122, %124, %cst_79 {dimension_numbers = #tpu.dot_dimension_numbers<[1], [0], [0], [1], [0, 0, 1, 1], [], []>} : vector<16x32xbf16>, vector<32x128xbf16>, vector<16x128xf32> -> vector<16x128xf32>
    %126 = arith.addf %121, %125 : vector<16x128xf32>
    %127 = vector.extract_strided_slice %47 {offsets = [256, 0], sizes = [16, 32], strides = [1, 1]} : vector<576x32xbf16> to vector<16x32xbf16>
    %c16 = arith.constant 16 : index
    %c0_80 = arith.constant 0 : index
    %c0_81 = arith.constant 0 : index
    %128 = vector.load %arg6[%c16, %c0_80, %c0_81] : memref<36x32x128xbf16, #tpu.memory_space<vmem>>, vector<1x32x128xbf16>
    %129 = vector.shape_cast %128 : vector<1x32x128xbf16> to vector<32x128xbf16>
    %cst_82 = arith.constant dense<0.000000e+00> : vector<16x128xf32>
    %130 = tpu.matmul %127, %129, %cst_82 {dimension_numbers = #tpu.dot_dimension_numbers<[1], [0], [0], [1], [0, 0, 1, 1], [], []>} : vector<16x32xbf16>, vector<32x128xbf16>, vector<16x128xf32> -> vector<16x128xf32>
    %131 = arith.addf %126, %130 : vector<16x128xf32>
    %132 = vector.extract_strided_slice %47 {offsets = [272, 0], sizes = [16, 32], strides = [1, 1]} : vector<576x32xbf16> to vector<16x32xbf16>
    %c17 = arith.constant 17 : index
    %c0_83 = arith.constant 0 : index
    %c0_84 = arith.constant 0 : index
    %133 = vector.load %arg6[%c17, %c0_83, %c0_84] : memref<36x32x128xbf16, #tpu.memory_space<vmem>>, vector<1x32x128xbf16>
    %134 = vector.shape_cast %133 : vector<1x32x128xbf16> to vector<32x128xbf16>
    %cst_85 = arith.constant dense<0.000000e+00> : vector<16x128xf32>
    %135 = tpu.matmul %132, %134, %cst_85 {dimension_numbers = #tpu.dot_dimension_numbers<[1], [0], [0], [1], [0, 0, 1, 1], [], []>} : vector<16x32xbf16>, vector<32x128xbf16>, vector<16x128xf32> -> vector<16x128xf32>
    %136 = arith.addf %131, %135 : vector<16x128xf32>
    %137 = vector.extract_strided_slice %47 {offsets = [288, 0], sizes = [16, 32], strides = [1, 1]} : vector<576x32xbf16> to vector<16x32xbf16>
    %c18 = arith.constant 18 : index
    %c0_86 = arith.constant 0 : index
    %c0_87 = arith.constant 0 : index
    %138 = vector.load %arg6[%c18, %c0_86, %c0_87] : memref<36x32x128xbf16, #tpu.memory_space<vmem>>, vector<1x32x128xbf16>
    %139 = vector.shape_cast %138 : vector<1x32x128xbf16> to vector<32x128xbf16>
    %cst_88 = arith.constant dense<0.000000e+00> : vector<16x128xf32>
    %140 = tpu.matmul %137, %139, %cst_88 {dimension_numbers = #tpu.dot_dimension_numbers<[1], [0], [0], [1], [0, 0, 1, 1], [], []>} : vector<16x32xbf16>, vector<32x128xbf16>, vector<16x128xf32> -> vector<16x128xf32>
    %141 = arith.addf %136, %140 : vector<16x128xf32>
    %142 = vector.extract_strided_slice %47 {offsets = [304, 0], sizes = [16, 32], strides = [1, 1]} : vector<576x32xbf16> to vector<16x32xbf16>
    %c19 = arith.constant 19 : index
    %c0_89 = arith.constant 0 : index
    %c0_90 = arith.constant 0 : index
    %143 = vector.load %arg6[%c19, %c0_89, %c0_90] : memref<36x32x128xbf16, #tpu.memory_space<vmem>>, vector<1x32x128xbf16>
    %144 = vector.shape_cast %143 : vector<1x32x128xbf16> to vector<32x128xbf16>
    %cst_91 = arith.constant dense<0.000000e+00> : vector<16x128xf32>
    %145 = tpu.matmul %142, %144, %cst_91 {dimension_numbers = #tpu.dot_dimension_numbers<[1], [0], [0], [1], [0, 0, 1, 1], [], []>} : vector<16x32xbf16>, vector<32x128xbf16>, vector<16x128xf32> -> vector<16x128xf32>
    %146 = arith.addf %141, %145 : vector<16x128xf32>
    %147 = vector.extract_strided_slice %47 {offsets = [320, 0], sizes = [16, 32], strides = [1, 1]} : vector<576x32xbf16> to vector<16x32xbf16>
    %c20 = arith.constant 20 : index
    %c0_92 = arith.constant 0 : index
    %c0_93 = arith.constant 0 : index
    %148 = vector.load %arg6[%c20, %c0_92, %c0_93] : memref<36x32x128xbf16, #tpu.memory_space<vmem>>, vector<1x32x128xbf16>
    %149 = vector.shape_cast %148 : vector<1x32x128xbf16> to vector<32x128xbf16>
    %cst_94 = arith.constant dense<0.000000e+00> : vector<16x128xf32>
    %150 = tpu.matmul %147, %149, %cst_94 {dimension_numbers = #tpu.dot_dimension_numbers<[1], [0], [0], [1], [0, 0, 1, 1], [], []>} : vector<16x32xbf16>, vector<32x128xbf16>, vector<16x128xf32> -> vector<16x128xf32>
    %151 = arith.addf %146, %150 : vector<16x128xf32>
    %152 = vector.extract_strided_slice %47 {offsets = [336, 0], sizes = [16, 32], strides = [1, 1]} : vector<576x32xbf16> to vector<16x32xbf16>
    %c21 = arith.constant 21 : index
    %c0_95 = arith.constant 0 : index
    %c0_96 = arith.constant 0 : index
    %153 = vector.load %arg6[%c21, %c0_95, %c0_96] : memref<36x32x128xbf16, #tpu.memory_space<vmem>>, vector<1x32x128xbf16>
    %154 = vector.shape_cast %153 : vector<1x32x128xbf16> to vector<32x128xbf16>
    %cst_97 = arith.constant dense<0.000000e+00> : vector<16x128xf32>
    %155 = tpu.matmul %152, %154, %cst_97 {dimension_numbers = #tpu.dot_dimension_numbers<[1], [0], [0], [1], [0, 0, 1, 1], [], []>} : vector<16x32xbf16>, vector<32x128xbf16>, vector<16x128xf32> -> vector<16x128xf32>
    %156 = arith.addf %151, %155 : vector<16x128xf32>
    %157 = vector.extract_strided_slice %47 {offsets = [352, 0], sizes = [16, 32], strides = [1, 1]} : vector<576x32xbf16> to vector<16x32xbf16>
    %c22 = arith.constant 22 : index
    %c0_98 = arith.constant 0 : index
    %c0_99 = arith.constant 0 : index
    %158 = vector.load %arg6[%c22, %c0_98, %c0_99] : memref<36x32x128xbf16, #tpu.memory_space<vmem>>, vector<1x32x128xbf16>
    %159 = vector.shape_cast %158 : vector<1x32x128xbf16> to vector<32x128xbf16>
    %cst_100 = arith.constant dense<0.000000e+00> : vector<16x128xf32>
    %160 = tpu.matmul %157, %159, %cst_100 {dimension_numbers = #tpu.dot_dimension_numbers<[1], [0], [0], [1], [0, 0, 1, 1], [], []>} : vector<16x32xbf16>, vector<32x128xbf16>, vector<16x128xf32> -> vector<16x128xf32>
    %161 = arith.addf %156, %160 : vector<16x128xf32>
    %162 = vector.extract_strided_slice %47 {offsets = [368, 0], sizes = [16, 32], strides = [1, 1]} : vector<576x32xbf16> to vector<16x32xbf16>
    %c23 = arith.constant 23 : index
    %c0_101 = arith.constant 0 : index
    %c0_102 = arith.constant 0 : index
    %163 = vector.load %arg6[%c23, %c0_101, %c0_102] : memref<36x32x128xbf16, #tpu.memory_space<vmem>>, vector<1x32x128xbf16>
    %164 = vector.shape_cast %163 : vector<1x32x128xbf16> to vector<32x128xbf16>
    %cst_103 = arith.constant dense<0.000000e+00> : vector<16x128xf32>
    %165 = tpu.matmul %162, %164, %cst_103 {dimension_numbers = #tpu.dot_dimension_numbers<[1], [0], [0], [1], [0, 0, 1, 1], [], []>} : vector<16x32xbf16>, vector<32x128xbf16>, vector<16x128xf32> -> vector<16x128xf32>
    %166 = arith.addf %161, %165 : vector<16x128xf32>
    %167 = vector.extract_strided_slice %47 {offsets = [384, 0], sizes = [16, 32], strides = [1, 1]} : vector<576x32xbf16> to vector<16x32xbf16>
    %c24 = arith.constant 24 : index
    %c0_104 = arith.constant 0 : index
    %c0_105 = arith.constant 0 : index
    %168 = vector.load %arg6[%c24, %c0_104, %c0_105] : memref<36x32x128xbf16, #tpu.memory_space<vmem>>, vector<1x32x128xbf16>
    %169 = vector.shape_cast %168 : vector<1x32x128xbf16> to vector<32x128xbf16>
    %cst_106 = arith.constant dense<0.000000e+00> : vector<16x128xf32>
    %170 = tpu.matmul %167, %169, %cst_106 {dimension_numbers = #tpu.dot_dimension_numbers<[1], [0], [0], [1], [0, 0, 1, 1], [], []>} : vector<16x32xbf16>, vector<32x128xbf16>, vector<16x128xf32> -> vector<16x128xf32>
    %171 = arith.addf %166, %170 : vector<16x128xf32>
    %172 = vector.extract_strided_slice %47 {offsets = [400, 0], sizes = [16, 32], strides = [1, 1]} : vector<576x32xbf16> to vector<16x32xbf16>
    %c25 = arith.constant 25 : index
    %c0_107 = arith.constant 0 : index
    %c0_108 = arith.constant 0 : index
    %173 = vector.load %arg6[%c25, %c0_107, %c0_108] : memref<36x32x128xbf16, #tpu.memory_space<vmem>>, vector<1x32x128xbf16>
    %174 = vector.shape_cast %173 : vector<1x32x128xbf16> to vector<32x128xbf16>
    %cst_109 = arith.constant dense<0.000000e+00> : vector<16x128xf32>
    %175 = tpu.matmul %172, %174, %cst_109 {dimension_numbers = #tpu.dot_dimension_numbers<[1], [0], [0], [1], [0, 0, 1, 1], [], []>} : vector<16x32xbf16>, vector<32x128xbf16>, vector<16x128xf32> -> vector<16x128xf32>
    %176 = arith.addf %171, %175 : vector<16x128xf32>
    %177 = vector.extract_strided_slice %47 {offsets = [416, 0], sizes = [16, 32], strides = [1, 1]} : vector<576x32xbf16> to vector<16x32xbf16>
    %c26 = arith.constant 26 : index
    %c0_110 = arith.constant 0 : index
    %c0_111 = arith.constant 0 : index
    %178 = vector.load %arg6[%c26, %c0_110, %c0_111] : memref<36x32x128xbf16, #tpu.memory_space<vmem>>, vector<1x32x128xbf16>
    %179 = vector.shape_cast %178 : vector<1x32x128xbf16> to vector<32x128xbf16>
    %cst_112 = arith.constant dense<0.000000e+00> : vector<16x128xf32>
    %180 = tpu.matmul %177, %179, %cst_112 {dimension_numbers = #tpu.dot_dimension_numbers<[1], [0], [0], [1], [0, 0, 1, 1], [], []>} : vector<16x32xbf16>, vector<32x128xbf16>, vector<16x128xf32> -> vector<16x128xf32>
    %181 = arith.addf %176, %180 : vector<16x128xf32>
    %182 = vector.extract_strided_slice %47 {offsets = [432, 0], sizes = [16, 32], strides = [1, 1]} : vector<576x32xbf16> to vector<16x32xbf16>
    %c27 = arith.constant 27 : index
    %c0_113 = arith.constant 0 : index
    %c0_114 = arith.constant 0 : index
    %183 = vector.load %arg6[%c27, %c0_113, %c0_114] : memref<36x32x128xbf16, #tpu.memory_space<vmem>>, vector<1x32x128xbf16>
    %184 = vector.shape_cast %183 : vector<1x32x128xbf16> to vector<32x128xbf16>
    %cst_115 = arith.constant dense<0.000000e+00> : vector<16x128xf32>
    %185 = tpu.matmul %182, %184, %cst_115 {dimension_numbers = #tpu.dot_dimension_numbers<[1], [0], [0], [1], [0, 0, 1, 1], [], []>} : vector<16x32xbf16>, vector<32x128xbf16>, vector<16x128xf32> -> vector<16x128xf32>
    %186 = arith.addf %181, %185 : vector<16x128xf32>
    %187 = vector.extract_strided_slice %47 {offsets = [448, 0], sizes = [16, 32], strides = [1, 1]} : vector<576x32xbf16> to vector<16x32xbf16>
    %c28 = arith.constant 28 : index
    %c0_116 = arith.constant 0 : index
    %c0_117 = arith.constant 0 : index
    %188 = vector.load %arg6[%c28, %c0_116, %c0_117] : memref<36x32x128xbf16, #tpu.memory_space<vmem>>, vector<1x32x128xbf16>
    %189 = vector.shape_cast %188 : vector<1x32x128xbf16> to vector<32x128xbf16>
    %cst_118 = arith.constant dense<0.000000e+00> : vector<16x128xf32>
    %190 = tpu.matmul %187, %189, %cst_118 {dimension_numbers = #tpu.dot_dimension_numbers<[1], [0], [0], [1], [0, 0, 1, 1], [], []>} : vector<16x32xbf16>, vector<32x128xbf16>, vector<16x128xf32> -> vector<16x128xf32>
    %191 = arith.addf %186, %190 : vector<16x128xf32>
    %192 = vector.extract_strided_slice %47 {offsets = [464, 0], sizes = [16, 32], strides = [1, 1]} : vector<576x32xbf16> to vector<16x32xbf16>
    %c29 = arith.constant 29 : index
    %c0_119 = arith.constant 0 : index
    %c0_120 = arith.constant 0 : index
    %193 = vector.load %arg6[%c29, %c0_119, %c0_120] : memref<36x32x128xbf16, #tpu.memory_space<vmem>>, vector<1x32x128xbf16>
    %194 = vector.shape_cast %193 : vector<1x32x128xbf16> to vector<32x128xbf16>
    %cst_121 = arith.constant dense<0.000000e+00> : vector<16x128xf32>
    %195 = tpu.matmul %192, %194, %cst_121 {dimension_numbers = #tpu.dot_dimension_numbers<[1], [0], [0], [1], [0, 0, 1, 1], [], []>} : vector<16x32xbf16>, vector<32x128xbf16>, vector<16x128xf32> -> vector<16x128xf32>
    %196 = arith.addf %191, %195 : vector<16x128xf32>
    %197 = vector.extract_strided_slice %47 {offsets = [480, 0], sizes = [16, 32], strides = [1, 1]} : vector<576x32xbf16> to vector<16x32xbf16>
    %c30 = arith.constant 30 : index
    %c0_122 = arith.constant 0 : index
    %c0_123 = arith.constant 0 : index
    %198 = vector.load %arg6[%c30, %c0_122, %c0_123] : memref<36x32x128xbf16, #tpu.memory_space<vmem>>, vector<1x32x128xbf16>
    %199 = vector.shape_cast %198 : vector<1x32x128xbf16> to vector<32x128xbf16>
    %cst_124 = arith.constant dense<0.000000e+00> : vector<16x128xf32>
    %200 = tpu.matmul %197, %199, %cst_124 {dimension_numbers = #tpu.dot_dimension_numbers<[1], [0], [0], [1], [0, 0, 1, 1], [], []>} : vector<16x32xbf16>, vector<32x128xbf16>, vector<16x128xf32> -> vector<16x128xf32>
    %201 = arith.addf %196, %200 : vector<16x128xf32>
    %202 = vector.extract_strided_slice %47 {offsets = [496, 0], sizes = [16, 32], strides = [1, 1]} : vector<576x32xbf16> to vector<16x32xbf16>
    %c31 = arith.constant 31 : index
    %c0_125 = arith.constant 0 : index
    %c0_126 = arith.constant 0 : index
    %203 = vector.load %arg6[%c31, %c0_125, %c0_126] : memref<36x32x128xbf16, #tpu.memory_space<vmem>>, vector<1x32x128xbf16>
    %204 = vector.shape_cast %203 : vector<1x32x128xbf16> to vector<32x128xbf16>
    %cst_127 = arith.constant dense<0.000000e+00> : vector<16x128xf32>
    %205 = tpu.matmul %202, %204, %cst_127 {dimension_numbers = #tpu.dot_dimension_numbers<[1], [0], [0], [1], [0, 0, 1, 1], [], []>} : vector<16x32xbf16>, vector<32x128xbf16>, vector<16x128xf32> -> vector<16x128xf32>
    %206 = arith.addf %201, %205 : vector<16x128xf32>
    %207 = vector.extract_strided_slice %47 {offsets = [512, 0], sizes = [16, 32], strides = [1, 1]} : vector<576x32xbf16> to vector<16x32xbf16>
    %c32 = arith.constant 32 : index
    %c0_128 = arith.constant 0 : index
    %c0_129 = arith.constant 0 : index
    %208 = vector.load %arg6[%c32, %c0_128, %c0_129] : memref<36x32x128xbf16, #tpu.memory_space<vmem>>, vector<1x32x128xbf16>
    %209 = vector.shape_cast %208 : vector<1x32x128xbf16> to vector<32x128xbf16>
    %cst_130 = arith.constant dense<0.000000e+00> : vector<16x128xf32>
    %210 = tpu.matmul %207, %209, %cst_130 {dimension_numbers = #tpu.dot_dimension_numbers<[1], [0], [0], [1], [0, 0, 1, 1], [], []>} : vector<16x32xbf16>, vector<32x128xbf16>, vector<16x128xf32> -> vector<16x128xf32>
    %211 = arith.addf %206, %210 : vector<16x128xf32>
    %212 = vector.extract_strided_slice %47 {offsets = [528, 0], sizes = [16, 32], strides = [1, 1]} : vector<576x32xbf16> to vector<16x32xbf16>
    %c33 = arith.constant 33 : index
    %c0_131 = arith.constant 0 : index
    %c0_132 = arith.constant 0 : index
    %213 = vector.load %arg6[%c33, %c0_131, %c0_132] : memref<36x32x128xbf16, #tpu.memory_space<vmem>>, vector<1x32x128xbf16>
    %214 = vector.shape_cast %213 : vector<1x32x128xbf16> to vector<32x128xbf16>
    %cst_133 = arith.constant dense<0.000000e+00> : vector<16x128xf32>
    %215 = tpu.matmul %212, %214, %cst_133 {dimension_numbers = #tpu.dot_dimension_numbers<[1], [0], [0], [1], [0, 0, 1, 1], [], []>} : vector<16x32xbf16>, vector<32x128xbf16>, vector<16x128xf32> -> vector<16x128xf32>
    %216 = arith.addf %211, %215 : vector<16x128xf32>
    %217 = vector.extract_strided_slice %47 {offsets = [544, 0], sizes = [16, 32], strides = [1, 1]} : vector<576x32xbf16> to vector<16x32xbf16>
    %c34 = arith.constant 34 : index
    %c0_134 = arith.constant 0 : index
    %c0_135 = arith.constant 0 : index
    %218 = vector.load %arg6[%c34, %c0_134, %c0_135] : memref<36x32x128xbf16, #tpu.memory_space<vmem>>, vector<1x32x128xbf16>
    %219 = vector.shape_cast %218 : vector<1x32x128xbf16> to vector<32x128xbf16>
    %cst_136 = arith.constant dense<0.000000e+00> : vector<16x128xf32>
    %220 = tpu.matmul %217, %219, %cst_136 {dimension_numbers = #tpu.dot_dimension_numbers<[1], [0], [0], [1], [0, 0, 1, 1], [], []>} : vector<16x32xbf16>, vector<32x128xbf16>, vector<16x128xf32> -> vector<16x128xf32>
    %221 = arith.addf %216, %220 : vector<16x128xf32>
    %222 = vector.extract_strided_slice %47 {offsets = [560, 0], sizes = [16, 32], strides = [1, 1]} : vector<576x32xbf16> to vector<16x32xbf16>
    %c35 = arith.constant 35 : index
    %c0_137 = arith.constant 0 : index
    %c0_138 = arith.constant 0 : index
    %223 = vector.load %arg6[%c35, %c0_137, %c0_138] : memref<36x32x128xbf16, #tpu.memory_space<vmem>>, vector<1x32x128xbf16>
    %224 = vector.shape_cast %223 : vector<1x32x128xbf16> to vector<32x128xbf16>
    %cst_139 = arith.constant dense<0.000000e+00> : vector<16x128xf32>
    %225 = tpu.matmul %222, %224, %cst_139 {dimension_numbers = #tpu.dot_dimension_numbers<[1], [0], [0], [1], [0, 0, 1, 1], [], []>} : vector<16x32xbf16>, vector<32x128xbf16>, vector<16x128xf32> -> vector<16x128xf32>
    %226 = arith.addf %221, %225 : vector<16x128xf32>
    %c0_140 = arith.constant 0 : index
    %c0_141 = arith.constant 0 : index
    %227 = vector.load %arg7[%c0_140, %c0_141] : memref<1x128xf32, #tpu.memory_space<vmem>>, vector<1x128xf32>
    %228 = vector.broadcast %227 : vector<1x128xf32> to vector<16x128xf32>
    %229 = arith.addf %226, %228 : vector<16x128xf32>
    %c0_142 = arith.constant 0 : index
    %c0_143 = arith.constant 0 : index
    %230 = vector.load %arg8[%c0_142, %c0_143] : memref<16x128xf32, #tpu.memory_space<vmem>>, vector<16x128xf32>
    tpu.vector_store %arg8[%c0_142, %c0_143], %229 {strides = array<i32>} : memref<16x128xf32, #tpu.memory_space<vmem>>, vector<16x128xf32>,
    %231 = tpu.iota {dimensions = array<i32: 1>} : vector<16x128xi32>
    %c8_i32 = arith.constant 8 : i32
    %232 = vector.broadcast %c8_i32 : i32 to vector<16x128xi32>
    %233 = arith.cmpi slt, %231, %232 : vector<16x128xi32>
    %cst_144 = arith.constant -1.000000e+30 : f32
    %234 = vector.broadcast %cst_144 : f32 to vector<16x128xf32>
    %235 = arith.select %233, %229, %234 : vector<16x128xi1>, vector<16x128xf32>
    %cst_145 = arith.constant dense<0xFF800000> : vector<16xf32>
    %236 = vector.multi_reduction <maximumf>, %235, %cst_145 [1] : vector<16x128xf32> to vector<16xf32>
    %237 = vector.shape_cast %236 : vector<16xf32> to vector<16x1xf32>
    %238 = vector.broadcast %237 : vector<16x1xf32> to vector<16x128xf32>
    %239 = arith.subf %235, %238 : vector<16x128xf32>
    %240 = math.exp %239 : vector<16x128xf32>
    %cst_146 = arith.constant dense<0.000000e+00> : vector<16xf32>
    %241 = vector.multi_reduction <add>, %240, %cst_146 [1] : vector<16x128xf32> to vector<16xf32>
    %242 = vector.shape_cast %241 : vector<16xf32> to vector<16x1xf32>
    %243 = math.log %242 : vector<16x1xf32>
    %244 = vector.broadcast %243 : vector<16x1xf32> to vector<16x128xf32>
    %245 = arith.subf %239, %244 : vector<16x128xf32>
    %c0_147 = arith.constant 0 : index
    %c0_148 = arith.constant 0 : index
    %246 = vector.load %arg9[%c0_147, %c0_148] : memref<16x128xf32, #tpu.memory_space<vmem>>, vector<16x128xf32>
    tpu.vector_store %arg9[%c0_147, %c0_148], %245 {strides = array<i32>} : memref<16x128xf32, #tpu.memory_space<vmem>>, vector<16x128xf32>,
    return
  }
  func.func @transform_0(%arg0: i32) -> (i32, i32, i32) {
    %c0_i32 = arith.constant 0 : i32
    %c0_i32_0 = arith.constant 0 : i32
    %c0_i32_1 = arith.constant 0 : i32
    return %c0_i32, %arg0, %c0_i32_0 : i32, i32, i32
  }
  func.func @transform_1(%arg0: i32) -> (i32, i32, i32) {
    %c0_i32 = arith.constant 0 : i32
    %c0_i32_0 = arith.constant 0 : i32
    %c0_i32_1 = arith.constant 0 : i32
    %c0_i32_2 = arith.constant 0 : i32
    return %c0_i32, %c0_i32_0, %c0_i32_1 : i32, i32, i32
  }
  func.func @transform_2(%arg0: i32) -> (i32, i32) {
    %c0_i32 = arith.constant 0 : i32
    %c0_i32_0 = arith.constant 0 : i32
    %c0_i32_1 = arith.constant 0 : i32
    return %c0_i32, %c0_i32_0 : i32, i32
  }
  func.func @transform_3(%arg0: i32) -> (i32, i32, i32) {
    %c0_i32 = arith.constant 0 : i32
    %c0_i32_0 = arith.constant 0 : i32
    %c0_i32_1 = arith.constant 0 : i32
    %c0_i32_2 = arith.constant 0 : i32
    return %c0_i32, %c0_i32_0, %c0_i32_1 : i32, i32, i32
  }
  func.func @transform_4(%arg0: i32) -> (i32, i32) {
    %c0_i32 = arith.constant 0 : i32
    %c0_i32_0 = arith.constant 0 : i32
    %c0_i32_1 = arith.constant 0 : i32
    return %c0_i32, %c0_i32_0 : i32, i32
  }
  func.func @transform_5(%arg0: i32) -> (i32, i32, i32) {
    %c0_i32 = arith.constant 0 : i32
    %c0_i32_0 = arith.constant 0 : i32
    %c0_i32_1 = arith.constant 0 : i32
    %c0_i32_2 = arith.constant 0 : i32
    return %c0_i32, %c0_i32_0, %c0_i32_1 : i32, i32, i32
  }
  func.func @transform_6(%arg0: i32) -> (i32, i32) {
    %c0_i32 = arith.constant 0 : i32
    %c0_i32_0 = arith.constant 0 : i32
    %c0_i32_1 = arith.constant 0 : i32
    return %c0_i32, %c0_i32_0 : i32, i32
  }
  func.func @transform_7(%arg0: i32) -> (i32, i32) {
    %c0_i32 = arith.constant 0 : i32
    %c0_i32_0 = arith.constant 0 : i32
    return %arg0, %c0_i32 : i32, i32
  }
  func.func @transform_8(%arg0: i32) -> (i32, i32) {
    %c0_i32 = arith.constant 0 : i32
    %c0_i32_0 = arith.constant 0 : i32
    return %arg0, %c0_i32 : i32, i32
  }
}

</mosaic_0001>

<llo_original>
// kernel: cnn_a_forward.1
$region0: #{cnn_a_forward.1}
  #allocation0 [shape = 'u32[]', space=smem, size = 0x4, offset = 0x4, fixed_abs, tag = 'smem constant byte address 0x4 - core index']
  #allocation1 [shape = 'u32[144,128]{1,0:T(1,128)}', space=vmem, size = 0x12000, scoped, tag = 'internal scratch']
  %s0 = inlined_call_operand.vmem [shape: bf16[40,16,4], index: 0, kind: input, shape index: {}]
  %s1 = inlined_call_operand.vmem [shape: bf16[3,4,32], index: 1, kind: input, shape index: {}]
  %s2 = inlined_call_operand.vmem [shape: f32[1,32], index: 2, kind: input, shape index: {}]
  %s3 = inlined_call_operand.vmem [shape: bf16[3,32,32], index: 3, kind: input, shape index: {}]
  %s4 = inlined_call_operand.vmem [shape: f32[1,32], index: 4, kind: input, shape index: {}]
  %s5 = inlined_call_operand.vmem [shape: bf16[36,32,128], index: 5, kind: input, shape index: {}]
  %s6 = inlined_call_operand.vmem [shape: f32[1,128], index: 6, kind: input, shape index: {}]
  %s7 = inlined_call_operand.vmem [shape: f32[16,128], index: 7, kind: output, shape index: {0}]
  %s8 = inlined_call_operand.vmem [shape: f32[16,128], index: 8, kind: output, shape index: {1}]
  %9 = xla_tuple %s7, %s8
  %s10 = sld [smem:[#allocation0]]
  $region46: #{cnn_a_forward.1} parent=0
    _
  %s12 = ssub.s32 1, %s10
  %s13 = scalar_select 0, %s12, %s10
  // Predicated region
  $region2: #{cnn_a_forward.1} parent=0 // pred_check
    _
  $region3: #{cnn_a_forward.1} parent=0 // pred_check_branch
    %15 = sbr.rel (0) target = $region5
  $region4: #{cnn_a_forward.1} parent=0 // pred_region
    _
  $region5: #{cnn_a_forward.1} parent=0 // pred_fallthru
    _
  // Predicated region
  $region6: #{cnn_a_forward.1} parent=0 // pred_check
    _
  $region7: #{cnn_a_forward.1} parent=0 // pred_check_branch
    %17 = sbr.rel (0) target = $region9
  $region8: #{cnn_a_forward.1} parent=0 // pred_region
    _
  $region9: #{cnn_a_forward.1} parent=0 // pred_fallthru
    _
  // Predicated region
  $region10: #{cnn_a_forward.1} parent=0 // pred_check
    _
  $region11: #{cnn_a_forward.1} parent=0 // pred_check_branch
    %19 = sbr.rel (0) target = $region13
  $region12: #{cnn_a_forward.1} parent=0 // pred_region
    _
  $region13: #{cnn_a_forward.1} parent=0 // pred_fallthru
    _
  // Predicated region
  $region14: #{cnn_a_forward.1} parent=0 // pred_check
    _
  $region15: #{cnn_a_forward.1} parent=0 // pred_check_branch
    %21 = sbr.rel (0) target = $region17
  $region16: #{cnn_a_forward.1} parent=0 // pred_region
    _
  $region17: #{cnn_a_forward.1} parent=0 // pred_fallthru
    _
  // Predicated region
  $region18: #{cnn_a_forward.1} parent=0 // pred_check
    _
  $region19: #{cnn_a_forward.1} parent=0 // pred_check_branch
    %23 = sbr.rel (0) target = $region21
  $region20: #{cnn_a_forward.1} parent=0 // pred_region
    _
  $region21: #{cnn_a_forward.1} parent=0 // pred_fallthru
    _
  // Predicated region
  $region22: #{cnn_a_forward.1} parent=0 // pred_check
    _
  $region23: #{cnn_a_forward.1} parent=0 // pred_check_branch
    %25 = sbr.rel (0) target = $region25
  $region24: #{cnn_a_forward.1} parent=0 // pred_region
    _
  $region25: #{cnn_a_forward.1} parent=0 // pred_fallthru
    _
  // Predicated region
  $region26: #{cnn_a_forward.1} parent=0 // pred_check
    _
  $region27: #{cnn_a_forward.1} parent=0 // pred_check_branch
    %27 = sbr.rel (0) target = $region29
  $region28: #{cnn_a_forward.1} parent=0 // pred_region
    _
  $region29: #{cnn_a_forward.1} parent=0 // pred_fallthru
    _
  %v29 = vld [vmem:[%s0] sm:$0xf]
  %v30 = vld [vmem:[%s0 + $0x4] sm:$0xf]
  %v31 = vld [vmem:[%s0 + $0x8] sm:$0xf]
  %v32 = vld [vmem:[%s0 + $0xc] sm:$0xf]
  %v33 = vld [vmem:[%s0 + $0x10] sm:$0xf]
  %v34 = vld [vmem:[%s0 + $0x14] sm:$0xf]
  %v35 = vld [vmem:[%s0 + $0x18] sm:$0xf]
  %v36 = vld [vmem:[%s0 + $0x1c] sm:$0xf]
  %v37 = vld [vmem:[%s0 + $0x20] sm:$0xf]
  %v38 = vld [vmem:[%s0 + $0x24] sm:$0xf]
  %v39 = vld [vmem:[%s0 + $0x28] sm:$0xf]
  %v40 = vld [vmem:[%s0 + $0x2c] sm:$0xf]
  %v41 = vld [vmem:[%s0 + $0x30] sm:$0xf]
  %v42 = vld [vmem:[%s0 + $0x34] sm:$0xf]
  %v43 = vld [vmem:[%s0 + $0x38] sm:$0xf]
  %v44 = vld [vmem:[%s0 + $0x3c] sm:$0xf]
  %v45 = vld [vmem:[%s0 + $0x40] sm:$0xf]
  %v46 = vld [vmem:[%s0 + $0x44] sm:$0xf]
  %v47 = vld [vmem:[%s0 + $0x48] sm:$0xf]
  %v48 = vld [vmem:[%s0 + $0x4c] sm:$0xf]
  %v49 = vld [vmem:[%s0 + $0x50] sm:$0xf]
  %v50 = vld [vmem:[%s0 + $0x54] sm:$0xf]
  %v51 = vld [vmem:[%s0 + $0x58] sm:$0xf]
  %v52 = vld [vmem:[%s0 + $0x5c] sm:$0xf]
  %v53 = vld [vmem:[%s0 + $0x60] sm:$0xf]
  %v54 = vld [vmem:[%s0 + $0x64] sm:$0xf]
  %v55 = vld [vmem:[%s0 + $0x68] sm:$0xf]
  %v56 = vld [vmem:[%s0 + $0x6c] sm:$0xf]
  %v57 = vld [vmem:[%s0 + $0x70] sm:$0xf]
  %v58 = vld [vmem:[%s0 + $0x74] sm:$0xf]
  %v59 = vld [vmem:[%s0 + $0x78] sm:$0xf]
  %v60 = vld [vmem:[%s0 + $0x7c] sm:$0xf]
  %v61 = vld [vmem:[%s0 + $0x80] sm:$0xf]
  %v62 = vld [vmem:[%s0 + $0x84] sm:$0xf]
  %v63 = vld [vmem:[%s0 + $0x88] sm:$0xf]
  %v64 = vld [vmem:[%s0 + $0x8c] sm:$0xf]
  %v65 = vld [vmem:[%s0 + $0x90] sm:$0xf]
  %v66 = vld [vmem:[%s0 + $0x94] sm:$0xf]
  %v67 = vld [vmem:[%s0 + $0x98] sm:$0xf]
  %v68 = vld [vmem:[%s0 + $0x9c] sm:$0xf]
  %v69 = vld [vmem:[%s0 + $0xa0] sm:$0xf]
  %v70 = vld [vmem:[%s0 + $0xa4] sm:$0xf]
  %v71 = vld [vmem:[%s0 + $0xa8] sm:$0xf]
  %v72 = vld [vmem:[%s0 + $0xac] sm:$0xf]
  %v73 = vld [vmem:[%s0 + $0xb0] sm:$0xf]
  %v74 = vld [vmem:[%s0 + $0xb4] sm:$0xf]
  %v75 = vld [vmem:[%s0 + $0xb8] sm:$0xf]
  %v76 = vld [vmem:[%s0 + $0xbc] sm:$0xf]
  %v77 = vld [vmem:[%s0 + $0xc0] sm:$0xf]
  %v78 = vld [vmem:[%s0 + $0xc4] sm:$0xf]
  %v79 = vld [vmem:[%s0 + $0xc8] sm:$0xf]
  %v80 = vld [vmem:[%s0 + $0xcc] sm:$0xf]
  %v81 = vld [vmem:[%s0 + $0xd0] sm:$0xf]
  %v82 = vld [vmem:[%s0 + $0xd4] sm:$0xf]
  %v83 = vld [vmem:[%s0 + $0xd8] sm:$0xf]
  %v84 = vld [vmem:[%s0 + $0xdc] sm:$0xf]
  %v85 = vld [vmem:[%s0 + $0xe0] sm:$0xf]
  %v86 = vld [vmem:[%s0 + $0xe4] sm:$0xf]
  %v87 = vld [vmem:[%s0 + $0xe8] sm:$0xf]
  %v88 = vld [vmem:[%s0 + $0xec] sm:$0xf]
  %v89 = vld [vmem:[%s0 + $0xf0] sm:$0xf]
  %v90 = vld [vmem:[%s0 + $0xf4] sm:$0xf]
  %v91 = vld [vmem:[%s0 + $0xf8] sm:$0xf]
  %v92 = vld [vmem:[%s0 + $0xfc] sm:$0xf]
  %v93 = vld [vmem:[%s0 + $0x100] sm:$0xf]
  %v94 = vld [vmem:[%s0 + $0x104] sm:$0xf]
  %v95 = vld [vmem:[%s0 + $0x108] sm:$0xf]
  %v96 = vld [vmem:[%s0 + $0x10c] sm:$0xf]
  %v97 = vld [vmem:[%s0 + $0x110] sm:$0xf]
  %v98 = vld [vmem:[%s0 + $0x114] sm:$0xf]
  %v99 = vld [vmem:[%s0 + $0x118] sm:$0xf]
  %v100 = vld [vmem:[%s0 + $0x11c] sm:$0xf]
  %v101 = vld [vmem:[%s0 + $0x120] sm:$0xf]
  %v102 = vld [vmem:[%s0 + $0x124] sm:$0xf]
  %v103 = vld [vmem:[%s0 + $0x128] sm:$0xf]
  %v104 = vld [vmem:[%s0 + $0x12c] sm:$0xf]
  %v105 = vld [vmem:[%s0 + $0x130] sm:$0xf]
  %v106 = vld [vmem:[%s0 + $0x134] sm:$0xf]
  %v107 = vld [vmem:[%s0 + $0x138] sm:$0xf]
  %v108 = vld [vmem:[%s0 + $0x13c] sm:$0xf]
  %v109 = vld [vmem:[%s1] sm:$0x3]
  %s110 = scalar_lea.vmem %s1, 2
  %v111 = vld [vmem:[%s110] sm:$0x3]
  %v188 = vunpack.c.l.b16 %v31
  %v189 = vunpack.c.l.b16 %v32
  %v190 = vunpack.c.l.b16 %v33
  %v191 = vunpack.c.l.b16 %v34
  %v192 = vunpack.c.l.b16 %v35
  %v193 = vunpack.c.l.b16 %v36
  %v194 = vunpack.c.l.b16 %v37
  %v195 = vunpack.c.l.b16 %v38
  %v196 = vunpack.c.l.b16 %v39
  %v197 = vunpack.c.l.b16 %v40
  %v198 = vunpack.c.l.b16 %v41
  %v199 = vunpack.c.l.b16 %v42
  %v200 = vunpack.c.l.b16 %v43
  %v201 = vunpack.c.l.b16 %v44
  %v202 = vunpack.c.l.b16 %v45
  %v203 = vunpack.c.l.b16 %v46
  %v204 = vunpack.c.l.b16 %v47
  %v205 = vunpack.c.l.b16 %v48
  %v206 = vunpack.c.l.b16 %v49
  %v207 = vunpack.c.l.b16 %v50
  %v208 = vunpack.c.l.b16 %v51
  %v209 = vunpack.c.l.b16 %v52
  %v210 = vunpack.c.l.b16 %v53
  %v211 = vunpack.c.l.b16 %v54
  %v212 = vunpack.c.l.b16 %v55
  %v213 = vunpack.c.l.b16 %v56
  %v214 = vunpack.c.l.b16 %v57
  %v215 = vunpack.c.l.b16 %v58
  %v216 = vunpack.c.l.b16 %v59
  %v217 = vunpack.c.l.b16 %v60
  %v218 = vunpack.c.l.b16 %v61
  %v219 = vunpack.c.l.b16 %v62
  %v220 = vunpack.c.l.b16 %v63
  %v221 = vunpack.c.l.b16 %v64
  %v222 = vunpack.c.l.b16 %v65
  %v223 = vunpack.c.l.b16 %v66
  %v224 = vunpack.c.l.b16 %v67
  %v225 = vunpack.c.l.b16 %v68
  %v226 = vunpack.c.l.b16 %v69
  %v227 = vunpack.c.l.b16 %v70
  %v228 = vunpack.c.l.b16 %v71
  %v229 = vunpack.c.l.b16 %v72
  %v230 = vunpack.c.l.b16 %v73
  %v231 = vunpack.c.l.b16 %v74
  %v232 = vunpack.c.l.b16 %v75
  %v233 = vunpack.c.l.b16 %v76
  %v234 = vunpack.c.l.b16 %v77
  %v235 = vunpack.c.l.b16 %v78
  %v236 = vunpack.c.l.b16 %v79
  %v237 = vunpack.c.l.b16 %v80
  %v238 = vunpack.c.l.b16 %v81
  %v239 = vunpack.c.l.b16 %v82
  %v240 = vunpack.c.l.b16 %v83
  %v241 = vunpack.c.l.b16 %v84
  %v242 = vunpack.c.l.b16 %v85
  %v243 = vunpack.c.l.b16 %v86
  %v244 = vunpack.c.l.b16 %v87
  %v245 = vunpack.c.l.b16 %v88
  %v246 = vunpack.c.l.b16 %v89
  %v247 = vunpack.c.l.b16 %v90
  %v248 = vunpack.c.l.b16 %v91
  %v249 = vunpack.c.l.b16 %v92
  %v250 = vunpack.c.l.b16 %v93
  %v251 = vunpack.c.l.b16 %v94
  %v252 = vunpack.c.l.b16 %v95
  %v253 = vunpack.c.l.b16 %v96
  %v254 = vunpack.c.l.b16 %v97
  %v255 = vunpack.c.l.b16 %v98
  %v256 = vunpack.c.l.b16 %v99
  %v257 = vunpack.c.l.b16 %v100
  %v258 = vunpack.c.l.b16 %v101
  %v259 = vunpack.c.l.b16 %v102
  %v260 = vunpack.c.l.b16 %v103
  %v261 = vunpack.c.l.b16 %v104
  %v262 = vunpack.c.l.b16 %v105
  %v263 = vunpack.c.l.b16 %v106
  %v264 = vpack.c.b16 %v189, %v188
  %v265 = vpack.c.b16 %v191, %v190
  %v266 = vpack.c.b16 %v193, %v192
  %v267 = vpack.c.b16 %v195, %v194
  %v268 = vpack.c.b16 %v197, %v196
  %v269 = vpack.c.b16 %v199, %v198
  %v270 = vpack.c.b16 %v201, %v200
  %v271 = vpack.c.b16 %v203, %v202
  %v272 = vpack.c.b16 %v205, %v204
  %v273 = vpack.c.b16 %v207, %v206
  %v274 = vpack.c.b16 %v209, %v208
  %v275 = vpack.c.b16 %v211, %v210
  %v276 = vpack.c.b16 %v213, %v212
  %v277 = vpack.c.b16 %v215, %v214
  %v278 = vpack.c.b16 %v217, %v216
  %v279 = vpack.c.b16 %v219, %v218
  %v280 = vpack.c.b16 %v221, %v220
  %v281 = vpack.c.b16 %v223, %v222
  %v282 = vpack.c.b16 %v225, %v224
  %v283 = vpack.c.b16 %v227, %v226
  %v284 = vpack.c.b16 %v229, %v228
  %v285 = vpack.c.b16 %v231, %v230
  %v286 = vpack.c.b16 %v233, %v232
  %v287 = vpack.c.b16 %v235, %v234
  %v288 = vpack.c.b16 %v237, %v236
  %v289 = vpack.c.b16 %v239, %v238
  %v290 = vpack.c.b16 %v241, %v240
  %v291 = vpack.c.b16 %v243, %v242
  %v292 = vpack.c.b16 %v245, %v244
  %v293 = vpack.c.b16 %v247, %v246
  %v294 = vpack.c.b16 %v249, %v248
  %v295 = vpack.c.b16 %v251, %v250
  %v296 = vpack.c.b16 %v253, %v252
  %v297 = vpack.c.b16 %v255, %v254
  %v298 = vpack.c.b16 %v257, %v256
  %v299 = vpack.c.b16 %v259, %v258
  %v300 = vpack.c.b16 %v261, %v260
  %v301 = vpack.c.b16 %v263, %v262
  %vm302 = vcmask 31744
  %v304 = vsel %vm302, %v264, 0
  %v307 = vsel %vm302, %v265, 0
  %v310 = vsel %vm302, %v266, 0
  %v313 = vsel %vm302, %v267, 0
  %v316 = vsel %vm302, %v268, 0
  %v319 = vsel %vm302, %v269, 0
  %v322 = vsel %vm302, %v270, 0
  %v325 = vsel %vm302, %v271, 0
  %v328 = vsel %vm302, %v272, 0
  %v331 = vsel %vm302, %v273, 0
  %v334 = vsel %vm302, %v274, 0
  %v337 = vsel %vm302, %v275, 0
  %v340 = vsel %vm302, %v276, 0
  %v343 = vsel %vm302, %v277, 0
  %v346 = vsel %vm302, %v278, 0
  %v349 = vsel %vm302, %v279, 0
  %v352 = vsel %vm302, %v280, 0
  %v355 = vsel %vm302, %v281, 0
  %v358 = vsel %vm302, %v282, 0
  %v361 = vsel %vm302, %v283, 0
  %v364 = vsel %vm302, %v284, 0
  %v367 = vsel %vm302, %v285, 0
  %v370 = vsel %vm302, %v286, 0
  %v373 = vsel %vm302, %v287, 0
  %v376 = vsel %vm302, %v288, 0
  %v379 = vsel %vm302, %v289, 0
  %v382 = vsel %vm302, %v290, 0
  %v385 = vsel %vm302, %v291, 0
  %v388 = vsel %vm302, %v292, 0
  %v391 = vsel %vm302, %v293, 0
  %v394 = vsel %vm302, %v294, 0
  %v397 = vsel %vm302, %v295, 0
  %v400 = vsel %vm302, %v296, 0
  %v403 = vsel %vm302, %v297, 0
  %v406 = vsel %vm302, %v298, 0
  %v409 = vsel %vm302, %v299, 0
  %v412 = vsel %vm302, %v300, 0
  %v415 = vsel %vm302, %v301, 0
  %vm417 = vcmask 1041408
  %v419 = vsel %vm417, %v111, 0
  %421 = vmatprep.subr.bf16.mxu0 0
  %422 = vmatpush1.bf16.msra.mxu0 %v419
  %423 = vmatprep.subr.bf16.mxu0 0
  %424 = vmatpush1.bf16.msra.mxu0 0
  %425 = vmatprep.subr.bf16.mxu0 0
  %426 = vmatpush1.bf16.msra.mxu0 0
  %427 = vmatprep.subr.bf16.mxu0 0
  %428 = vmatpush1.bf16.msra.mxu0 0
  %429 = vmatprep.subr.bf16.mxu0 0
  %430 = vmatpush1.bf16.msra.mxu0 0
  %431 = vmatprep.subr.bf16.mxu0 0
  %432 = vmatpush1.bf16.msra.mxu0 0
  %433 = vmatprep.subr.bf16.mxu0 0
  %434 = vmatpush1.bf16.msra.mxu0 0
  %435 = vmatprep.subr.bf16.mxu0 0
  %436 = vmatpush1.bf16.msra.mxu0 0
  %437 = vmatprep.subr.bf16.mxu0 0
  %438 = vmatpush1.bf16.msra.mxu0 0
  %439 = vmatprep.subr.bf16.mxu0 0
  %440 = vmatpush1.bf16.msra.mxu0 0
  %441 = vmatprep.subr.bf16.mxu0 0
  %442 = vmatpush1.bf16.msra.mxu0 0
  %443 = vmatprep.subr.bf16.mxu0 0
  %444 = vmatpush1.bf16.msra.mxu0 0
  %445 = vmatprep.subr.bf16.mxu0 0
  %446 = vmatpush1.bf16.msra.mxu0 0
  %447 = vmatprep.subr.bf16.mxu0 0
  %448 = vmatpush1.bf16.msra.mxu0 0
  %449 = vmatprep.subr.bf16.mxu0 0
  %450 = vmatpush1.bf16.msra.mxu0 0
  %451 = vmatprep.subr.bf16.mxu0 0
  %452 = vmatpush1.bf16.msra.mxu0 0
  %453 = vmatprep.mubr.bf16.mxu0 0
  %454 = vmatmul.mubr.bf16.gmra.mrb[0].mxu0 %v304
  %v455 = vpop.f32.mrb[0].mxu0
  %v456 = vadd.f32 0.0, %v455
  %v457 = vpop.f32.mrb[0].mxu0
  %v458 = vpop.f32.mrb[0].mxu0
  %v459 = vadd.f32 0.0, %v458
  %v460 = vpop.f32.mrb[0].mxu0
  %461 = vmatprep.mubr.bf16.mxu0 0
  %462 = vmatmul.mubr.bf16.gmra.mrb[0].mxu0 %v307
  %v463 = vpop.f32.mrb[0].mxu0
  %v464 = vadd.f32 0.0, %v463
  %v465 = vpop.f32.mrb[0].mxu0
  %v466 = vpop.f32.mrb[0].mxu0
  %v467 = vadd.f32 0.0, %v466
  %v468 = vpop.f32.mrb[0].mxu0
  %469 = vmatprep.mubr.bf16.mxu0 0
  %470 = vmatmul.mubr.bf16.gmra.mrb[0].mxu0 %v310
  %v471 = vpop.f32.mrb[0].mxu0
  %v472 = vadd.f32 0.0, %v471
  %v473 = vpop.f32.mrb[0].mxu0
  %v474 = vpop.f32.mrb[0].mxu0
  %v475 = vadd.f32 0.0, %v474
  %v476 = vpop.f32.mrb[0].mxu0
  %477 = vmatprep.mubr.bf16.mxu0 0
  %478 = vmatmul.mubr.bf16.gmra.mrb[0].mxu0 %v313
  %v479 = vpop.f32.mrb[0].mxu0
  %v480 = vadd.f32 0.0, %v479
  %v481 = vpop.f32.mrb[0].mxu0
  %v482 = vpop.f32.mrb[0].mxu0
  %v483 = vadd.f32 0.0, %v482
  %v484 = vpop.f32.mrb[0].mxu0
  %485 = vmatprep.mubr.bf16.mxu0 0
  %486 = vmatmul.mubr.bf16.gmra.mrb[0].mxu0 %v316
  %v487 = vpop.f32.mrb[0].mxu0
  %v488 = vadd.f32 0.0, %v487
  %v489 = vpop.f32.mrb[0].mxu0
  %v490 = vpop.f32.mrb[0].mxu0
  %v491 = vadd.f32 0.0, %v490
  %v492 = vpop.f32.mrb[0].mxu0
  %493 = vmatprep.mubr.bf16.mxu0 0
  %494 = vmatmul.mubr.bf16.gmra.mrb[0].mxu0 %v319
  %v495 = vpop.f32.mrb[0].mxu0
  %v496 = vadd.f32 0.0, %v495
  %v497 = vpop.f32.mrb[0].mxu0
  %v498 = vpop.f32.mrb[0].mxu0
  %v499 = vadd.f32 0.0, %v498
  %v500 = vpop.f32.mrb[0].mxu0
  %501 = vmatprep.mubr.bf16.mxu0 0
  %502 = vmatmul.mubr.bf16.gmra.mrb[0].mxu0 %v322
  %v503 = vpop.f32.mrb[0].mxu0
  %v504 = vadd.f32 0.0, %v503
  %v505 = vpop.f32.mrb[0].mxu0
  %v506 = vpop.f32.mrb[0].mxu0
  %v507 = vadd.f32 0.0, %v506
  %v508 = vpop.f32.mrb[0].mxu0
  %509 = vmatprep.mubr.bf16.mxu0 0
  %510 = vmatmul.mubr.bf16.gmra.mrb[0].mxu0 %v325
  %v511 = vpop.f32.mrb[0].mxu0
  %v512 = vadd.f32 0.0, %v511
  %v513 = vpop.f32.mrb[0].mxu0
  %v514 = vpop.f32.mrb[0].mxu0
  %v515 = vadd.f32 0.0, %v514
  %v516 = vpop.f32.mrb[0].mxu0
  %517 = vmatprep.mubr.bf16.mxu0 0
  %518 = vmatmul.mubr.bf16.gmra.mrb[0].mxu0 %v328
  %v519 = vpop.f32.mrb[0].mxu0
  %v520 = vadd.f32 0.0, %v519
  %v521 = vpop.f32.mrb[0].mxu0
  %v522 = vpop.f32.mrb[0].mxu0
  %v523 = vadd.f32 0.0, %v522
  %v524 = vpop.f32.mrb[0].mxu0
  %525 = vmatprep.mubr.bf16.mxu0 0
  %526 = vmatmul.mubr.bf16.gmra.mrb[0].mxu0 %v331
  %v527 = vpop.f32.mrb[0].mxu0
  %v528 = vadd.f32 0.0, %v527
  %v529 = vpop.f32.mrb[0].mxu0
  %v530 = vpop.f32.mrb[0].mxu0
  %v531 = vadd.f32 0.0, %v530
  %v532 = vpop.f32.mrb[0].mxu0
  %533 = vmatprep.mubr.bf16.mxu0 0
  %534 = vmatmul.mubr.bf16.gmra.mrb[0].mxu0 %v334
  %v535 = vpop.f32.mrb[0].mxu0
  %v536 = vadd.f32 0.0, %v535
  %v537 = vpop.f32.mrb[0].mxu0
  %v538 = vpop.f32.mrb[0].mxu0
  %v539 = vadd.f32 0.0, %v538
  %v540 = vpop.f32.mrb[0].mxu0
  %541 = vmatprep.mubr.bf16.mxu0 0
  %542 = vmatmul.mubr.bf16.gmra.mrb[0].mxu0 %v337
  %v543 = vpop.f32.mrb[0].mxu0
  %v544 = vadd.f32 0.0, %v543
  %v545 = vpop.f32.mrb[0].mxu0
  %v546 = vpop.f32.mrb[0].mxu0
  %v547 = vadd.f32 0.0, %v546
  %v548 = vpop.f32.mrb[0].mxu0
  %549 = vmatprep.mubr.bf16.mxu0 0
  %550 = vmatmul.mubr.bf16.gmra.mrb[0].mxu0 %v340
  %v551 = vpop.f32.mrb[0].mxu0
  %v552 = vadd.f32 0.0, %v551
  %v553 = vpop.f32.mrb[0].mxu0
  %v554 = vpop.f32.mrb[0].mxu0
  %v555 = vadd.f32 0.0, %v554
  %v556 = vpop.f32.mrb[0].mxu0
  %557 = vmatprep.mubr.bf16.mxu0 0
  %558 = vmatmul.mubr.bf16.gmra.mrb[0].mxu0 %v343
  %v559 = vpop.f32.mrb[0].mxu0
  %v560 = vadd.f32 0.0, %v559
  %v561 = vpop.f32.mrb[0].mxu0
  %v562 = vpop.f32.mrb[0].mxu0
  %v563 = vadd.f32 0.0, %v562
  %v564 = vpop.f32.mrb[0].mxu0
  %565 = vmatprep.mubr.bf16.mxu0 0
  %566 = vmatmul.mubr.bf16.gmra.mrb[0].mxu0 %v346
  %v567 = vpop.f32.mrb[0].mxu0
  %v568 = vadd.f32 0.0, %v567
  %v569 = vpop.f32.mrb[0].mxu0
  %v570 = vpop.f32.mrb[0].mxu0
  %v571 = vadd.f32 0.0, %v570
  %v572 = vpop.f32.mrb[0].mxu0
  %573 = vmatprep.mubr.bf16.mxu0 0
  %574 = vmatmul.mubr.bf16.gmra.mrb[0].mxu0 %v349
  %v575 = vpop.f32.mrb[0].mxu0
  %v576 = vadd.f32 0.0, %v575
  %v577 = vpop.f32.mrb[0].mxu0
  %v578 = vpop.f32.mrb[0].mxu0
  %v579 = vadd.f32 0.0, %v578
  %v580 = vpop.f32.mrb[0].mxu0
  %581 = vmatprep.mubr.bf16.mxu0 0
  %582 = vmatmul.mubr.bf16.gmra.mrb[0].mxu0 %v352
  %v583 = vpop.f32.mrb[0].mxu0
  %v584 = vadd.f32 0.0, %v583
  %v585 = vpop.f32.mrb[0].mxu0
  %v586 = vpop.f32.mrb[0].mxu0
  %v587 = vadd.f32 0.0, %v586
  %v588 = vpop.f32.mrb[0].mxu0
  %589 = vmatprep.mubr.bf16.mxu0 0
  %590 = vmatmul.mubr.bf16.gmra.mrb[0].mxu0 %v355
  %v591 = vpop.f32.mrb[0].mxu0
  %v592 = vadd.f32 0.0, %v591
  %v593 = vpop.f32.mrb[0].mxu0
  %v594 = vpop.f32.mrb[0].mxu0
  %v595 = vadd.f32 0.0, %v594
  %v596 = vpop.f32.mrb[0].mxu0
  %597 = vmatprep.mubr.bf16.mxu0 0
  %598 = vmatmul.mubr.bf16.gmra.mrb[0].mxu0 %v358
  %v599 = vpop.f32.mrb[0].mxu0
  %v600 = vadd.f32 0.0, %v599
  %v601 = vpop.f32.mrb[0].mxu0
  %v602 = vpop.f32.mrb[0].mxu0
  %v603 = vadd.f32 0.0, %v602
  %v604 = vpop.f32.mrb[0].mxu0
  %605 = vmatprep.mubr.bf16.mxu0 0
  %606 = vmatmul.mubr.bf16.gmra.mrb[0].mxu0 %v361
  %v607 = vpop.f32.mrb[0].mxu0
  %v608 = vadd.f32 0.0, %v607
  %v609 = vpop.f32.mrb[0].mxu0
  %v610 = vpop.f32.mrb[0].mxu0
  %v611 = vadd.f32 0.0, %v610
  %v612 = vpop.f32.mrb[0].mxu0
  %613 = vmatprep.mubr.bf16.mxu0 0
  %614 = vmatmul.mubr.bf16.gmra.mrb[0].mxu0 %v364
  %v615 = vpop.f32.mrb[0].mxu0
  %v616 = vadd.f32 0.0, %v615
  %v617 = vpop.f32.mrb[0].mxu0
  %v618 = vpop.f32.mrb[0].mxu0
  %v619 = vadd.f32 0.0, %v618
  %v620 = vpop.f32.mrb[0].mxu0
  %621 = vmatprep.mubr.bf16.mxu0 0
  %622 = vmatmul.mubr.bf16.gmra.mrb[0].mxu0 %v367
  %v623 = vpop.f32.mrb[0].mxu0
  %v624 = vadd.f32 0.0, %v623
  %v625 = vpop.f32.mrb[0].mxu0
  %v626 = vpop.f32.mrb[0].mxu0
  %v627 = vadd.f32 0.0, %v626
  %v628 = vpop.f32.mrb[0].mxu0
  %629 = vmatprep.mubr.bf16.mxu0 0
  %630 = vmatmul.mubr.bf16.gmra.mrb[0].mxu0 %v370
  %v631 = vpop.f32.mrb[0].mxu0
  %v632 = vadd.f32 0.0, %v631
  %v633 = vpop.f32.mrb[0].mxu0
  %v634 = vpop.f32.mrb[0].mxu0
  %v635 = vadd.f32 0.0, %v634
  %v636 = vpop.f32.mrb[0].mxu0
  %637 = vmatprep.mubr.bf16.mxu0 0
  %638 = vmatmul.mubr.bf16.gmra.mrb[0].mxu0 %v373
  %v639 = vpop.f32.mrb[0].mxu0
  %v640 = vadd.f32 0.0, %v639
  %v641 = vpop.f32.mrb[0].mxu0
  %v642 = vpop.f32.mrb[0].mxu0
  %v643 = vadd.f32 0.0, %v642
  %v644 = vpop.f32.mrb[0].mxu0
  %645 = vmatprep.mubr.bf16.mxu0 0
  %646 = vmatmul.mubr.bf16.gmra.mrb[0].mxu0 %v376
  %v647 = vpop.f32.mrb[0].mxu0
  %v648 = vadd.f32 0.0, %v647
  %v649 = vpop.f32.mrb[0].mxu0
  %v650 = vpop.f32.mrb[0].mxu0
  %v651 = vadd.f32 0.0, %v650
  %v652 = vpop.f32.mrb[0].mxu0
  %653 = vmatprep.mubr.bf16.mxu0 0
  %654 = vmatmul.mubr.bf16.gmra.mrb[0].mxu0 %v379
  %v655 = vpop.f32.mrb[0].mxu0
  %v656 = vadd.f32 0.0, %v655
  %v657 = vpop.f32.mrb[0].mxu0
  %v658 = vpop.f32.mrb[0].mxu0
  %v659 = vadd.f32 0.0, %v658
  %v660 = vpop.f32.mrb[0].mxu0
  %661 = vmatprep.mubr.bf16.mxu0 0
  %662 = vmatmul.mubr.bf16.gmra.mrb[0].mxu0 %v382
  %v663 = vpop.f32.mrb[0].mxu0
  %v664 = vadd.f32 0.0, %v663
  %v665 = vpop.f32.mrb[0].mxu0
  %v666 = vpop.f32.mrb[0].mxu0
  %v667 = vadd.f32 0.0, %v666
  %v668 = vpop.f32.mrb[0].mxu0
  %669 = vmatprep.mubr.bf16.mxu0 0
  %670 = vmatmul.mubr.bf16.gmra.mrb[0].mxu0 %v385
  %v671 = vpop.f32.mrb[0].mxu0
  %v672 = vadd.f32 0.0, %v671
  %v673 = vpop.f32.mrb[0].mxu0
  %v674 = vpop.f32.mrb[0].mxu0
  %v675 = vadd.f32 0.0, %v674
  %v676 = vpop.f32.mrb[0].mxu0
  %677 = vmatprep.mubr.bf16.mxu0 0
  %678 = vmatmul.mubr.bf16.gmra.mrb[0].mxu0 %v388
  %v679 = vpop.f32.mrb[0].mxu0
  %v680 = vadd.f32 0.0, %v679
  %v681 = vpop.f32.mrb[0].mxu0
  %v682 = vpop.f32.mrb[0].mxu0
  %v683 = vadd.f32 0.0, %v682
  %v684 = vpop.f32.mrb[0].mxu0
  %685 = vmatprep.mubr.bf16.mxu0 0
  %686 = vmatmul.mubr.bf16.gmra.mrb[0].mxu0 %v391
  %v687 = vpop.f32.mrb[0].mxu0
  %v688 = vadd.f32 0.0, %v687
  %v689 = vpop.f32.mrb[0].mxu0
  %v690 = vpop.f32.mrb[0].mxu0
  %v691 = vadd.f32 0.0, %v690
  %v692 = vpop.f32.mrb[0].mxu0
  %693 = vmatprep.mubr.bf16.mxu0 0
  %694 = vmatmul.mubr.bf16.gmra.mrb[0].mxu0 %v394
  %v695 = vpop.f32.mrb[0].mxu0
  %v696 = vadd.f32 0.0, %v695
  %v697 = vpop.f32.mrb[0].mxu0
  %v698 = vpop.f32.mrb[0].mxu0
  %v699 = vadd.f32 0.0, %v698
  %v700 = vpop.f32.mrb[0].mxu0
  %701 = vmatprep.mubr.bf16.mxu0 0
  %702 = vmatmul.mubr.bf16.gmra.mrb[0].mxu0 %v397
  %v703 = vpop.f32.mrb[0].mxu0
  %v704 = vadd.f32 0.0, %v703
  %v705 = vpop.f32.mrb[0].mxu0
  %v706 = vpop.f32.mrb[0].mxu0
  %v707 = vadd.f32 0.0, %v706
  %v708 = vpop.f32.mrb[0].mxu0
  %709 = vmatprep.mubr.bf16.mxu0 0
  %710 = vmatmul.mubr.bf16.gmra.mrb[0].mxu0 %v400
  %v711 = vpop.f32.mrb[0].mxu0
  %v712 = vadd.f32 0.0, %v711
  %v713 = vpop.f32.mrb[0].mxu0
  %v714 = vpop.f32.mrb[0].mxu0
  %v715 = vadd.f32 0.0, %v714
  %v716 = vpop.f32.mrb[0].mxu0
  %717 = vmatprep.mubr.bf16.mxu0 0
  %718 = vmatmul.mubr.bf16.gmra.mrb[0].mxu0 %v403
  %v719 = vpop.f32.mrb[0].mxu0
  %v720 = vadd.f32 0.0, %v719
  %v721 = vpop.f32.mrb[0].mxu0
  %v722 = vpop.f32.mrb[0].mxu0
  %v723 = vadd.f32 0.0, %v722
  %v724 = vpop.f32.mrb[0].mxu0
  %725 = vmatprep.mubr.bf16.mxu0 0
  %726 = vmatmul.mubr.bf16.gmra.mrb[0].mxu0 %v406
  %v727 = vpop.f32.mrb[0].mxu0
  %v728 = vadd.f32 0.0, %v727
  %v729 = vpop.f32.mrb[0].mxu0
  %v730 = vpop.f32.mrb[0].mxu0
  %v731 = vadd.f32 0.0, %v730
  %v732 = vpop.f32.mrb[0].mxu0
  %733 = vmatprep.mubr.bf16.mxu0 0
  %734 = vmatmul.mubr.bf16.gmra.mrb[0].mxu0 %v409
  %v735 = vpop.f32.mrb[0].mxu0
  %v736 = vadd.f32 0.0, %v735
  %v737 = vpop.f32.mrb[0].mxu0
  %v738 = vpop.f32.mrb[0].mxu0
  %v739 = vadd.f32 0.0, %v738
  %v740 = vpop.f32.mrb[0].mxu0
  %741 = vmatprep.mubr.bf16.mxu0 0
  %742 = vmatmul.mubr.bf16.gmra.mrb[0].mxu0 %v412
  %v743 = vpop.f32.mrb[0].mxu0
  %v744 = vadd.f32 0.0, %v743
  %v745 = vpop.f32.mrb[0].mxu0
  %v746 = vpop.f32.mrb[0].mxu0
  %v747 = vadd.f32 0.0, %v746
  %v748 = vpop.f32.mrb[0].mxu0
  %749 = vmatprep.mubr.bf16.mxu0 0
  %750 = vmatmul.mubr.bf16.gmra.mrb[0].mxu0 %v415
  %v751 = vpop.f32.mrb[0].mxu0
  %v752 = vadd.f32 0.0, %v751
  %v753 = vpop.f32.mrb[0].mxu0
  %v754 = vpop.f32.mrb[0].mxu0
  %v755 = vadd.f32 0.0, %v754
  %v756 = vpop.f32.mrb[0].mxu0
  %757 = vdwg.mxu0
  %v760 = vunpack.c.l.b16 %v29
  %v761 = vunpack.c.l.b16 %v30
  %v762 = vpack.c.b16 %v761, %v760
  %v764 = vsel %vm302, %v762, 0
  %v767 = vsel %vm417, %v109, 0
  %769 = vmatprep.subr.bf16.mxu0 0
  %770 = vmatpush1.bf16.msra.mxu0 %v767
  %771 = vmatprep.subr.bf16.mxu0 0
  %772 = vmatpush1.bf16.msra.mxu0 0
  %773 = vmatprep.subr.bf16.mxu0 0
  %774 = vmatpush1.bf16.msra.mxu0 0
  %775 = vmatprep.subr.bf16.mxu0 0
  %776 = vmatpush1.bf16.msra.mxu0 0
  %777 = vmatprep.subr.bf16.mxu0 0
  %778 = vmatpush1.bf16.msra.mxu0 0
  %779 = vmatprep.subr.bf16.mxu0 0
  %780 = vmatpush1.bf16.msra.mxu0 0
  %781 = vmatprep.subr.bf16.mxu0 0
  %782 = vmatpush1.bf16.msra.mxu0 0
  %783 = vmatprep.subr.bf16.mxu0 0
  %784 = vmatpush1.bf16.msra.mxu0 0
  %785 = vmatprep.subr.bf16.mxu0 0
  %786 = vmatpush1.bf16.msra.mxu0 0
  %787 = vmatprep.subr.bf16.mxu0 0
  %788 = vmatpush1.bf16.msra.mxu0 0
  %789 = vmatprep.subr.bf16.mxu0 0
  %790 = vmatpush1.bf16.msra.mxu0 0
  %791 = vmatprep.subr.bf16.mxu0 0
  %792 = vmatpush1.bf16.msra.mxu0 0
  %793 = vmatprep.subr.bf16.mxu0 0
  %794 = vmatpush1.bf16.msra.mxu0 0
  %795 = vmatprep.subr.bf16.mxu0 0
  %796 = vmatpush1.bf16.msra.mxu0 0
  %797 = vmatprep.subr.bf16.mxu0 0
  %798 = vmatpush1.bf16.msra.mxu0 0
  %799 = vmatprep.subr.bf16.mxu0 0
  %800 = vmatpush1.bf16.msra.mxu0 0
  %801 = vmatprep.mubr.bf16.mxu0 0
  %802 = vmatmul.mubr.bf16.gmra.mrb[0].mxu0 %v764
  %v803 = vpop.f32.mrb[0].mxu0
  %v804 = vadd.f32 %v456, %v803
  %v805 = vpop.f32.mrb[0].mxu0
  %v806 = vpop.f32.mrb[0].mxu0
  %v807 = vadd.f32 %v459, %v806
  %v808 = vpop.f32.mrb[0].mxu0
  %809 = vmatprep.mubr.bf16.mxu0 0
  %810 = vmatmul.mubr.bf16.gmra.mrb[0].mxu0 %v304
  %v811 = vpop.f32.mrb[0].mxu0
  %v812 = vadd.f32 %v464, %v811
  %v813 = vpop.f32.mrb[0].mxu0
  %v814 = vpop.f32.mrb[0].mxu0
  %v815 = vadd.f32 %v467, %v814
  %v816 = vpop.f32.mrb[0].mxu0
  %817 = vmatprep.mubr.bf16.mxu0 0
  %818 = vmatmul.mubr.bf16.gmra.mrb[0].mxu0 %v307
  %v819 = vpop.f32.mrb[0].mxu0
  %v820 = vadd.f32 %v472, %v819
  %v821 = vpop.f32.mrb[0].mxu0
  %v822 = vpop.f32.mrb[0].mxu0
  %v823 = vadd.f32 %v475, %v822
  %v824 = vpop.f32.mrb[0].mxu0
  %825 = vmatprep.mubr.bf16.mxu0 0
  %826 = vmatmul.mubr.bf16.gmra.mrb[0].mxu0 %v310
  %v827 = vpop.f32.mrb[0].mxu0
  %v828 = vadd.f32 %v480, %v827
  %v829 = vpop.f32.mrb[0].mxu0
  %v830 = vpop.f32.mrb[0].mxu0
  %v831 = vadd.f32 %v483, %v830
  %v832 = vpop.f32.mrb[0].mxu0
  %833 = vmatprep.mubr.bf16.mxu0 0
  %834 = vmatmul.mubr.bf16.gmra.mrb[0].mxu0 %v313
  %v835 = vpop.f32.mrb[0].mxu0
  %v836 = vadd.f32 %v488, %v835
  %v837 = vpop.f32.mrb[0].mxu0
  %v838 = vpop.f32.mrb[0].mxu0
  %v839 = vadd.f32 %v491, %v838
  %v840 = vpop.f32.mrb[0].mxu0
  %841 = vmatprep.mubr.bf16.mxu0 0
  %842 = vmatmul.mubr.bf16.gmra.mrb[0].mxu0 %v316
  %v843 = vpop.f32.mrb[0].mxu0
  %v844 = vadd.f32 %v496, %v843
  %v845 = vpop.f32.mrb[0].mxu0
  %v846 = vpop.f32.mrb[0].mxu0
  %v847 = vadd.f32 %v499, %v846
  %v848 = vpop.f32.mrb[0].mxu0
  %849 = vmatprep.mubr.bf16.mxu0 0
  %850 = vmatmul.mubr.bf16.gmra.mrb[0].mxu0 %v319
  %v851 = vpop.f32.mrb[0].mxu0
  %v852 = vadd.f32 %v504, %v851
  %v853 = vpop.f32.mrb[0].mxu0
  %v854 = vpop.f32.mrb[0].mxu0
  %v855 = vadd.f32 %v507, %v854
  %v856 = vpop.f32.mrb[0].mxu0
  %857 = vmatprep.mubr.bf16.mxu0 0
  %858 = vmatmul.mubr.bf16.gmra.mrb[0].mxu0 %v322
  %v859 = vpop.f32.mrb[0].mxu0
  %v860 = vadd.f32 %v512, %v859
  %v861 = vpop.f32.mrb[0].mxu0
  %v862 = vpop.f32.mrb[0].mxu0
  %v863 = vadd.f32 %v515, %v862
  %v864 = vpop.f32.mrb[0].mxu0
  %865 = vmatprep.mubr.bf16.mxu0 0
  %866 = vmatmul.mubr.bf16.gmra.mrb[0].mxu0 %v325
  %v867 = vpop.f32.mrb[0].mxu0
  %v868 = vadd.f32 %v520, %v867
  %v869 = vpop.f32.mrb[0].mxu0
  %v870 = vpop.f32.mrb[0].mxu0
  %v871 = vadd.f32 %v523, %v870
  %v872 = vpop.f32.mrb[0].mxu0
  %873 = vmatprep.mubr.bf16.mxu0 0
  %874 = vmatmul.mubr.bf16.gmra.mrb[0].mxu0 %v328
  %v875 = vpop.f32.mrb[0].mxu0
  %v876 = vadd.f32 %v528, %v875
  %v877 = vpop.f32.mrb[0].mxu0
  %v878 = vpop.f32.mrb[0].mxu0
  %v879 = vadd.f32 %v531, %v878
  %v880 = vpop.f32.mrb[0].mxu0
  %881 = vmatprep.mubr.bf16.mxu0 0
  %882 = vmatmul.mubr.bf16.gmra.mrb[0].mxu0 %v331
  %v883 = vpop.f32.mrb[0].mxu0
  %v884 = vadd.f32 %v536, %v883
  %v885 = vpop.f32.mrb[0].mxu0
  %v886 = vpop.f32.mrb[0].mxu0
  %v887 = vadd.f32 %v539, %v886
  %v888 = vpop.f32.mrb[0].mxu0
  %889 = vmatprep.mubr.bf16.mxu0 0
  %890 = vmatmul.mubr.bf16.gmra.mrb[0].mxu0 %v334
  %v891 = vpop.f32.mrb[0].mxu0
  %v892 = vadd.f32 %v544, %v891
  %v893 = vpop.f32.mrb[0].mxu0
  %v894 = vpop.f32.mrb[0].mxu0
  %v895 = vadd.f32 %v547, %v894
  %v896 = vpop.f32.mrb[0].mxu0
  %897 = vmatprep.mubr.bf16.mxu0 0
  %898 = vmatmul.mubr.bf16.gmra.mrb[0].mxu0 %v337
  %v899 = vpop.f32.mrb[0].mxu0
  %v900 = vadd.f32 %v552, %v899
  %v901 = vpop.f32.mrb[0].mxu0
  %v902 = vpop.f32.mrb[0].mxu0
  %v903 = vadd.f32 %v555, %v902
  %v904 = vpop.f32.mrb[0].mxu0
  %905 = vmatprep.mubr.bf16.mxu0 0
  %906 = vmatmul.mubr.bf16.gmra.mrb[0].mxu0 %v340
  %v907 = vpop.f32.mrb[0].mxu0
  %v908 = vadd.f32 %v560, %v907
  %v909 = vpop.f32.mrb[0].mxu0
  %v910 = vpop.f32.mrb[0].mxu0
  %v911 = vadd.f32 %v563, %v910
  %v912 = vpop.f32.mrb[0].mxu0
  %913 = vmatprep.mubr.bf16.mxu0 0
  %914 = vmatmul.mubr.bf16.gmra.mrb[0].mxu0 %v343
  %v915 = vpop.f32.mrb[0].mxu0
  %v916 = vadd.f32 %v568, %v915
  %v917 = vpop.f32.mrb[0].mxu0
  %v918 = vpop.f32.mrb[0].mxu0
  %v919 = vadd.f32 %v571, %v918
  %v920 = vpop.f32.mrb[0].mxu0
  %921 = vmatprep.mubr.bf16.mxu0 0
  %922 = vmatmul.mubr.bf16.gmra.mrb[0].mxu0 %v346
  %v923 = vpop.f32.mrb[0].mxu0
  %v924 = vadd.f32 %v576, %v923
  %v925 = vpop.f32.mrb[0].mxu0
  %v926 = vpop.f32.mrb[0].mxu0
  %v927 = vadd.f32 %v579, %v926
  %v928 = vpop.f32.mrb[0].mxu0
  %929 = vmatprep.mubr.bf16.mxu0 0
  %930 = vmatmul.mubr.bf16.gmra.mrb[0].mxu0 %v349
  %v931 = vpop.f32.mrb[0].mxu0
  %v932 = vadd.f32 %v584, %v931
  %v933 = vpop.f32.mrb[0].mxu0
  %v934 = vpop.f32.mrb[0].mxu0
  %v935 = vadd.f32 %v587, %v934
  %v936 = vpop.f32.mrb[0].mxu0
  %937 = vmatprep.mubr.bf16.mxu0 0
  %938 = vmatmul.mubr.bf16.gmra.mrb[0].mxu0 %v352
  %v939 = vpop.f32.mrb[0].mxu0
  %v940 = vadd.f32 %v592, %v939
  %v941 = vpop.f32.mrb[0].mxu0
  %v942 = vpop.f32.mrb[0].mxu0
  %v943 = vadd.f32 %v595, %v942
  %v944 = vpop.f32.mrb[0].mxu0
  %945 = vmatprep.mubr.bf16.mxu0 0
  %946 = vmatmul.mubr.bf16.gmra.mrb[0].mxu0 %v355
  %v947 = vpop.f32.mrb[0].mxu0
  %v948 = vadd.f32 %v600, %v947
  %v949 = vpop.f32.mrb[0].mxu0
  %v950 = vpop.f32.mrb[0].mxu0
  %v951 = vadd.f32 %v603, %v950
  %v952 = vpop.f32.mrb[0].mxu0
  %953 = vmatprep.mubr.bf16.mxu0 0
  %954 = vmatmul.mubr.bf16.gmra.mrb[0].mxu0 %v358
  %v955 = vpop.f32.mrb[0].mxu0
  %v956 = vadd.f32 %v608, %v955
  %v957 = vpop.f32.mrb[0].mxu0
  %v958 = vpop.f32.mrb[0].mxu0
  %v959 = vadd.f32 %v611, %v958
  %v960 = vpop.f32.mrb[0].mxu0
  %961 = vmatprep.mubr.bf16.mxu0 0
  %962 = vmatmul.mubr.bf16.gmra.mrb[0].mxu0 %v361
  %v963 = vpop.f32.mrb[0].mxu0
  %v964 = vadd.f32 %v616, %v963
  %v965 = vpop.f32.mrb[0].mxu0
  %v966 = vpop.f32.mrb[0].mxu0
  %v967 = vadd.f32 %v619, %v966
  %v968 = vpop.f32.mrb[0].mxu0
  %969 = vmatprep.mubr.bf16.mxu0 0
  %970 = vmatmul.mubr.bf16.gmra.mrb[0].mxu0 %v364
  %v971 = vpop.f32.mrb[0].mxu0
  %v972 = vadd.f32 %v624, %v971
  %v973 = vpop.f32.mrb[0].mxu0
  %v974 = vpop.f32.mrb[0].mxu0
  %v975 = vadd.f32 %v627, %v974
  %v976 = vpop.f32.mrb[0].mxu0
  %977 = vmatprep.mubr.bf16.mxu0 0
  %978 = vmatmul.mubr.bf16.gmra.mrb[0].mxu0 %v367
  %v979 = vpop.f32.mrb[0].mxu0
  %v980 = vadd.f32 %v632, %v979
  %v981 = vpop.f32.mrb[0].mxu0
  %v982 = vpop.f32.mrb[0].mxu0
  %v983 = vadd.f32 %v635, %v982
  %v984 = vpop.f32.mrb[0].mxu0
  %985 = vmatprep.mubr.bf16.mxu0 0
  %986 = vmatmul.mubr.bf16.gmra.mrb[0].mxu0 %v370
  %v987 = vpop.f32.mrb[0].mxu0
  %v988 = vadd.f32 %v640, %v987
  %v989 = vpop.f32.mrb[0].mxu0
  %v990 = vpop.f32.mrb[0].mxu0
  %v991 = vadd.f32 %v643, %v990
  %v992 = vpop.f32.mrb[0].mxu0
  %993 = vmatprep.mubr.bf16.mxu0 0
  %994 = vmatmul.mubr.bf16.gmra.mrb[0].mxu0 %v373
  %v995 = vpop.f32.mrb[0].mxu0
  %v996 = vadd.f32 %v648, %v995
  %v997 = vpop.f32.mrb[0].mxu0
  %v998 = vpop.f32.mrb[0].mxu0
  %v999 = vadd.f32 %v651, %v998
  %v1000 = vpop.f32.mrb[0].mxu0
  %1001 = vmatprep.mubr.bf16.mxu0 0
  %1002 = vmatmul.mubr.bf16.gmra.mrb[0].mxu0 %v376
  %v1003 = vpop.f32.mrb[0].mxu0
  %v1004 = vadd.f32 %v656, %v1003
  %v1005 = vpop.f32.mrb[0].mxu0
  %v1006 = vpop.f32.mrb[0].mxu0
  %v1007 = vadd.f32 %v659, %v1006
  %v1008 = vpop.f32.mrb[0].mxu0
  %1009 = vmatprep.mubr.bf16.mxu0 0
  %1010 = vmatmul.mubr.bf16.gmra.mrb[0].mxu0 %v379
  %v1011 = vpop.f32.mrb[0].mxu0
  %v1012 = vadd.f32 %v664, %v1011
  %v1013 = vpop.f32.mrb[0].mxu0
  %v1014 = vpop.f32.mrb[0].mxu0
  %v1015 = vadd.f32 %v667, %v1014
  %v1016 = vpop.f32.mrb[0].mxu0
  %1017 = vmatprep.mubr.bf16.mxu0 0
  %1018 = vmatmul.mubr.bf16.gmra.mrb[0].mxu0 %v382
  %v1019 = vpop.f32.mrb[0].mxu0
  %v1020 = vadd.f32 %v672, %v1019
  %v1021 = vpop.f32.mrb[0].mxu0
  %v1022 = vpop.f32.mrb[0].mxu0
  %v1023 = vadd.f32 %v675, %v1022
  %v1024 = vpop.f32.mrb[0].mxu0
  %1025 = vmatprep.mubr.bf16.mxu0 0
  %1026 = vmatmul.mubr.bf16.gmra.mrb[0].mxu0 %v385
  %v1027 = vpop.f32.mrb[0].mxu0
  %v1028 = vadd.f32 %v680, %v1027
  %v1029 = vpop.f32.mrb[0].mxu0
  %v1030 = vpop.f32.mrb[0].mxu0
  %v1031 = vadd.f32 %v683, %v1030
  %v1032 = vpop.f32.mrb[0].mxu0
  %1033 = vmatprep.mubr.bf16.mxu0 0
  %1034 = vmatmul.mubr.bf16.gmra.mrb[0].mxu0 %v388
  %v1035 = vpop.f32.mrb[0].mxu0
  %v1036 = vadd.f32 %v688, %v1035
  %v1037 = vpop.f32.mrb[0].mxu0
  %v1038 = vpop.f32.mrb[0].mxu0
  %v1039 = vadd.f32 %v691, %v1038
  %v1040 = vpop.f32.mrb[0].mxu0
  %1041 = vmatprep.mubr.bf16.mxu0 0
  %1042 = vmatmul.mubr.bf16.gmra.mrb[0].mxu0 %v391
  %v1043 = vpop.f32.mrb[0].mxu0
  %v1044 = vadd.f32 %v696, %v1043
  %v1045 = vpop.f32.mrb[0].mxu0
  %v1046 = vpop.f32.mrb[0].mxu0
  %v1047 = vadd.f32 %v699, %v1046
  %v1048 = vpop.f32.mrb[0].mxu0
  %1049 = vmatprep.mubr.bf16.mxu0 0
  %1050 = vmatmul.mubr.bf16.gmra.mrb[0].mxu0 %v394
  %v1051 = vpop.f32.mrb[0].mxu0
  %v1052 = vadd.f32 %v704, %v1051
  %v1053 = vpop.f32.mrb[0].mxu0
  %v1054 = vpop.f32.mrb[0].mxu0
  %v1055 = vadd.f32 %v707, %v1054
  %v1056 = vpop.f32.mrb[0].mxu0
  %1057 = vmatprep.mubr.bf16.mxu0 0
  %1058 = vmatmul.mubr.bf16.gmra.mrb[0].mxu0 %v397
  %v1059 = vpop.f32.mrb[0].mxu0
  %v1060 = vadd.f32 %v712, %v1059
  %v1061 = vpop.f32.mrb[0].mxu0
  %v1062 = vpop.f32.mrb[0].mxu0
  %v1063 = vadd.f32 %v715, %v1062
  %v1064 = vpop.f32.mrb[0].mxu0
  %1065 = vmatprep.mubr.bf16.mxu0 0
  %1066 = vmatmul.mubr.bf16.gmra.mrb[0].mxu0 %v400
  %v1067 = vpop.f32.mrb[0].mxu0
  %v1068 = vadd.f32 %v720, %v1067
  %v1069 = vpop.f32.mrb[0].mxu0
  %v1070 = vpop.f32.mrb[0].mxu0
  %v1071 = vadd.f32 %v723, %v1070
  %v1072 = vpop.f32.mrb[0].mxu0
  %1073 = vmatprep.mubr.bf16.mxu0 0
  %1074 = vmatmul.mubr.bf16.gmra.mrb[0].mxu0 %v403
  %v1075 = vpop.f32.mrb[0].mxu0
  %v1076 = vadd.f32 %v728, %v1075
  %v1077 = vpop.f32.mrb[0].mxu0
  %v1078 = vpop.f32.mrb[0].mxu0
  %v1079 = vadd.f32 %v731, %v1078
  %v1080 = vpop.f32.mrb[0].mxu0
  %1081 = vmatprep.mubr.bf16.mxu0 0
  %1082 = vmatmul.mubr.bf16.gmra.mrb[0].mxu0 %v406
  %v1083 = vpop.f32.mrb[0].mxu0
  %v1084 = vadd.f32 %v736, %v1083
  %v1085 = vpop.f32.mrb[0].mxu0
  %v1086 = vpop.f32.mrb[0].mxu0
  %v1087 = vadd.f32 %v739, %v1086
  %v1088 = vpop.f32.mrb[0].mxu0
  %1089 = vmatprep.mubr.bf16.mxu0 0
  %1090 = vmatmul.mubr.bf16.gmra.mrb[0].mxu0 %v409
  %v1091 = vpop.f32.mrb[0].mxu0
  %v1092 = vadd.f32 %v744, %v1091
  %v1093 = vpop.f32.mrb[0].mxu0
  %v1094 = vpop.f32.mrb[0].mxu0
  %v1095 = vadd.f32 %v747, %v1094
  %v1096 = vpop.f32.mrb[0].mxu0
  %1097 = vmatprep.mubr.bf16.mxu0 0
  %1098 = vmatmul.mubr.bf16.gmra.mrb[0].mxu0 %v412
  %v1099 = vpop.f32.mrb[0].mxu0
  %v1100 = vadd.f32 %v752, %v1099
  %v1101 = vpop.f32.mrb[0].mxu0
  %v1102 = vpop.f32.mrb[0].mxu0
  %v1103 = vadd.f32 %v755, %v1102
  %v1104 = vpop.f32.mrb[0].mxu0
  %1105 = vdwg.mxu0
  %s1106 = scalar_lea.vmem %s1, 4
  %v1107 = vld [vmem:[%s1106] sm:$0x3]
  %v1110 = vunpack.c.l.b16 %v107
  %v1111 = vunpack.c.l.b16 %v108
  %v1112 = vpack.c.b16 %v1111, %v1110
  %v1114 = vsel %vm302, %v1112, 0
  %v1117 = vsel %vm417, %v1107, 0
  %1119 = vmatprep.subr.bf16.mxu0 0
  %1120 = vmatpush1.bf16.msra.mxu0 %v1117
  %1121 = vmatprep.subr.bf16.mxu0 0
  %1122 = vmatpush1.bf16.msra.mxu0 0
  %1123 = vmatprep.subr.bf16.mxu0 0
  %1124 = vmatpush1.bf16.msra.mxu0 0
  %1125 = vmatprep.subr.bf16.mxu0 0
  %1126 = vmatpush1.bf16.msra.mxu0 0
  %1127 = vmatprep.subr.bf16.mxu0 0
  %1128 = vmatpush1.bf16.msra.mxu0 0
  %1129 = vmatprep.subr.bf16.mxu0 0
  %1130 = vmatpush1.bf16.msra.mxu0 0
  %1131 = vmatprep.subr.bf16.mxu0 0
  %1132 = vmatpush1.bf16.msra.mxu0 0
  %1133 = vmatprep.subr.bf16.mxu0 0
  %1134 = vmatpush1.bf16.msra.mxu0 0
  %1135 = vmatprep.subr.bf16.mxu0 0
  %1136 = vmatpush1.bf16.msra.mxu0 0
  %1137 = vmatprep.subr.bf16.mxu0 0
  %1138 = vmatpush1.bf16.msra.mxu0 0
  %1139 = vmatprep.subr.bf16.mxu0 0
  %1140 = vmatpush1.bf16.msra.mxu0 0
  %1141 = vmatprep.subr.bf16.mxu0 0
  %1142 = vmatpush1.bf16.msra.mxu0 0
  %1143 = vmatprep.subr.bf16.mxu0 0
  %1144 = vmatpush1.bf16.msra.mxu0 0
  %1145 = vmatprep.subr.bf16.mxu0 0
  %1146 = vmatpush1.bf16.msra.mxu0 0
  %1147 = vmatprep.subr.bf16.mxu0 0
  %1148 = vmatpush1.bf16.msra.mxu0 0
  %1149 = vmatprep.subr.bf16.mxu0 0
  %1150 = vmatpush1.bf16.msra.mxu0 0
  %1151 = vmatprep.mubr.bf16.mxu0 0
  %1152 = vmatmul.mubr.bf16.gmra.mrb[0].mxu0 %v307
  %v1153 = vpop.f32.mrb[0].mxu0
  %v1154 = vadd.f32 0.0, %v1153
  %v1155 = vpop.f32.mrb[0].mxu0
  %v1156 = vpop.f32.mrb[0].mxu0
  %v1157 = vadd.f32 0.0, %v1156
  %v1158 = vpop.f32.mrb[0].mxu0
  %1159 = vmatprep.mubr.bf16.mxu0 0
  %1160 = vmatmul.mubr.bf16.gmra.mrb[0].mxu0 %v310
  %v1161 = vpop.f32.mrb[0].mxu0
  %v1162 = vadd.f32 0.0, %v1161
  %v1163 = vpop.f32.mrb[0].mxu0
  %v1164 = vpop.f32.mrb[0].mxu0
  %v1165 = vadd.f32 0.0, %v1164
  %v1166 = vpop.f32.mrb[0].mxu0
  %1167 = vmatprep.mubr.bf16.mxu0 0
  %1168 = vmatmul.mubr.bf16.gmra.mrb[0].mxu0 %v313
  %v1169 = vpop.f32.mrb[0].mxu0
  %v1170 = vadd.f32 0.0, %v1169
  %v1171 = vpop.f32.mrb[0].mxu0
  %v1172 = vpop.f32.mrb[0].mxu0
  %v1173 = vadd.f32 0.0, %v1172
  %v1174 = vpop.f32.mrb[0].mxu0
  %1175 = vmatprep.mubr.bf16.mxu0 0
  %1176 = vmatmul.mubr.bf16.gmra.mrb[0].mxu0 %v316
  %v1177 = vpop.f32.mrb[0].mxu0
  %v1178 = vadd.f32 0.0, %v1177
  %v1179 = vpop.f32.mrb[0].mxu0
  %v1180 = vpop.f32.mrb[0].mxu0
  %v1181 = vadd.f32 0.0, %v1180
  %v1182 = vpop.f32.mrb[0].mxu0
  %1183 = vmatprep.mubr.bf16.mxu0 0
  %1184 = vmatmul.mubr.bf16.gmra.mrb[0].mxu0 %v319
  %v1185 = vpop.f32.mrb[0].mxu0
  %v1186 = vadd.f32 0.0, %v1185
  %v1187 = vpop.f32.mrb[0].mxu0
  %v1188 = vpop.f32.mrb[0].mxu0
  %v1189 = vadd.f32 0.0, %v1188
  %v1190 = vpop.f32.mrb[0].mxu0
  %1191 = vmatprep.mubr.bf16.mxu0 0
  %1192 = vmatmul.mubr.bf16.gmra.mrb[0].mxu0 %v322
  %v1193 = vpop.f32.mrb[0].mxu0
  %v1194 = vadd.f32 0.0, %v1193
  %v1195 = vpop.f32.mrb[0].mxu0
  %v1196 = vpop.f32.mrb[0].mxu0
  %v1197 = vadd.f32 0.0, %v1196
  %v1198 = vpop.f32.mrb[0].mxu0
  %1199 = vmatprep.mubr.bf16.mxu0 0
  %1200 = vmatmul.mubr.bf16.gmra.mrb[0].mxu0 %v325
  %v1201 = vpop.f32.mrb[0].mxu0
  %v1202 = vadd.f32 0.0, %v1201
  %v1203 = vpop.f32.mrb[0].mxu0
  %v1204 = vpop.f32.mrb[0].mxu0
  %v1205 = vadd.f32 0.0, %v1204
  %v1206 = vpop.f32.mrb[0].mxu0
  %1207 = vmatprep.mubr.bf16.mxu0 0
  %1208 = vmatmul.mubr.bf16.gmra.mrb[0].mxu0 %v328
  %v1209 = vpop.f32.mrb[0].mxu0
  %v1210 = vadd.f32 0.0, %v1209
  %v1211 = vpop.f32.mrb[0].mxu0
  %v1212 = vpop.f32.mrb[0].mxu0
  %v1213 = vadd.f32 0.0, %v1212
  %v1214 = vpop.f32.mrb[0].mxu0
  %1215 = vmatprep.mubr.bf16.mxu0 0
  %1216 = vmatmul.mubr.bf16.gmra.mrb[0].mxu0 %v331
  %v1217 = vpop.f32.mrb[0].mxu0
  %v1218 = vadd.f32 0.0, %v1217
  %v1219 = vpop.f32.mrb[0].mxu0
  %v1220 = vpop.f32.mrb[0].mxu0
  %v1221 = vadd.f32 0.0, %v1220
  %v1222 = vpop.f32.mrb[0].mxu0
  %1223 = vmatprep.mubr.bf16.mxu0 0
  %1224 = vmatmul.mubr.bf16.gmra.mrb[0].mxu0 %v334
  %v1225 = vpop.f32.mrb[0].mxu0
  %v1226 = vadd.f32 0.0, %v1225
  %v1227 = vpop.f32.mrb[0].mxu0
  %v1228 = vpop.f32.mrb[0].mxu0
  %v1229 = vadd.f32 0.0, %v1228
  %v1230 = vpop.f32.mrb[0].mxu0
  %1231 = vmatprep.mubr.bf16.mxu0 0
  %1232 = vmatmul.mubr.bf16.gmra.mrb[0].mxu0 %v337
  %v1233 = vpop.f32.mrb[0].mxu0
  %v1234 = vadd.f32 0.0, %v1233
  %v1235 = vpop.f32.mrb[0].mxu0
  %v1236 = vpop.f32.mrb[0].mxu0
  %v1237 = vadd.f32 0.0, %v1236
  %v1238 = vpop.f32.mrb[0].mxu0
  %1239 = vmatprep.mubr.bf16.mxu0 0
  %1240 = vmatmul.mubr.bf16.gmra.mrb[0].mxu0 %v340
  %v1241 = vpop.f32.mrb[0].mxu0
  %v1242 = vadd.f32 0.0, %v1241
  %v1243 = vpop.f32.mrb[0].mxu0
  %v1244 = vpop.f32.mrb[0].mxu0
  %v1245 = vadd.f32 0.0, %v1244
  %v1246 = vpop.f32.mrb[0].mxu0
  %1247 = vmatprep.mubr.bf16.mxu0 0
  %1248 = vmatmul.mubr.bf16.gmra.mrb[0].mxu0 %v343
  %v1249 = vpop.f32.mrb[0].mxu0
  %v1250 = vadd.f32 0.0, %v1249
  %v1251 = vpop.f32.mrb[0].mxu0
  %v1252 = vpop.f32.mrb[0].mxu0
  %v1253 = vadd.f32 0.0, %v1252
  %v1254 = vpop.f32.mrb[0].mxu0
  %1255 = vmatprep.mubr.bf16.mxu0 0
  %1256 = vmatmul.mubr.bf16.gmra.mrb[0].mxu0 %v346
  %v1257 = vpop.f32.mrb[0].mxu0
  %v1258 = vadd.f32 0.0, %v1257
  %v1259 = vpop.f32.mrb[0].mxu0
  %v1260 = vpop.f32.mrb[0].mxu0
  %v1261 = vadd.f32 0.0, %v1260
  %v1262 = vpop.f32.mrb[0].mxu0
  %1263 = vmatprep.mubr.bf16.mxu0 0
  %1264 = vmatmul.mubr.bf16.gmra.mrb[0].mxu0 %v349
  %v1265 = vpop.f32.mrb[0].mxu0
  %v1266 = vadd.f32 0.0, %v1265
  %v1267 = vpop.f32.mrb[0].mxu0
  %v1268 = vpop.f32.mrb[0].mxu0
  %v1269 = vadd.f32 0.0, %v1268
  %v1270 = vpop.f32.mrb[0].mxu0
  %1271 = vmatprep.mubr.bf16.mxu0 0
  %1272 = vmatmul.mubr.bf16.gmra.mrb[0].mxu0 %v352
  %v1273 = vpop.f32.mrb[0].mxu0
  %v1274 = vadd.f32 0.0, %v1273
  %v1275 = vpop.f32.mrb[0].mxu0
  %v1276 = vpop.f32.mrb[0].mxu0
  %v1277 = vadd.f32 0.0, %v1276
  %v1278 = vpop.f32.mrb[0].mxu0
  %1279 = vmatprep.mubr.bf16.mxu0 0
  %1280 = vmatmul.mubr.bf16.gmra.mrb[0].mxu0 %v355
  %v1281 = vpop.f32.mrb[0].mxu0
  %v1282 = vadd.f32 0.0, %v1281
  %v1283 = vpop.f32.mrb[0].mxu0
  %v1284 = vpop.f32.mrb[0].mxu0
  %v1285 = vadd.f32 0.0, %v1284
  %v1286 = vpop.f32.mrb[0].mxu0
  %1287 = vmatprep.mubr.bf16.mxu0 0
  %1288 = vmatmul.mubr.bf16.gmra.mrb[0].mxu0 %v358
  %v1289 = vpop.f32.mrb[0].mxu0
  %v1290 = vadd.f32 0.0, %v1289
  %v1291 = vpop.f32.mrb[0].mxu0
  %v1292 = vpop.f32.mrb[0].mxu0
  %v1293 = vadd.f32 0.0, %v1292
  %v1294 = vpop.f32.mrb[0].mxu0
  %1295 = vmatprep.mubr.bf16.mxu0 0
  %1296 = vmatmul.mubr.bf16.gmra.mrb[0].mxu0 %v361
  %v1297 = vpop.f32.mrb[0].mxu0
  %v1298 = vadd.f32 0.0, %v1297
  %v1299 = vpop.f32.mrb[0].mxu0
  %v1300 = vpop.f32.mrb[0].mxu0
  %v1301 = vadd.f32 0.0, %v1300
  %v1302 = vpop.f32.mrb[0].mxu0
  %1303 = vmatprep.mubr.bf16.mxu0 0
  %1304 = vmatmul.mubr.bf16.gmra.mrb[0].mxu0 %v364
  %v1305 = vpop.f32.mrb[0].mxu0
  %v1306 = vadd.f32 0.0, %v1305
  %v1307 = vpop.f32.mrb[0].mxu0
  %v1308 = vpop.f32.mrb[0].mxu0
  %v1309 = vadd.f32 0.0, %v1308
  %v1310 = vpop.f32.mrb[0].mxu0
  %1311 = vmatprep.mubr.bf16.mxu0 0
  %1312 = vmatmul.mubr.bf16.gmra.mrb[0].mxu0 %v367
  %v1313 = vpop.f32.mrb[0].mxu0
  %v1314 = vadd.f32 0.0, %v1313
  %v1315 = vpop.f32.mrb[0].mxu0
  %v1316 = vpop.f32.mrb[0].mxu0
  %v1317 = vadd.f32 0.0, %v1316
  %v1318 = vpop.f32.mrb[0].mxu0
  %1319 = vmatprep.mubr.bf16.mxu0 0
  %1320 = vmatmul.mubr.bf16.gmra.mrb[0].mxu0 %v370
  %v1321 = vpop.f32.mrb[0].mxu0
  %v1322 = vadd.f32 0.0, %v1321
  %v1323 = vpop.f32.mrb[0].mxu0
  %v1324 = vpop.f32.mrb[0].mxu0
  %v1325 = vadd.f32 0.0, %v1324
  %v1326 = vpop.f32.mrb[0].mxu0
  %1327 = vmatprep.mubr.bf16.mxu0 0
  %1328 = vmatmul.mubr.bf16.gmra.mrb[0].mxu0 %v373
  %v1329 = vpop.f32.mrb[0].mxu0
  %v1330 = vadd.f32 0.0, %v1329
  %v1331 = vpop.f32.mrb[0].mxu0
  %v1332 = vpop.f32.mrb[0].mxu0
  %v1333 = vadd.f32 0.0, %v1332
  %v1334 = vpop.f32.mrb[0].mxu0
  %1335 = vmatprep.mubr.bf16.mxu0 0
  %1336 = vmatmul.mubr.bf16.gmra.mrb[0].mxu0 %v376
  %v1337 = vpop.f32.mrb[0].mxu0
  %v1338 = vadd.f32 0.0, %v1337
  %v1339 = vpop.f32.mrb[0].mxu0
  %v1340 = vpop.f32.mrb[0].mxu0
  %v1341 = vadd.f32 0.0, %v1340
  %v1342 = vpop.f32.mrb[0].mxu0
  %1343 = vmatprep.mubr.bf16.mxu0 0
  %1344 = vmatmul.mubr.bf16.gmra.mrb[0].mxu0 %v379
  %v1345 = vpop.f32.mrb[0].mxu0
  %v1346 = vadd.f32 0.0, %v1345
  %v1347 = vpop.f32.mrb[0].mxu0
  %v1348 = vpop.f32.mrb[0].mxu0
  %v1349 = vadd.f32 0.0, %v1348
  %v1350 = vpop.f32.mrb[0].mxu0
  %1351 = vmatprep.mubr.bf16.mxu0 0
  %1352 = vmatmul.mubr.bf16.gmra.mrb[0].mxu0 %v382
  %v1353 = vpop.f32.mrb[0].mxu0
  %v1354 = vadd.f32 0.0, %v1353
  %v1355 = vpop.f32.mrb[0].mxu0
  %v1356 = vpop.f32.mrb[0].mxu0
  %v1357 = vadd.f32 0.0, %v1356
  %v1358 = vpop.f32.mrb[0].mxu0
  %1359 = vmatprep.mubr.bf16.mxu0 0
  %1360 = vmatmul.mubr.bf16.gmra.mrb[0].mxu0 %v385
  %v1361 = vpop.f32.mrb[0].mxu0
  %v1362 = vadd.f32 0.0, %v1361
  %v1363 = vpop.f32.mrb[0].mxu0
  %v1364 = vpop.f32.mrb[0].mxu0
  %v1365 = vadd.f32 0.0, %v1364
  %v1366 = vpop.f32.mrb[0].mxu0
  %1367 = vmatprep.mubr.bf16.mxu0 0
  %1368 = vmatmul.mubr.bf16.gmra.mrb[0].mxu0 %v388
  %v1369 = vpop.f32.mrb[0].mxu0
  %v1370 = vadd.f32 0.0, %v1369
  %v1371 = vpop.f32.mrb[0].mxu0
  %v1372 = vpop.f32.mrb[0].mxu0
  %v1373 = vadd.f32 0.0, %v1372
  %v1374 = vpop.f32.mrb[0].mxu0
  %1375 = vmatprep.mubr.bf16.mxu0 0
  %1376 = vmatmul.mubr.bf16.gmra.mrb[0].mxu0 %v391
  %v1377 = vpop.f32.mrb[0].mxu0
  %v1378 = vadd.f32 0.0, %v1377
  %v1379 = vpop.f32.mrb[0].mxu0
  %v1380 = vpop.f32.mrb[0].mxu0
  %v1381 = vadd.f32 0.0, %v1380
  %v1382 = vpop.f32.mrb[0].mxu0
  %1383 = vmatprep.mubr.bf16.mxu0 0
  %1384 = vmatmul.mubr.bf16.gmra.mrb[0].mxu0 %v394
  %v1385 = vpop.f32.mrb[0].mxu0
  %v1386 = vadd.f32 0.0, %v1385
  %v1387 = vpop.f32.mrb[0].mxu0
  %v1388 = vpop.f32.mrb[0].mxu0
  %v1389 = vadd.f32 0.0, %v1388
  %v1390 = vpop.f32.mrb[0].mxu0
  %1391 = vmatprep.mubr.bf16.mxu0 0
  %1392 = vmatmul.mubr.bf16.gmra.mrb[0].mxu0 %v397
  %v1393 = vpop.f32.mrb[0].mxu0
  %v1394 = vadd.f32 0.0, %v1393
  %v1395 = vpop.f32.mrb[0].mxu0
  %v1396 = vpop.f32.mrb[0].mxu0
  %v1397 = vadd.f32 0.0, %v1396
  %v1398 = vpop.f32.mrb[0].mxu0
  %1399 = vmatprep.mubr.bf16.mxu0 0
  %1400 = vmatmul.mubr.bf16.gmra.mrb[0].mxu0 %v400
  %v1401 = vpop.f32.mrb[0].mxu0
  %v1402 = vadd.f32 0.0, %v1401
  %v1403 = vpop.f32.mrb[0].mxu0
  %v1404 = vpop.f32.mrb[0].mxu0
  %v1405 = vadd.f32 0.0, %v1404
  %v1406 = vpop.f32.mrb[0].mxu0
  %1407 = vmatprep.mubr.bf16.mxu0 0
  %1408 = vmatmul.mubr.bf16.gmra.mrb[0].mxu0 %v403
  %v1409 = vpop.f32.mrb[0].mxu0
  %v1410 = vadd.f32 0.0, %v1409
  %v1411 = vpop.f32.mrb[0].mxu0
  %v1412 = vpop.f32.mrb[0].mxu0
  %v1413 = vadd.f32 0.0, %v1412
  %v1414 = vpop.f32.mrb[0].mxu0
  %1415 = vmatprep.mubr.bf16.mxu0 0
  %1416 = vmatmul.mubr.bf16.gmra.mrb[0].mxu0 %v406
  %v1417 = vpop.f32.mrb[0].mxu0
  %v1418 = vadd.f32 0.0, %v1417
  %v1419 = vpop.f32.mrb[0].mxu0
  %v1420 = vpop.f32.mrb[0].mxu0
  %v1421 = vadd.f32 0.0, %v1420
  %v1422 = vpop.f32.mrb[0].mxu0
  %1423 = vmatprep.mubr.bf16.mxu0 0
  %1424 = vmatmul.mubr.bf16.gmra.mrb[0].mxu0 %v409
  %v1425 = vpop.f32.mrb[0].mxu0
  %v1426 = vadd.f32 0.0, %v1425
  %v1427 = vpop.f32.mrb[0].mxu0
  %v1428 = vpop.f32.mrb[0].mxu0
  %v1429 = vadd.f32 0.0, %v1428
  %v1430 = vpop.f32.mrb[0].mxu0
  %1431 = vmatprep.mubr.bf16.mxu0 0
  %1432 = vmatmul.mubr.bf16.gmra.mrb[0].mxu0 %v412
  %v1433 = vpop.f32.mrb[0].mxu0
  %v1434 = vadd.f32 0.0, %v1433
  %v1435 = vpop.f32.mrb[0].mxu0
  %v1436 = vpop.f32.mrb[0].mxu0
  %v1437 = vadd.f32 0.0, %v1436
  %v1438 = vpop.f32.mrb[0].mxu0
  %1439 = vmatprep.mubr.bf16.mxu0 0
  %1440 = vmatmul.mubr.bf16.gmra.mrb[0].mxu0 %v415
  %v1441 = vpop.f32.mrb[0].mxu0
  %v1442 = vadd.f32 0.0, %v1441
  %v1443 = vpop.f32.mrb[0].mxu0
  %v1444 = vpop.f32.mrb[0].mxu0
  %v1445 = vadd.f32 0.0, %v1444
  %v1446 = vpop.f32.mrb[0].mxu0
  %1447 = vmatprep.mubr.bf16.mxu0 0
  %1448 = vmatmul.mubr.bf16.gmra.mrb[0].mxu0 %v1114
  %v1449 = vpop.f32.mrb[0].mxu0
  %v1450 = vadd.f32 0.0, %v1449
  %v1451 = vpop.f32.mrb[0].mxu0
  %v1452 = vpop.f32.mrb[0].mxu0
  %v1453 = vadd.f32 0.0, %v1452
  %v1454 = vpop.f32.mrb[0].mxu0
  %1455 = vdwg.mxu0
  %v1456 = vadd.f32 %v804, %v1154
  %v1457 = vadd.f32 %v807, %v1157
  %v1458 = vadd.f32 %v812, %v1162
  %v1459 = vadd.f32 %v815, %v1165
  %v1460 = vadd.f32 %v820, %v1170
  %v1461 = vadd.f32 %v823, %v1173
  %v1462 = vadd.f32 %v828, %v1178
  %v1463 = vadd.f32 %v831, %v1181
  %v1464 = vadd.f32 %v836, %v1186
  %v1465 = vadd.f32 %v839, %v1189
  %v1466 = vadd.f32 %v844, %v1194
  %v1467 = vadd.f32 %v847, %v1197
  %v1468 = vadd.f32 %v852, %v1202
  %v1469 = vadd.f32 %v855, %v1205
  %v1470 = vadd.f32 %v860, %v1210
  %v1471 = vadd.f32 %v863, %v1213
  %v1472 = vadd.f32 %v868, %v1218
  %v1473 = vadd.f32 %v871, %v1221
  %v1474 = vadd.f32 %v876, %v1226
  %v1475 = vadd.f32 %v879, %v1229
  %v1476 = vadd.f32 %v884, %v1234
  %v1477 = vadd.f32 %v887, %v1237
  %v1478 = vadd.f32 %v892, %v1242
  %v1479 = vadd.f32 %v895, %v1245
  %v1480 = vadd.f32 %v900, %v1250
  %v1481 = vadd.f32 %v903, %v1253
  %v1482 = vadd.f32 %v908, %v1258
  %v1483 = vadd.f32 %v911, %v1261
  %v1484 = vadd.f32 %v916, %v1266
  %v1485 = vadd.f32 %v919, %v1269
  %v1486 = vadd.f32 %v924, %v1274
  %v1487 = vadd.f32 %v927, %v1277
  %v1488 = vadd.f32 %v932, %v1282
  %v1489 = vadd.f32 %v935, %v1285
  %v1490 = vadd.f32 %v940, %v1290
  %v1491 = vadd.f32 %v943, %v1293
  %v1492 = vadd.f32 %v948, %v1298
  %v1493 = vadd.f32 %v951, %v1301
  %v1494 = vadd.f32 %v956, %v1306
  %v1495 = vadd.f32 %v959, %v1309
  %v1496 = vadd.f32 %v964, %v1314
  %v1497 = vadd.f32 %v967, %v1317
  %v1498 = vadd.f32 %v972, %v1322
  %v1499 = vadd.f32 %v975, %v1325
  %v1500 = vadd.f32 %v980, %v1330
  %v1501 = vadd.f32 %v983, %v1333
  %v1502 = vadd.f32 %v988, %v1338
  %v1503 = vadd.f32 %v991, %v1341
  %v1504 = vadd.f32 %v996, %v1346
  %v1505 = vadd.f32 %v999, %v1349
  %v1506 = vadd.f32 %v1004, %v1354
  %v1507 = vadd.f32 %v1007, %v1357
  %v1508 = vadd.f32 %v1012, %v1362
  %v1509 = vadd.f32 %v1015, %v1365
  %v1510 = vadd.f32 %v1020, %v1370
  %v1511 = vadd.f32 %v1023, %v1373
  %v1512 = vadd.f32 %v1028, %v1378
  %v1513 = vadd.f32 %v1031, %v1381
  %v1514 = vadd.f32 %v1036, %v1386
  %v1515 = vadd.f32 %v1039, %v1389
  %v1516 = vadd.f32 %v1044, %v1394
  %v1517 = vadd.f32 %v1047, %v1397
  %v1518 = vadd.f32 %v1052, %v1402
  %v1519 = vadd.f32 %v1055, %v1405
  %v1520 = vadd.f32 %v1060, %v1410
  %v1521 = vadd.f32 %v1063, %v1413
  %v1522 = vadd.f32 %v1068, %v1418
  %v1523 = vadd.f32 %v1071, %v1421
  %v1524 = vadd.f32 %v1076, %v1426
  %v1525 = vadd.f32 %v1079, %v1429
  %v1526 = vadd.f32 %v1084, %v1434
  %v1527 = vadd.f32 %v1087, %v1437
  %v1528 = vadd.f32 %v1092, %v1442
  %v1529 = vadd.f32 %v1095, %v1445
  %v1530 = vadd.f32 %v1100, %v1450
  %v1531 = vadd.f32 %v1103, %v1453
  %v1532 = vld [vmem:[%s2] sm:$0x1]
  %v1534 = vlaneseq
  %v1535 = vshrl.u32 %v1534, 7
  %v1536 = vsub.s32 0, %v1535
  %v1537 = vrot.slane %v1532, %v1536
  %v1539 = vadd.f32 %v1456, %v1537
  %v1540 = vadd.f32 %v1457, %v1537
  %v1541 = vadd.f32 %v1458, %v1537
  %v1542 = vadd.f32 %v1459, %v1537
  %v1543 = vadd.f32 %v1460, %v1537
  %v1544 = vadd.f32 %v1461, %v1537
  %v1545 = vadd.f32 %v1462, %v1537
  %v1546 = vadd.f32 %v1463, %v1537
  %v1547 = vadd.f32 %v1464, %v1537
  %v1548 = vadd.f32 %v1465, %v1537
  %v1549 = vadd.f32 %v1466, %v1537
  %v1550 = vadd.f32 %v1467, %v1537
  %v1551 = vadd.f32 %v1468, %v1537
  %v1552 = vadd.f32 %v1469, %v1537
  %v1553 = vadd.f32 %v1470, %v1537
  %v1554 = vadd.f32 %v1471, %v1537
  %v1555 = vadd.f32 %v1472, %v1537
  %v1556 = vadd.f32 %v1473, %v1537
  %v1557 = vadd.f32 %v1474, %v1537
  %v1558 = vadd.f32 %v1475, %v1537
  %v1559 = vadd.f32 %v1476, %v1537
  %v1560 = vadd.f32 %v1477, %v1537
  %v1561 = vadd.f32 %v1478, %v1537
  %v1562 = vadd.f32 %v1479, %v1537
  %v1563 = vadd.f32 %v1480, %v1537
  %v1564 = vadd.f32 %v1481, %v1537
  %v1565 = vadd.f32 %v1482, %v1537
  %v1566 = vadd.f32 %v1483, %v1537
  %v1567 = vadd.f32 %v1484, %v1537
  %v1568 = vadd.f32 %v1485, %v1537
  %v1569 = vadd.f32 %v1486, %v1537
  %v1570 = vadd.f32 %v1487, %v1537
  %v1571 = vadd.f32 %v1488, %v1537
  %v1572 = vadd.f32 %v1489, %v1537
  %v1573 = vadd.f32 %v1490, %v1537
  %v1574 = vadd.f32 %v1491, %v1537
  %v1575 = vadd.f32 %v1492, %v1537
  %v1576 = vadd.f32 %v1493, %v1537
  %v1577 = vadd.f32 %v1494, %v1537
  %v1578 = vadd.f32 %v1495, %v1537
  %v1579 = vadd.f32 %v1496, %v1537
  %v1580 = vadd.f32 %v1497, %v1537
  %v1581 = vadd.f32 %v1498, %v1537
  %v1582 = vadd.f32 %v1499, %v1537
  %v1583 = vadd.f32 %v1500, %v1537
  %v1584 = vadd.f32 %v1501, %v1537
  %v1585 = vadd.f32 %v1502, %v1537
  %v1586 = vadd.f32 %v1503, %v1537
  %v1587 = vadd.f32 %v1504, %v1537
  %v1588 = vadd.f32 %v1505, %v1537
  %v1589 = vadd.f32 %v1506, %v1537
  %v1590 = vadd.f32 %v1507, %v1537
  %v1591 = vadd.f32 %v1508, %v1537
  %v1592 = vadd.f32 %v1509, %v1537
  %v1593 = vadd.f32 %v1510, %v1537
  %v1594 = vadd.f32 %v1511, %v1537
  %v1595 = vadd.f32 %v1512, %v1537
  %v1596 = vadd.f32 %v1513, %v1537
  %v1597 = vadd.f32 %v1514, %v1537
  %v1598 = vadd.f32 %v1515, %v1537
  %v1599 = vadd.f32 %v1516, %v1537
  %v1600 = vadd.f32 %v1517, %v1537
  %v1601 = vadd.f32 %v1518, %v1537
  %v1602 = vadd.f32 %v1519, %v1537
  %v1603 = vadd.f32 %v1520, %v1537
  %v1604 = vadd.f32 %v1521, %v1537
  %v1605 = vadd.f32 %v1522, %v1537
  %v1606 = vadd.f32 %v1523, %v1537
  %v1607 = vadd.f32 %v1524, %v1537
  %v1608 = vadd.f32 %v1525, %v1537
  %v1609 = vadd.f32 %v1526, %v1537
  %v1610 = vadd.f32 %v1527, %v1537
  %v1611 = vadd.f32 %v1528, %v1537
  %v1612 = vadd.f32 %v1529, %v1537
  %v1613 = vadd.f32 %v1530, %v1537
  %v1614 = vadd.f32 %v1531, %v1537
  %v1615 = vmax.f32 %v1539, 0.0
  %v1616 = vmax.f32 %v1540, 0.0
  %v1617 = vmax.f32 %v1541, 0.0
  %v1618 = vmax.f32 %v1542, 0.0
  %v1619 = vmax.f32 %v1543, 0.0
  %v1620 = vmax.f32 %v1544, 0.0
  %v1621 = vmax.f32 %v1545, 0.0
  %v1622 = vmax.f32 %v1546, 0.0
  %v1623 = vmax.f32 %v1547, 0.0
  %v1624 = vmax.f32 %v1548, 0.0
  %v1625 = vmax.f32 %v1549, 0.0
  %v1626 = vmax.f32 %v1550, 0.0
  %v1627 = vmax.f32 %v1551, 0.0
  %v1628 = vmax.f32 %v1552, 0.0
  %v1629 = vmax.f32 %v1553, 0.0
  %v1630 = vmax.f32 %v1554, 0.0
  %v1631 = vmax.f32 %v1555, 0.0
  %v1632 = vmax.f32 %v1556, 0.0
  %v1633 = vmax.f32 %v1557, 0.0
  %v1634 = vmax.f32 %v1558, 0.0
  %v1635 = vmax.f32 %v1559, 0.0
  %v1636 = vmax.f32 %v1560, 0.0
  %v1637 = vmax.f32 %v1561, 0.0
  %v1638 = vmax.f32 %v1562, 0.0
  %v1639 = vmax.f32 %v1563, 0.0
  %v1640 = vmax.f32 %v1564, 0.0
  %v1641 = vmax.f32 %v1565, 0.0
  %v1642 = vmax.f32 %v1566, 0.0
  %v1643 = vmax.f32 %v1567, 0.0
  %v1644 = vmax.f32 %v1568, 0.0
  %v1645 = vmax.f32 %v1569, 0.0
  %v1646 = vmax.f32 %v1570, 0.0
  %v1647 = vmax.f32 %v1571, 0.0
  %v1648 = vmax.f32 %v1572, 0.0
  %v1649 = vmax.f32 %v1573, 0.0
  %v1650 = vmax.f32 %v1574, 0.0
  %v1651 = vmax.f32 %v1575, 0.0
  %v1652 = vmax.f32 %v1576, 0.0
  %v1653 = vmax.f32 %v1577, 0.0
  %v1654 = vmax.f32 %v1578, 0.0
  %v1655 = vmax.f32 %v1579, 0.0
  %v1656 = vmax.f32 %v1580, 0.0
  %v1657 = vmax.f32 %v1581, 0.0
  %v1658 = vmax.f32 %v1582, 0.0
  %v1659 = vmax.f32 %v1583, 0.0
  %v1660 = vmax.f32 %v1584, 0.0
  %v1661 = vmax.f32 %v1585, 0.0
  %v1662 = vmax.f32 %v1586, 0.0
  %v1663 = vmax.f32 %v1587, 0.0
  %v1664 = vmax.f32 %v1588, 0.0
  %v1665 = vmax.f32 %v1589, 0.0
  %v1666 = vmax.f32 %v1590, 0.0
  %v1667 = vmax.f32 %v1591, 0.0
  %v1668 = vmax.f32 %v1592, 0.0
  %v1669 = vmax.f32 %v1593, 0.0
  %v1670 = vmax.f32 %v1594, 0.0
  %v1671 = vmax.f32 %v1595, 0.0
  %v1672 = vmax.f32 %v1596, 0.0
  %v1673 = vmax.f32 %v1597, 0.0
  %v1674 = vmax.f32 %v1598, 0.0
  %v1675 = vmax.f32 %v1599, 0.0
  %v1676 = vmax.f32 %v1600, 0.0
  %v1677 = vmax.f32 %v1601, 0.0
  %v1678 = vmax.f32 %v1602, 0.0
  %v1679 = vmax.f32 %v1603, 0.0
  %v1680 = vmax.f32 %v1604, 0.0
  %v1681 = vmax.f32 %v1605, 0.0
  %v1682 = vmax.f32 %v1606, 0.0
  %v1683 = vmax.f32 %v1607, 0.0
  %v1684 = vmax.f32 %v1608, 0.0
  %v1685 = vmax.f32 %v1609, 0.0
  %v1686 = vmax.f32 %v1610, 0.0
  %v1687 = vmax.f32 %v1611, 0.0
  %v1688 = vmax.f32 %v1612, 0.0
  %v1689 = vmax.f32 %v1613, 0.0
  %v1690 = vmax.f32 %v1614, 0.0
  %v1691 = vpack.c.bf16 %v1616, %v1615
  %v1692 = vpack.c.bf16 %v1618, %v1617
  %v1693 = vpack.c.bf16 %v1620, %v1619
  %v1694 = vpack.c.bf16 %v1622, %v1621
  %v1695 = vpack.c.bf16 %v1624, %v1623
  %v1696 = vpack.c.bf16 %v1626, %v1625
  %v1697 = vpack.c.bf16 %v1628, %v1627
  %v1698 = vpack.c.bf16 %v1630, %v1629
  %v1699 = vpack.c.bf16 %v1632, %v1631
  %v1700 = vpack.c.bf16 %v1634, %v1633
  %v1701 = vpack.c.bf16 %v1636, %v1635
  %v1702 = vpack.c.bf16 %v1638, %v1637
  %v1703 = vpack.c.bf16 %v1640, %v1639
  %v1704 = vpack.c.bf16 %v1642, %v1641
  %v1705 = vpack.c.bf16 %v1644, %v1643
  %v1706 = vpack.c.bf16 %v1646, %v1645
  %v1707 = vpack.c.bf16 %v1648, %v1647
  %v1708 = vpack.c.bf16 %v1650, %v1649
  %v1709 = vpack.c.bf16 %v1652, %v1651
  %v1710 = vpack.c.bf16 %v1654, %v1653
  %v1711 = vpack.c.bf16 %v1656, %v1655
  %v1712 = vpack.c.bf16 %v1658, %v1657
  %v1713 = vpack.c.bf16 %v1660, %v1659
  %v1714 = vpack.c.bf16 %v1662, %v1661
  %v1715 = vpack.c.bf16 %v1664, %v1663
  %v1716 = vpack.c.bf16 %v1666, %v1665
  %v1717 = vpack.c.bf16 %v1668, %v1667
  %v1718 = vpack.c.bf16 %v1670, %v1669
  %v1719 = vpack.c.bf16 %v1672, %v1671
  %v1720 = vpack.c.bf16 %v1674, %v1673
  %v1721 = vpack.c.bf16 %v1676, %v1675
  %v1722 = vpack.c.bf16 %v1678, %v1677
  %v1723 = vpack.c.bf16 %v1680, %v1679
  %v1724 = vpack.c.bf16 %v1682, %v1681
  %v1725 = vpack.c.bf16 %v1684, %v1683
  %v1726 = vpack.c.bf16 %v1686, %v1685
  %v1727 = vpack.c.bf16 %v1688, %v1687
  %v1728 = vpack.c.bf16 %v1690, %v1689
  %v1729 = vld [vmem:[%s3] sm:$0xf]
  %v1730 = vld [vmem:[%s3 + $0x4] sm:$0xf]
  %v1731 = vld [vmem:[%s3 + $0x8] sm:$0xf]
  %v1732 = vld [vmem:[%s3 + $0xc] sm:$0xf]
  %s1733 = scalar_lea.vmem %s3, 16
  %v1734 = vld [vmem:[%s1733] sm:$0xf]
  %v1735 = vld [vmem:[%s1733 + $0x4] sm:$0xf]
  %v1736 = vld [vmem:[%s1733 + $0x8] sm:$0xf]
  %v1737 = vld [vmem:[%s1733 + $0xc] sm:$0xf]
  %v1742 = vunpack.c.l.b16 %v1734
  %v1743 = vunpack.c.l.b16 %v1735
  %v1744 = vunpack.c.l.b16 %v1736
  %v1745 = vunpack.c.l.b16 %v1737
  %v1746 = vpack.c.b16 %v1743, %v1742
  %v1747 = vpack.c.b16 %v1745, %v1744
  %vm1750 = vcmask 261120
  %v1752 = vsel %vm1750, %v1692, 0
  %v1755 = vsel %vm1750, %v1693, 0
  %v1758 = vsel %vm1750, %v1694, 0
  %v1761 = vsel %vm1750, %v1695, 0
  %v1764 = vsel %vm1750, %v1696, 0
  %v1767 = vsel %vm1750, %v1697, 0
  %v1770 = vsel %vm1750, %v1698, 0
  %v1773 = vsel %vm1750, %v1699, 0
  %v1776 = vsel %vm1750, %v1700, 0
  %v1779 = vsel %vm1750, %v1701, 0
  %v1782 = vsel %vm1750, %v1702, 0
  %v1785 = vsel %vm1750, %v1703, 0
  %v1788 = vsel %vm1750, %v1704, 0
  %v1791 = vsel %vm1750, %v1705, 0
  %v1794 = vsel %vm1750, %v1706, 0
  %v1797 = vsel %vm1750, %v1707, 0
  %v1800 = vsel %vm1750, %v1708, 0
  %v1803 = vsel %vm1750, %v1709, 0
  %v1806 = vsel %vm1750, %v1710, 0
  %v1809 = vsel %vm1750, %v1711, 0
  %v1812 = vsel %vm1750, %v1712, 0
  %v1815 = vsel %vm1750, %v1713, 0
  %v1818 = vsel %vm1750, %v1714, 0
  %v1821 = vsel %vm1750, %v1715, 0
  %v1824 = vsel %vm1750, %v1716, 0
  %v1827 = vsel %vm1750, %v1717, 0
  %v1830 = vsel %vm1750, %v1718, 0
  %v1833 = vsel %vm1750, %v1719, 0
  %v1836 = vsel %vm1750, %v1720, 0
  %v1839 = vsel %vm1750, %v1721, 0
  %v1842 = vsel %vm1750, %v1722, 0
  %v1845 = vsel %vm1750, %v1723, 0
  %v1848 = vsel %vm1750, %v1724, 0
  %v1851 = vsel %vm1750, %v1725, 0
  %v1854 = vsel %vm1750, %v1726, 0
  %v1857 = vsel %vm1750, %v1727, 0
  %1859 = vmatprep.subr.bf16.mxu0 0
  %1860 = vmatpush1.bf16.msra.mxu0 %v1746
  %1861 = vmatprep.subr.bf16.mxu0 0
  %1862 = vmatpush1.bf16.msra.mxu0 %v1747
  %1863 = vmatprep.subr.bf16.mxu0 0
  %1864 = vmatpush1.bf16.msra.mxu0 0
  %1865 = vmatprep.subr.bf16.mxu0 0
  %1866 = vmatpush1.bf16.msra.mxu0 0
  %1867 = vmatprep.subr.bf16.mxu0 0
  %1868 = vmatpush1.bf16.msra.mxu0 0
  %1869 = vmatprep.subr.bf16.mxu0 0
  %1870 = vmatpush1.bf16.msra.mxu0 0
  %1871 = vmatprep.subr.bf16.mxu0 0
  %1872 = vmatpush1.bf16.msra.mxu0 0
  %1873 = vmatprep.subr.bf16.mxu0 0
  %1874 = vmatpush1.bf16.msra.mxu0 0
  %1875 = vmatprep.subr.bf16.mxu0 0
  %1876 = vmatpush1.bf16.msra.mxu0 0
  %1877 = vmatprep.subr.bf16.mxu0 0
  %1878 = vmatpush1.bf16.msra.mxu0 0
  %1879 = vmatprep.subr.bf16.mxu0 0
  %1880 = vmatpush1.bf16.msra.mxu0 0
  %1881 = vmatprep.subr.bf16.mxu0 0
  %1882 = vmatpush1.bf16.msra.mxu0 0
  %1883 = vmatprep.subr.bf16.mxu0 0
  %1884 = vmatpush1.bf16.msra.mxu0 0
  %1885 = vmatprep.subr.bf16.mxu0 0
  %1886 = vmatpush1.bf16.msra.mxu0 0
  %1887 = vmatprep.subr.bf16.mxu0 0
  %1888 = vmatpush1.bf16.msra.mxu0 0
  %1889 = vmatprep.subr.bf16.mxu0 0
  %1890 = vmatpush1.bf16.msra.mxu0 0
  %1891 = vmatprep.mubr.bf16.mxu0 0
  %1892 = vmatmul.mubr.bf16.gmra.mrb[0].mxu0 %v1752
  %v1893 = vpop.f32.mrb[0].mxu0
  %v1894 = vadd.f32 0.0, %v1893
  %v1895 = vpop.f32.mrb[0].mxu0
  %v1896 = vpop.f32.mrb[0].mxu0
  %v1897 = vadd.f32 0.0, %v1896
  %v1898 = vpop.f32.mrb[0].mxu0
  %1899 = vmatprep.mubr.bf16.mxu0 0
  %1900 = vmatmul.mubr.bf16.gmra.mrb[0].mxu0 %v1755
  %v1901 = vpop.f32.mrb[0].mxu0
  %v1902 = vadd.f32 0.0, %v1901
  %v1903 = vpop.f32.mrb[0].mxu0
  %v1904 = vpop.f32.mrb[0].mxu0
  %v1905 = vadd.f32 0.0, %v1904
  %v1906 = vpop.f32.mrb[0].mxu0
  %1907 = vmatprep.mubr.bf16.mxu0 0
  %1908 = vmatmul.mubr.bf16.gmra.mrb[0].mxu0 %v1758
  %v1909 = vpop.f32.mrb[0].mxu0
  %v1910 = vadd.f32 0.0, %v1909
  %v1911 = vpop.f32.mrb[0].mxu0
  %v1912 = vpop.f32.mrb[0].mxu0
  %v1913 = vadd.f32 0.0, %v1912
  %v1914 = vpop.f32.mrb[0].mxu0
  %1915 = vmatprep.mubr.bf16.mxu0 0
  %1916 = vmatmul.mubr.bf16.gmra.mrb[0].mxu0 %v1761
  %v1917 = vpop.f32.mrb[0].mxu0
  %v1918 = vadd.f32 0.0, %v1917
  %v1919 = vpop.f32.mrb[0].mxu0
  %v1920 = vpop.f32.mrb[0].mxu0
  %v1921 = vadd.f32 0.0, %v1920
  %v1922 = vpop.f32.mrb[0].mxu0
  %1923 = vmatprep.mubr.bf16.mxu0 0
  %1924 = vmatmul.mubr.bf16.gmra.mrb[0].mxu0 %v1764
  %v1925 = vpop.f32.mrb[0].mxu0
  %v1926 = vadd.f32 0.0, %v1925
  %v1927 = vpop.f32.mrb[0].mxu0
  %v1928 = vpop.f32.mrb[0].mxu0
  %v1929 = vadd.f32 0.0, %v1928
  %v1930 = vpop.f32.mrb[0].mxu0
  %1931 = vmatprep.mubr.bf16.mxu0 0
  %1932 = vmatmul.mubr.bf16.gmra.mrb[0].mxu0 %v1767
  %v1933 = vpop.f32.mrb[0].mxu0
  %v1934 = vadd.f32 0.0, %v1933
  %v1935 = vpop.f32.mrb[0].mxu0
  %v1936 = vpop.f32.mrb[0].mxu0
  %v1937 = vadd.f32 0.0, %v1936
  %v1938 = vpop.f32.mrb[0].mxu0
  %1939 = vmatprep.mubr.bf16.mxu0 0
  %1940 = vmatmul.mubr.bf16.gmra.mrb[0].mxu0 %v1770
  %v1941 = vpop.f32.mrb[0].mxu0
  %v1942 = vadd.f32 0.0, %v1941
  %v1943 = vpop.f32.mrb[0].mxu0
  %v1944 = vpop.f32.mrb[0].mxu0
  %v1945 = vadd.f32 0.0, %v1944
  %v1946 = vpop.f32.mrb[0].mxu0
  %1947 = vmatprep.mubr.bf16.mxu0 0
  %1948 = vmatmul.mubr.bf16.gmra.mrb[0].mxu0 %v1773
  %v1949 = vpop.f32.mrb[0].mxu0
  %v1950 = vadd.f32 0.0, %v1949
  %v1951 = vpop.f32.mrb[0].mxu0
  %v1952 = vpop.f32.mrb[0].mxu0
  %v1953 = vadd.f32 0.0, %v1952
  %v1954 = vpop.f32.mrb[0].mxu0
  %1955 = vmatprep.mubr.bf16.mxu0 0
  %1956 = vmatmul.mubr.bf16.gmra.mrb[0].mxu0 %v1776
  %v1957 = vpop.f32.mrb[0].mxu0
  %v1958 = vadd.f32 0.0, %v1957
  %v1959 = vpop.f32.mrb[0].mxu0
  %v1960 = vpop.f32.mrb[0].mxu0
  %v1961 = vadd.f32 0.0, %v1960
  %v1962 = vpop.f32.mrb[0].mxu0
  %1963 = vmatprep.mubr.bf16.mxu0 0
  %1964 = vmatmul.mubr.bf16.gmra.mrb[0].mxu0 %v1779
  %v1965 = vpop.f32.mrb[0].mxu0
  %v1966 = vadd.f32 0.0, %v1965
  %v1967 = vpop.f32.mrb[0].mxu0
  %v1968 = vpop.f32.mrb[0].mxu0
  %v1969 = vadd.f32 0.0, %v1968
  %v1970 = vpop.f32.mrb[0].mxu0
  %1971 = vmatprep.mubr.bf16.mxu0 0
  %1972 = vmatmul.mubr.bf16.gmra.mrb[0].mxu0 %v1782
  %v1973 = vpop.f32.mrb[0].mxu0
  %v1974 = vadd.f32 0.0, %v1973
  %v1975 = vpop.f32.mrb[0].mxu0
  %v1976 = vpop.f32.mrb[0].mxu0
  %v1977 = vadd.f32 0.0, %v1976
  %v1978 = vpop.f32.mrb[0].mxu0
  %1979 = vmatprep.mubr.bf16.mxu0 0
  %1980 = vmatmul.mubr.bf16.gmra.mrb[0].mxu0 %v1785
  %v1981 = vpop.f32.mrb[0].mxu0
  %v1982 = vadd.f32 0.0, %v1981
  %v1983 = vpop.f32.mrb[0].mxu0
  %v1984 = vpop.f32.mrb[0].mxu0
  %v1985 = vadd.f32 0.0, %v1984
  %v1986 = vpop.f32.mrb[0].mxu0
  %1987 = vmatprep.mubr.bf16.mxu0 0
  %1988 = vmatmul.mubr.bf16.gmra.mrb[0].mxu0 %v1788
  %v1989 = vpop.f32.mrb[0].mxu0
  %v1990 = vadd.f32 0.0, %v1989
  %v1991 = vpop.f32.mrb[0].mxu0
  %v1992 = vpop.f32.mrb[0].mxu0
  %v1993 = vadd.f32 0.0, %v1992
  %v1994 = vpop.f32.mrb[0].mxu0
  %1995 = vmatprep.mubr.bf16.mxu0 0
  %1996 = vmatmul.mubr.bf16.gmra.mrb[0].mxu0 %v1791
  %v1997 = vpop.f32.mrb[0].mxu0
  %v1998 = vadd.f32 0.0, %v1997
  %v1999 = vpop.f32.mrb[0].mxu0
  %v2000 = vpop.f32.mrb[0].mxu0
  %v2001 = vadd.f32 0.0, %v2000
  %v2002 = vpop.f32.mrb[0].mxu0
  %2003 = vmatprep.mubr.bf16.mxu0 0
  %2004 = vmatmul.mubr.bf16.gmra.mrb[0].mxu0 %v1794
  %v2005 = vpop.f32.mrb[0].mxu0
  %v2006 = vadd.f32 0.0, %v2005
  %v2007 = vpop.f32.mrb[0].mxu0
  %v2008 = vpop.f32.mrb[0].mxu0
  %v2009 = vadd.f32 0.0, %v2008
  %v2010 = vpop.f32.mrb[0].mxu0
  %2011 = vmatprep.mubr.bf16.mxu0 0
  %2012 = vmatmul.mubr.bf16.gmra.mrb[0].mxu0 %v1797
  %v2013 = vpop.f32.mrb[0].mxu0
  %v2014 = vadd.f32 0.0, %v2013
  %v2015 = vpop.f32.mrb[0].mxu0
  %v2016 = vpop.f32.mrb[0].mxu0
  %v2017 = vadd.f32 0.0, %v2016
  %v2018 = vpop.f32.mrb[0].mxu0
  %2019 = vmatprep.mubr.bf16.mxu0 0
  %2020 = vmatmul.mubr.bf16.gmra.mrb[0].mxu0 %v1800
  %v2021 = vpop.f32.mrb[0].mxu0
  %v2022 = vadd.f32 0.0, %v2021
  %v2023 = vpop.f32.mrb[0].mxu0
  %v2024 = vpop.f32.mrb[0].mxu0
  %v2025 = vadd.f32 0.0, %v2024
  %v2026 = vpop.f32.mrb[0].mxu0
  %2027 = vmatprep.mubr.bf16.mxu0 0
  %2028 = vmatmul.mubr.bf16.gmra.mrb[0].mxu0 %v1803
  %v2029 = vpop.f32.mrb[0].mxu0
  %v2030 = vadd.f32 0.0, %v2029
  %v2031 = vpop.f32.mrb[0].mxu0
  %v2032 = vpop.f32.mrb[0].mxu0
  %v2033 = vadd.f32 0.0, %v2032
  %v2034 = vpop.f32.mrb[0].mxu0
  %2035 = vmatprep.mubr.bf16.mxu0 0
  %2036 = vmatmul.mubr.bf16.gmra.mrb[0].mxu0 %v1806
  %v2037 = vpop.f32.mrb[0].mxu0
  %v2038 = vadd.f32 0.0, %v2037
  %v2039 = vpop.f32.mrb[0].mxu0
  %v2040 = vpop.f32.mrb[0].mxu0
  %v2041 = vadd.f32 0.0, %v2040
  %v2042 = vpop.f32.mrb[0].mxu0
  %2043 = vmatprep.mubr.bf16.mxu0 0
  %2044 = vmatmul.mubr.bf16.gmra.mrb[0].mxu0 %v1809
  %v2045 = vpop.f32.mrb[0].mxu0
  %v2046 = vadd.f32 0.0, %v2045
  %v2047 = vpop.f32.mrb[0].mxu0
  %v2048 = vpop.f32.mrb[0].mxu0
  %v2049 = vadd.f32 0.0, %v2048
  %v2050 = vpop.f32.mrb[0].mxu0
  %2051 = vmatprep.mubr.bf16.mxu0 0
  %2052 = vmatmul.mubr.bf16.gmra.mrb[0].mxu0 %v1812
  %v2053 = vpop.f32.mrb[0].mxu0
  %v2054 = vadd.f32 0.0, %v2053
  %v2055 = vpop.f32.mrb[0].mxu0
  %v2056 = vpop.f32.mrb[0].mxu0
  %v2057 = vadd.f32 0.0, %v2056
  %v2058 = vpop.f32.mrb[0].mxu0
  %2059 = vmatprep.mubr.bf16.mxu0 0
  %2060 = vmatmul.mubr.bf16.gmra.mrb[0].mxu0 %v1815
  %v2061 = vpop.f32.mrb[0].mxu0
  %v2062 = vadd.f32 0.0, %v2061
  %v2063 = vpop.f32.mrb[0].mxu0
  %v2064 = vpop.f32.mrb[0].mxu0
  %v2065 = vadd.f32 0.0, %v2064
  %v2066 = vpop.f32.mrb[0].mxu0
  %2067 = vmatprep.mubr.bf16.mxu0 0
  %2068 = vmatmul.mubr.bf16.gmra.mrb[0].mxu0 %v1818
  %v2069 = vpop.f32.mrb[0].mxu0
  %v2070 = vadd.f32 0.0, %v2069
  %v2071 = vpop.f32.mrb[0].mxu0
  %v2072 = vpop.f32.mrb[0].mxu0
  %v2073 = vadd.f32 0.0, %v2072
  %v2074 = vpop.f32.mrb[0].mxu0
  %2075 = vmatprep.mubr.bf16.mxu0 0
  %2076 = vmatmul.mubr.bf16.gmra.mrb[0].mxu0 %v1821
  %v2077 = vpop.f32.mrb[0].mxu0
  %v2078 = vadd.f32 0.0, %v2077
  %v2079 = vpop.f32.mrb[0].mxu0
  %v2080 = vpop.f32.mrb[0].mxu0
  %v2081 = vadd.f32 0.0, %v2080
  %v2082 = vpop.f32.mrb[0].mxu0
  %2083 = vmatprep.mubr.bf16.mxu0 0
  %2084 = vmatmul.mubr.bf16.gmra.mrb[0].mxu0 %v1824
  %v2085 = vpop.f32.mrb[0].mxu0
  %v2086 = vadd.f32 0.0, %v2085
  %v2087 = vpop.f32.mrb[0].mxu0
  %v2088 = vpop.f32.mrb[0].mxu0
  %v2089 = vadd.f32 0.0, %v2088
  %v2090 = vpop.f32.mrb[0].mxu0
  %2091 = vmatprep.mubr.bf16.mxu0 0
  %2092 = vmatmul.mubr.bf16.gmra.mrb[0].mxu0 %v1827
  %v2093 = vpop.f32.mrb[0].mxu0
  %v2094 = vadd.f32 0.0, %v2093
  %v2095 = vpop.f32.mrb[0].mxu0
  %v2096 = vpop.f32.mrb[0].mxu0
  %v2097 = vadd.f32 0.0, %v2096
  %v2098 = vpop.f32.mrb[0].mxu0
  %2099 = vmatprep.mubr.bf16.mxu0 0
  %2100 = vmatmul.mubr.bf16.gmra.mrb[0].mxu0 %v1830
  %v2101 = vpop.f32.mrb[0].mxu0
  %v2102 = vadd.f32 0.0, %v2101
  %v2103 = vpop.f32.mrb[0].mxu0
  %v2104 = vpop.f32.mrb[0].mxu0
  %v2105 = vadd.f32 0.0, %v2104
  %v2106 = vpop.f32.mrb[0].mxu0
  %2107 = vmatprep.mubr.bf16.mxu0 0
  %2108 = vmatmul.mubr.bf16.gmra.mrb[0].mxu0 %v1833
  %v2109 = vpop.f32.mrb[0].mxu0
  %v2110 = vadd.f32 0.0, %v2109
  %v2111 = vpop.f32.mrb[0].mxu0
  %v2112 = vpop.f32.mrb[0].mxu0
  %v2113 = vadd.f32 0.0, %v2112
  %v2114 = vpop.f32.mrb[0].mxu0
  %2115 = vmatprep.mubr.bf16.mxu0 0
  %2116 = vmatmul.mubr.bf16.gmra.mrb[0].mxu0 %v1836
  %v2117 = vpop.f32.mrb[0].mxu0
  %v2118 = vadd.f32 0.0, %v2117
  %v2119 = vpop.f32.mrb[0].mxu0
  %v2120 = vpop.f32.mrb[0].mxu0
  %v2121 = vadd.f32 0.0, %v2120
  %v2122 = vpop.f32.mrb[0].mxu0
  %2123 = vmatprep.mubr.bf16.mxu0 0
  %2124 = vmatmul.mubr.bf16.gmra.mrb[0].mxu0 %v1839
  %v2125 = vpop.f32.mrb[0].mxu0
  %v2126 = vadd.f32 0.0, %v2125
  %v2127 = vpop.f32.mrb[0].mxu0
  %v2128 = vpop.f32.mrb[0].mxu0
  %v2129 = vadd.f32 0.0, %v2128
  %v2130 = vpop.f32.mrb[0].mxu0
  %2131 = vmatprep.mubr.bf16.mxu0 0
  %2132 = vmatmul.mubr.bf16.gmra.mrb[0].mxu0 %v1842
  %v2133 = vpop.f32.mrb[0].mxu0
  %v2134 = vadd.f32 0.0, %v2133
  %v2135 = vpop.f32.mrb[0].mxu0
  %v2136 = vpop.f32.mrb[0].mxu0
  %v2137 = vadd.f32 0.0, %v2136
  %v2138 = vpop.f32.mrb[0].mxu0
  %2139 = vmatprep.mubr.bf16.mxu0 0
  %2140 = vmatmul.mubr.bf16.gmra.mrb[0].mxu0 %v1845
  %v2141 = vpop.f32.mrb[0].mxu0
  %v2142 = vadd.f32 0.0, %v2141
  %v2143 = vpop.f32.mrb[0].mxu0
  %v2144 = vpop.f32.mrb[0].mxu0
  %v2145 = vadd.f32 0.0, %v2144
  %v2146 = vpop.f32.mrb[0].mxu0
  %2147 = vmatprep.mubr.bf16.mxu0 0
  %2148 = vmatmul.mubr.bf16.gmra.mrb[0].mxu0 %v1848
  %v2149 = vpop.f32.mrb[0].mxu0
  %v2150 = vadd.f32 0.0, %v2149
  %v2151 = vpop.f32.mrb[0].mxu0
  %v2152 = vpop.f32.mrb[0].mxu0
  %v2153 = vadd.f32 0.0, %v2152
  %v2154 = vpop.f32.mrb[0].mxu0
  %2155 = vmatprep.mubr.bf16.mxu0 0
  %2156 = vmatmul.mubr.bf16.gmra.mrb[0].mxu0 %v1851
  %v2157 = vpop.f32.mrb[0].mxu0
  %v2158 = vadd.f32 0.0, %v2157
  %v2159 = vpop.f32.mrb[0].mxu0
  %v2160 = vpop.f32.mrb[0].mxu0
  %v2161 = vadd.f32 0.0, %v2160
  %v2162 = vpop.f32.mrb[0].mxu0
  %2163 = vmatprep.mubr.bf16.mxu0 0
  %2164 = vmatmul.mubr.bf16.gmra.mrb[0].mxu0 %v1854
  %v2165 = vpop.f32.mrb[0].mxu0
  %v2166 = vadd.f32 0.0, %v2165
  %v2167 = vpop.f32.mrb[0].mxu0
  %v2168 = vpop.f32.mrb[0].mxu0
  %v2169 = vadd.f32 0.0, %v2168
  %v2170 = vpop.f32.mrb[0].mxu0
  %2171 = vmatprep.mubr.bf16.mxu0 0
  %2172 = vmatmul.mubr.bf16.gmra.mrb[0].mxu0 %v1857
  %v2173 = vpop.f32.mrb[0].mxu0
  %v2174 = vadd.f32 0.0, %v2173
  %v2175 = vpop.f32.mrb[0].mxu0
  %v2176 = vpop.f32.mrb[0].mxu0
  %v2177 = vadd.f32 0.0, %v2176
  %v2178 = vpop.f32.mrb[0].mxu0
  %2179 = vdwg.mxu0
  %v2184 = vunpack.c.l.b16 %v1729
  %v2185 = vunpack.c.l.b16 %v1730
  %v2186 = vunpack.c.l.b16 %v1731
  %v2187 = vunpack.c.l.b16 %v1732
  %v2188 = vpack.c.b16 %v2185, %v2184
  %v2189 = vpack.c.b16 %v2187, %v2186
  %v2193 = vsel %vm1750, %v1691, 0
  %2195 = vmatprep.subr.bf16.mxu0 0
  %2196 = vmatpush1.bf16.msra.mxu0 %v2188
  %2197 = vmatprep.subr.bf16.mxu0 0
  %2198 = vmatpush1.bf16.msra.mxu0 %v2189
  %2199 = vmatprep.subr.bf16.mxu0 0
  %2200 = vmatpush1.bf16.msra.mxu0 0
  %2201 = vmatprep.subr.bf16.mxu0 0
  %2202 = vmatpush1.bf16.msra.mxu0 0
  %2203 = vmatprep.subr.bf16.mxu0 0
  %2204 = vmatpush1.bf16.msra.mxu0 0
  %2205 = vmatprep.subr.bf16.mxu0 0
  %2206 = vmatpush1.bf16.msra.mxu0 0
  %2207 = vmatprep.subr.bf16.mxu0 0
  %2208 = vmatpush1.bf16.msra.mxu0 0
  %2209 = vmatprep.subr.bf16.mxu0 0
  %2210 = vmatpush1.bf16.msra.mxu0 0
  %2211 = vmatprep.subr.bf16.mxu0 0
  %2212 = vmatpush1.bf16.msra.mxu0 0
  %2213 = vmatprep.subr.bf16.mxu0 0
  %2214 = vmatpush1.bf16.msra.mxu0 0
  %2215 = vmatprep.subr.bf16.mxu0 0
  %2216 = vmatpush1.bf16.msra.mxu0 0
  %2217 = vmatprep.subr.bf16.mxu0 0
  %2218 = vmatpush1.bf16.msra.mxu0 0
  %2219 = vmatprep.subr.bf16.mxu0 0
  %2220 = vmatpush1.bf16.msra.mxu0 0
  %2221 = vmatprep.subr.bf16.mxu0 0
  %2222 = vmatpush1.bf16.msra.mxu0 0
  %2223 = vmatprep.subr.bf16.mxu0 0
  %2224 = vmatpush1.bf16.msra.mxu0 0
  %2225 = vmatprep.subr.bf16.mxu0 0
  %2226 = vmatpush1.bf16.msra.mxu0 0
  %2227 = vmatprep.mubr.bf16.mxu0 0
  %2228 = vmatmul.mubr.bf16.gmra.mrb[0].mxu0 %v2193
  %v2229 = vpop.f32.mrb[0].mxu0
  %v2230 = vadd.f32 %v1894, %v2229
  %v2231 = vpop.f32.mrb[0].mxu0
  %v2232 = vpop.f32.mrb[0].mxu0
  %v2233 = vadd.f32 %v1897, %v2232
  %v2234 = vpop.f32.mrb[0].mxu0
  %2235 = vmatprep.mubr.bf16.mxu0 0
  %2236 = vmatmul.mubr.bf16.gmra.mrb[0].mxu0 %v1752
  %v2237 = vpop.f32.mrb[0].mxu0
  %v2238 = vadd.f32 %v1902, %v2237
  %v2239 = vpop.f32.mrb[0].mxu0
  %v2240 = vpop.f32.mrb[0].mxu0
  %v2241 = vadd.f32 %v1905, %v2240
  %v2242 = vpop.f32.mrb[0].mxu0
  %2243 = vmatprep.mubr.bf16.mxu0 0
  %2244 = vmatmul.mubr.bf16.gmra.mrb[0].mxu0 %v1755
  %v2245 = vpop.f32.mrb[0].mxu0
  %v2246 = vadd.f32 %v1910, %v2245
  %v2247 = vpop.f32.mrb[0].mxu0
  %v2248 = vpop.f32.mrb[0].mxu0
  %v2249 = vadd.f32 %v1913, %v2248
  %v2250 = vpop.f32.mrb[0].mxu0
  %2251 = vmatprep.mubr.bf16.mxu0 0
  %2252 = vmatmul.mubr.bf16.gmra.mrb[0].mxu0 %v1758
  %v2253 = vpop.f32.mrb[0].mxu0
  %v2254 = vadd.f32 %v1918, %v2253
  %v2255 = vpop.f32.mrb[0].mxu0
  %v2256 = vpop.f32.mrb[0].mxu0
  %v2257 = vadd.f32 %v1921, %v2256
  %v2258 = vpop.f32.mrb[0].mxu0
  %2259 = vmatprep.mubr.bf16.mxu0 0
  %2260 = vmatmul.mubr.bf16.gmra.mrb[0].mxu0 %v1761
  %v2261 = vpop.f32.mrb[0].mxu0
  %v2262 = vadd.f32 %v1926, %v2261
  %v2263 = vpop.f32.mrb[0].mxu0
  %v2264 = vpop.f32.mrb[0].mxu0
  %v2265 = vadd.f32 %v1929, %v2264
  %v2266 = vpop.f32.mrb[0].mxu0
  %2267 = vmatprep.mubr.bf16.mxu0 0
  %2268 = vmatmul.mubr.bf16.gmra.mrb[0].mxu0 %v1764
  %v2269 = vpop.f32.mrb[0].mxu0
  %v2270 = vadd.f32 %v1934, %v2269
  %v2271 = vpop.f32.mrb[0].mxu0
  %v2272 = vpop.f32.mrb[0].mxu0
  %v2273 = vadd.f32 %v1937, %v2272
  %v2274 = vpop.f32.mrb[0].mxu0
  %2275 = vmatprep.mubr.bf16.mxu0 0
  %2276 = vmatmul.mubr.bf16.gmra.mrb[0].mxu0 %v1767
  %v2277 = vpop.f32.mrb[0].mxu0
  %v2278 = vadd.f32 %v1942, %v2277
  %v2279 = vpop.f32.mrb[0].mxu0
  %v2280 = vpop.f32.mrb[0].mxu0
  %v2281 = vadd.f32 %v1945, %v2280
  %v2282 = vpop.f32.mrb[0].mxu0
  %2283 = vmatprep.mubr.bf16.mxu0 0
  %2284 = vmatmul.mubr.bf16.gmra.mrb[0].mxu0 %v1770
  %v2285 = vpop.f32.mrb[0].mxu0
  %v2286 = vadd.f32 %v1950, %v2285
  %v2287 = vpop.f32.mrb[0].mxu0
  %v2288 = vpop.f32.mrb[0].mxu0
  %v2289 = vadd.f32 %v1953, %v2288
  %v2290 = vpop.f32.mrb[0].mxu0
  %2291 = vmatprep.mubr.bf16.mxu0 0
  %2292 = vmatmul.mubr.bf16.gmra.mrb[0].mxu0 %v1773
  %v2293 = vpop.f32.mrb[0].mxu0
  %v2294 = vadd.f32 %v1958, %v2293
  %v2295 = vpop.f32.mrb[0].mxu0
  %v2296 = vpop.f32.mrb[0].mxu0
  %v2297 = vadd.f32 %v1961, %v2296
  %v2298 = vpop.f32.mrb[0].mxu0
  %2299 = vmatprep.mubr.bf16.mxu0 0
  %2300 = vmatmul.mubr.bf16.gmra.mrb[0].mxu0 %v1776
  %v2301 = vpop.f32.mrb[0].mxu0
  %v2302 = vadd.f32 %v1966, %v2301
  %v2303 = vpop.f32.mrb[0].mxu0
  %v2304 = vpop.f32.mrb[0].mxu0
  %v2305 = vadd.f32 %v1969, %v2304
  %v2306 = vpop.f32.mrb[0].mxu0
  %2307 = vmatprep.mubr.bf16.mxu0 0
  %2308 = vmatmul.mubr.bf16.gmra.mrb[0].mxu0 %v1779
  %v2309 = vpop.f32.mrb[0].mxu0
  %v2310 = vadd.f32 %v1974, %v2309
  %v2311 = vpop.f32.mrb[0].mxu0
  %v2312 = vpop.f32.mrb[0].mxu0
  %v2313 = vadd.f32 %v1977, %v2312
  %v2314 = vpop.f32.mrb[0].mxu0
  %2315 = vmatprep.mubr.bf16.mxu0 0
  %2316 = vmatmul.mubr.bf16.gmra.mrb[0].mxu0 %v1782
  %v2317 = vpop.f32.mrb[0].mxu0
  %v2318 = vadd.f32 %v1982, %v2317
  %v2319 = vpop.f32.mrb[0].mxu0
  %v2320 = vpop.f32.mrb[0].mxu0
  %v2321 = vadd.f32 %v1985, %v2320
  %v2322 = vpop.f32.mrb[0].mxu0
  %2323 = vmatprep.mubr.bf16.mxu0 0
  %2324 = vmatmul.mubr.bf16.gmra.mrb[0].mxu0 %v1785
  %v2325 = vpop.f32.mrb[0].mxu0
  %v2326 = vadd.f32 %v1990, %v2325
  %v2327 = vpop.f32.mrb[0].mxu0
  %v2328 = vpop.f32.mrb[0].mxu0
  %v2329 = vadd.f32 %v1993, %v2328
  %v2330 = vpop.f32.mrb[0].mxu0
  %2331 = vmatprep.mubr.bf16.mxu0 0
  %2332 = vmatmul.mubr.bf16.gmra.mrb[0].mxu0 %v1788
  %v2333 = vpop.f32.mrb[0].mxu0
  %v2334 = vadd.f32 %v1998, %v2333
  %v2335 = vpop.f32.mrb[0].mxu0
  %v2336 = vpop.f32.mrb[0].mxu0
  %v2337 = vadd.f32 %v2001, %v2336
  %v2338 = vpop.f32.mrb[0].mxu0
  %2339 = vmatprep.mubr.bf16.mxu0 0
  %2340 = vmatmul.mubr.bf16.gmra.mrb[0].mxu0 %v1791
  %v2341 = vpop.f32.mrb[0].mxu0
  %v2342 = vadd.f32 %v2006, %v2341
  %v2343 = vpop.f32.mrb[0].mxu0
  %v2344 = vpop.f32.mrb[0].mxu0
  %v2345 = vadd.f32 %v2009, %v2344
  %v2346 = vpop.f32.mrb[0].mxu0
  %2347 = vmatprep.mubr.bf16.mxu0 0
  %2348 = vmatmul.mubr.bf16.gmra.mrb[0].mxu0 %v1794
  %v2349 = vpop.f32.mrb[0].mxu0
  %v2350 = vadd.f32 %v2014, %v2349
  %v2351 = vpop.f32.mrb[0].mxu0
  %v2352 = vpop.f32.mrb[0].mxu0
  %v2353 = vadd.f32 %v2017, %v2352
  %v2354 = vpop.f32.mrb[0].mxu0
  %2355 = vmatprep.mubr.bf16.mxu0 0
  %2356 = vmatmul.mubr.bf16.gmra.mrb[0].mxu0 %v1797
  %v2357 = vpop.f32.mrb[0].mxu0
  %v2358 = vadd.f32 %v2022, %v2357
  %v2359 = vpop.f32.mrb[0].mxu0
  %v2360 = vpop.f32.mrb[0].mxu0
  %v2361 = vadd.f32 %v2025, %v2360
  %v2362 = vpop.f32.mrb[0].mxu0
  %2363 = vmatprep.mubr.bf16.mxu0 0
  %2364 = vmatmul.mubr.bf16.gmra.mrb[0].mxu0 %v1800
  %v2365 = vpop.f32.mrb[0].mxu0
  %v2366 = vadd.f32 %v2030, %v2365
  %v2367 = vpop.f32.mrb[0].mxu0
  %v2368 = vpop.f32.mrb[0].mxu0
  %v2369 = vadd.f32 %v2033, %v2368
  %v2370 = vpop.f32.mrb[0].mxu0
  %2371 = vmatprep.mubr.bf16.mxu0 0
  %2372 = vmatmul.mubr.bf16.gmra.mrb[0].mxu0 %v1803
  %v2373 = vpop.f32.mrb[0].mxu0
  %v2374 = vadd.f32 %v2038, %v2373
  %v2375 = vpop.f32.mrb[0].mxu0
  %v2376 = vpop.f32.mrb[0].mxu0
  %v2377 = vadd.f32 %v2041, %v2376
  %v2378 = vpop.f32.mrb[0].mxu0
  %2379 = vmatprep.mubr.bf16.mxu0 0
  %2380 = vmatmul.mubr.bf16.gmra.mrb[0].mxu0 %v1806
  %v2381 = vpop.f32.mrb[0].mxu0
  %v2382 = vadd.f32 %v2046, %v2381
  %v2383 = vpop.f32.mrb[0].mxu0
  %v2384 = vpop.f32.mrb[0].mxu0
  %v2385 = vadd.f32 %v2049, %v2384
  %v2386 = vpop.f32.mrb[0].mxu0
  %2387 = vmatprep.mubr.bf16.mxu0 0
  %2388 = vmatmul.mubr.bf16.gmra.mrb[0].mxu0 %v1809
  %v2389 = vpop.f32.mrb[0].mxu0
  %v2390 = vadd.f32 %v2054, %v2389
  %v2391 = vpop.f32.mrb[0].mxu0
  %v2392 = vpop.f32.mrb[0].mxu0
  %v2393 = vadd.f32 %v2057, %v2392
  %v2394 = vpop.f32.mrb[0].mxu0
  %2395 = vmatprep.mubr.bf16.mxu0 0
  %2396 = vmatmul.mubr.bf16.gmra.mrb[0].mxu0 %v1812
  %v2397 = vpop.f32.mrb[0].mxu0
  %v2398 = vadd.f32 %v2062, %v2397
  %v2399 = vpop.f32.mrb[0].mxu0
  %v2400 = vpop.f32.mrb[0].mxu0
  %v2401 = vadd.f32 %v2065, %v2400
  %v2402 = vpop.f32.mrb[0].mxu0
  %2403 = vmatprep.mubr.bf16.mxu0 0
  %2404 = vmatmul.mubr.bf16.gmra.mrb[0].mxu0 %v1815
  %v2405 = vpop.f32.mrb[0].mxu0
  %v2406 = vadd.f32 %v2070, %v2405
  %v2407 = vpop.f32.mrb[0].mxu0
  %v2408 = vpop.f32.mrb[0].mxu0
  %v2409 = vadd.f32 %v2073, %v2408
  %v2410 = vpop.f32.mrb[0].mxu0
  %2411 = vmatprep.mubr.bf16.mxu0 0
  %2412 = vmatmul.mubr.bf16.gmra.mrb[0].mxu0 %v1818
  %v2413 = vpop.f32.mrb[0].mxu0
  %v2414 = vadd.f32 %v2078, %v2413
  %v2415 = vpop.f32.mrb[0].mxu0
  %v2416 = vpop.f32.mrb[0].mxu0
  %v2417 = vadd.f32 %v2081, %v2416
  %v2418 = vpop.f32.mrb[0].mxu0
  %2419 = vmatprep.mubr.bf16.mxu0 0
  %2420 = vmatmul.mubr.bf16.gmra.mrb[0].mxu0 %v1821
  %v2421 = vpop.f32.mrb[0].mxu0
  %v2422 = vadd.f32 %v2086, %v2421
  %v2423 = vpop.f32.mrb[0].mxu0
  %v2424 = vpop.f32.mrb[0].mxu0
  %v2425 = vadd.f32 %v2089, %v2424
  %v2426 = vpop.f32.mrb[0].mxu0
  %2427 = vmatprep.mubr.bf16.mxu0 0
  %2428 = vmatmul.mubr.bf16.gmra.mrb[0].mxu0 %v1824
  %v2429 = vpop.f32.mrb[0].mxu0
  %v2430 = vadd.f32 %v2094, %v2429
  %v2431 = vpop.f32.mrb[0].mxu0
  %v2432 = vpop.f32.mrb[0].mxu0
  %v2433 = vadd.f32 %v2097, %v2432
  %v2434 = vpop.f32.mrb[0].mxu0
  %2435 = vmatprep.mubr.bf16.mxu0 0
  %2436 = vmatmul.mubr.bf16.gmra.mrb[0].mxu0 %v1827
  %v2437 = vpop.f32.mrb[0].mxu0
  %v2438 = vadd.f32 %v2102, %v2437
  %v2439 = vpop.f32.mrb[0].mxu0
  %v2440 = vpop.f32.mrb[0].mxu0
  %v2441 = vadd.f32 %v2105, %v2440
  %v2442 = vpop.f32.mrb[0].mxu0
  %2443 = vmatprep.mubr.bf16.mxu0 0
  %2444 = vmatmul.mubr.bf16.gmra.mrb[0].mxu0 %v1830
  %v2445 = vpop.f32.mrb[0].mxu0
  %v2446 = vadd.f32 %v2110, %v2445
  %v2447 = vpop.f32.mrb[0].mxu0
  %v2448 = vpop.f32.mrb[0].mxu0
  %v2449 = vadd.f32 %v2113, %v2448
  %v2450 = vpop.f32.mrb[0].mxu0
  %2451 = vmatprep.mubr.bf16.mxu0 0
  %2452 = vmatmul.mubr.bf16.gmra.mrb[0].mxu0 %v1833
  %v2453 = vpop.f32.mrb[0].mxu0
  %v2454 = vadd.f32 %v2118, %v2453
  %v2455 = vpop.f32.mrb[0].mxu0
  %v2456 = vpop.f32.mrb[0].mxu0
  %v2457 = vadd.f32 %v2121, %v2456
  %v2458 = vpop.f32.mrb[0].mxu0
  %2459 = vmatprep.mubr.bf16.mxu0 0
  %2460 = vmatmul.mubr.bf16.gmra.mrb[0].mxu0 %v1836
  %v2461 = vpop.f32.mrb[0].mxu0
  %v2462 = vadd.f32 %v2126, %v2461
  %v2463 = vpop.f32.mrb[0].mxu0
  %v2464 = vpop.f32.mrb[0].mxu0
  %v2465 = vadd.f32 %v2129, %v2464
  %v2466 = vpop.f32.mrb[0].mxu0
  %2467 = vmatprep.mubr.bf16.mxu0 0
  %2468 = vmatmul.mubr.bf16.gmra.mrb[0].mxu0 %v1839
  %v2469 = vpop.f32.mrb[0].mxu0
  %v2470 = vadd.f32 %v2134, %v2469
  %v2471 = vpop.f32.mrb[0].mxu0
  %v2472 = vpop.f32.mrb[0].mxu0
  %v2473 = vadd.f32 %v2137, %v2472
  %v2474 = vpop.f32.mrb[0].mxu0
  %2475 = vmatprep.mubr.bf16.mxu0 0
  %2476 = vmatmul.mubr.bf16.gmra.mrb[0].mxu0 %v1842
  %v2477 = vpop.f32.mrb[0].mxu0
  %v2478 = vadd.f32 %v2142, %v2477
  %v2479 = vpop.f32.mrb[0].mxu0
  %v2480 = vpop.f32.mrb[0].mxu0
  %v2481 = vadd.f32 %v2145, %v2480
  %v2482 = vpop.f32.mrb[0].mxu0
  %2483 = vmatprep.mubr.bf16.mxu0 0
  %2484 = vmatmul.mubr.bf16.gmra.mrb[0].mxu0 %v1845
  %v2485 = vpop.f32.mrb[0].mxu0
  %v2486 = vadd.f32 %v2150, %v2485
  %v2487 = vpop.f32.mrb[0].mxu0
  %v2488 = vpop.f32.mrb[0].mxu0
  %v2489 = vadd.f32 %v2153, %v2488
  %v2490 = vpop.f32.mrb[0].mxu0
  %2491 = vmatprep.mubr.bf16.mxu0 0
  %2492 = vmatmul.mubr.bf16.gmra.mrb[0].mxu0 %v1848
  %v2493 = vpop.f32.mrb[0].mxu0
  %v2494 = vadd.f32 %v2158, %v2493
  %v2495 = vpop.f32.mrb[0].mxu0
  %v2496 = vpop.f32.mrb[0].mxu0
  %v2497 = vadd.f32 %v2161, %v2496
  %v2498 = vpop.f32.mrb[0].mxu0
  %2499 = vmatprep.mubr.bf16.mxu0 0
  %2500 = vmatmul.mubr.bf16.gmra.mrb[0].mxu0 %v1851
  %v2501 = vpop.f32.mrb[0].mxu0
  %v2502 = vadd.f32 %v2166, %v2501
  %v2503 = vpop.f32.mrb[0].mxu0
  %v2504 = vpop.f32.mrb[0].mxu0
  %v2505 = vadd.f32 %v2169, %v2504
  %v2506 = vpop.f32.mrb[0].mxu0
  %2507 = vmatprep.mubr.bf16.mxu0 0
  %2508 = vmatmul.mubr.bf16.gmra.mrb[0].mxu0 %v1854
  %v2509 = vpop.f32.mrb[0].mxu0
  %v2510 = vadd.f32 %v2174, %v2509
  %v2511 = vpop.f32.mrb[0].mxu0
  %v2512 = vpop.f32.mrb[0].mxu0
  %v2513 = vadd.f32 %v2177, %v2512
  %v2514 = vpop.f32.mrb[0].mxu0
  %2515 = vdwg.mxu0
  %s2516 = scalar_lea.vmem %s3, 32
  %v2517 = vld [vmem:[%s2516] sm:$0xf]
  %v2518 = vld [vmem:[%s2516 + $0x4] sm:$0xf]
  %v2519 = vld [vmem:[%s2516 + $0x8] sm:$0xf]
  %v2520 = vld [vmem:[%s2516 + $0xc] sm:$0xf]
  %v2525 = vunpack.c.l.b16 %v2517
  %v2526 = vunpack.c.l.b16 %v2518
  %v2527 = vunpack.c.l.b16 %v2519
  %v2528 = vunpack.c.l.b16 %v2520
  %v2529 = vpack.c.b16 %v2526, %v2525
  %v2530 = vpack.c.b16 %v2528, %v2527
  %v2534 = vsel %vm1750, %v1728, 0
  %2536 = vmatprep.subr.bf16.mxu0 0
  %2537 = vmatpush1.bf16.msra.mxu0 %v2529
  %2538 = vmatprep.subr.bf16.mxu0 0
  %2539 = vmatpush1.bf16.msra.mxu0 %v2530
  %2540 = vmatprep.subr.bf16.mxu0 0
  %2541 = vmatpush1.bf16.msra.mxu0 0
  %2542 = vmatprep.subr.bf16.mxu0 0
  %2543 = vmatpush1.bf16.msra.mxu0 0
  %2544 = vmatprep.subr.bf16.mxu0 0
  %2545 = vmatpush1.bf16.msra.mxu0 0
  %2546 = vmatprep.subr.bf16.mxu0 0
  %2547 = vmatpush1.bf16.msra.mxu0 0
  %2548 = vmatprep.subr.bf16.mxu0 0
  %2549 = vmatpush1.bf16.msra.mxu0 0
  %2550 = vmatprep.subr.bf16.mxu0 0
  %2551 = vmatpush1.bf16.msra.mxu0 0
  %2552 = vmatprep.subr.bf16.mxu0 0
  %2553 = vmatpush1.bf16.msra.mxu0 0
  %2554 = vmatprep.subr.bf16.mxu0 0
  %2555 = vmatpush1.bf16.msra.mxu0 0
  %2556 = vmatprep.subr.bf16.mxu0 0
  %2557 = vmatpush1.bf16.msra.mxu0 0
  %2558 = vmatprep.subr.bf16.mxu0 0
  %2559 = vmatpush1.bf16.msra.mxu0 0
  %2560 = vmatprep.subr.bf16.mxu0 0
  %2561 = vmatpush1.bf16.msra.mxu0 0
  %2562 = vmatprep.subr.bf16.mxu0 0
  %2563 = vmatpush1.bf16.msra.mxu0 0
  %2564 = vmatprep.subr.bf16.mxu0 0
  %2565 = vmatpush1.bf16.msra.mxu0 0
  %2566 = vmatprep.subr.bf16.mxu0 0
  %2567 = vmatpush1.bf16.msra.mxu0 0
  %2568 = vmatprep.mubr.bf16.mxu0 0
  %2569 = vmatmul.mubr.bf16.gmra.mrb[0].mxu0 %v1755
  %v2570 = vpop.f32.mrb[0].mxu0
  %v2571 = vadd.f32 0.0, %v2570
  %v2572 = vpop.f32.mrb[0].mxu0
  %v2573 = vpop.f32.mrb[0].mxu0
  %v2574 = vadd.f32 0.0, %v2573
  %v2575 = vpop.f32.mrb[0].mxu0
  %2576 = vmatprep.mubr.bf16.mxu0 0
  %2577 = vmatmul.mubr.bf16.gmra.mrb[0].mxu0 %v1758
  %v2578 = vpop.f32.mrb[0].mxu0
  %v2579 = vadd.f32 0.0, %v2578
  %v2580 = vpop.f32.mrb[0].mxu0
  %v2581 = vpop.f32.mrb[0].mxu0
  %v2582 = vadd.f32 0.0, %v2581
  %v2583 = vpop.f32.mrb[0].mxu0
  %2584 = vmatprep.mubr.bf16.mxu0 0
  %2585 = vmatmul.mubr.bf16.gmra.mrb[0].mxu0 %v1761
  %v2586 = vpop.f32.mrb[0].mxu0
  %v2587 = vadd.f32 0.0, %v2586
  %v2588 = vpop.f32.mrb[0].mxu0
  %v2589 = vpop.f32.mrb[0].mxu0
  %v2590 = vadd.f32 0.0, %v2589
  %v2591 = vpop.f32.mrb[0].mxu0
  %2592 = vmatprep.mubr.bf16.mxu0 0
  %2593 = vmatmul.mubr.bf16.gmra.mrb[0].mxu0 %v1764
  %v2594 = vpop.f32.mrb[0].mxu0
  %v2595 = vadd.f32 0.0, %v2594
  %v2596 = vpop.f32.mrb[0].mxu0
  %v2597 = vpop.f32.mrb[0].mxu0
  %v2598 = vadd.f32 0.0, %v2597
  %v2599 = vpop.f32.mrb[0].mxu0
  %2600 = vmatprep.mubr.bf16.mxu0 0
  %2601 = vmatmul.mubr.bf16.gmra.mrb[0].mxu0 %v1767
  %v2602 = vpop.f32.mrb[0].mxu0
  %v2603 = vadd.f32 0.0, %v2602
  %v2604 = vpop.f32.mrb[0].mxu0
  %v2605 = vpop.f32.mrb[0].mxu0
  %v2606 = vadd.f32 0.0, %v2605
  %v2607 = vpop.f32.mrb[0].mxu0
  %2608 = vmatprep.mubr.bf16.mxu0 0
  %2609 = vmatmul.mubr.bf16.gmra.mrb[0].mxu0 %v1770
  %v2610 = vpop.f32.mrb[0].mxu0
  %v2611 = vadd.f32 0.0, %v2610
  %v2612 = vpop.f32.mrb[0].mxu0
  %v2613 = vpop.f32.mrb[0].mxu0
  %v2614 = vadd.f32 0.0, %v2613
  %v2615 = vpop.f32.mrb[0].mxu0
  %2616 = vmatprep.mubr.bf16.mxu0 0
  %2617 = vmatmul.mubr.bf16.gmra.mrb[0].mxu0 %v1773
  %v2618 = vpop.f32.mrb[0].mxu0
  %v2619 = vadd.f32 0.0, %v2618
  %v2620 = vpop.f32.mrb[0].mxu0
  %v2621 = vpop.f32.mrb[0].mxu0
  %v2622 = vadd.f32 0.0, %v2621
  %v2623 = vpop.f32.mrb[0].mxu0
  %2624 = vmatprep.mubr.bf16.mxu0 0
  %2625 = vmatmul.mubr.bf16.gmra.mrb[0].mxu0 %v1776
  %v2626 = vpop.f32.mrb[0].mxu0
  %v2627 = vadd.f32 0.0, %v2626
  %v2628 = vpop.f32.mrb[0].mxu0
  %v2629 = vpop.f32.mrb[0].mxu0
  %v2630 = vadd.f32 0.0, %v2629
  %v2631 = vpop.f32.mrb[0].mxu0
  %2632 = vmatprep.mubr.bf16.mxu0 0
  %2633 = vmatmul.mubr.bf16.gmra.mrb[0].mxu0 %v1779
  %v2634 = vpop.f32.mrb[0].mxu0
  %v2635 = vadd.f32 0.0, %v2634
  %v2636 = vpop.f32.mrb[0].mxu0
  %v2637 = vpop.f32.mrb[0].mxu0
  %v2638 = vadd.f32 0.0, %v2637
  %v2639 = vpop.f32.mrb[0].mxu0
  %2640 = vmatprep.mubr.bf16.mxu0 0
  %2641 = vmatmul.mubr.bf16.gmra.mrb[0].mxu0 %v1782
  %v2642 = vpop.f32.mrb[0].mxu0
  %v2643 = vadd.f32 0.0, %v2642
  %v2644 = vpop.f32.mrb[0].mxu0
  %v2645 = vpop.f32.mrb[0].mxu0
  %v2646 = vadd.f32 0.0, %v2645
  %v2647 = vpop.f32.mrb[0].mxu0
  %2648 = vmatprep.mubr.bf16.mxu0 0
  %2649 = vmatmul.mubr.bf16.gmra.mrb[0].mxu0 %v1785
  %v2650 = vpop.f32.mrb[0].mxu0
  %v2651 = vadd.f32 0.0, %v2650
  %v2652 = vpop.f32.mrb[0].mxu0
  %v2653 = vpop.f32.mrb[0].mxu0
  %v2654 = vadd.f32 0.0, %v2653
  %v2655 = vpop.f32.mrb[0].mxu0
  %2656 = vmatprep.mubr.bf16.mxu0 0
  %2657 = vmatmul.mubr.bf16.gmra.mrb[0].mxu0 %v1788
  %v2658 = vpop.f32.mrb[0].mxu0
  %v2659 = vadd.f32 0.0, %v2658
  %v2660 = vpop.f32.mrb[0].mxu0
  %v2661 = vpop.f32.mrb[0].mxu0
  %v2662 = vadd.f32 0.0, %v2661
  %v2663 = vpop.f32.mrb[0].mxu0
  %2664 = vmatprep.mubr.bf16.mxu0 0
  %2665 = vmatmul.mubr.bf16.gmra.mrb[0].mxu0 %v1791
  %v2666 = vpop.f32.mrb[0].mxu0
  %v2667 = vadd.f32 0.0, %v2666
  %v2668 = vpop.f32.mrb[0].mxu0
  %v2669 = vpop.f32.mrb[0].mxu0
  %v2670 = vadd.f32 0.0, %v2669
  %v2671 = vpop.f32.mrb[0].mxu0
  %2672 = vmatprep.mubr.bf16.mxu0 0
  %2673 = vmatmul.mubr.bf16.gmra.mrb[0].mxu0 %v1794
  %v2674 = vpop.f32.mrb[0].mxu0
  %v2675 = vadd.f32 0.0, %v2674
  %v2676 = vpop.f32.mrb[0].mxu0
  %v2677 = vpop.f32.mrb[0].mxu0
  %v2678 = vadd.f32 0.0, %v2677
  %v2679 = vpop.f32.mrb[0].mxu0
  %2680 = vmatprep.mubr.bf16.mxu0 0
  %2681 = vmatmul.mubr.bf16.gmra.mrb[0].mxu0 %v1797
  %v2682 = vpop.f32.mrb[0].mxu0
  %v2683 = vadd.f32 0.0, %v2682
  %v2684 = vpop.f32.mrb[0].mxu0
  %v2685 = vpop.f32.mrb[0].mxu0
  %v2686 = vadd.f32 0.0, %v2685
  %v2687 = vpop.f32.mrb[0].mxu0
  %2688 = vmatprep.mubr.bf16.mxu0 0
  %2689 = vmatmul.mubr.bf16.gmra.mrb[0].mxu0 %v1800
  %v2690 = vpop.f32.mrb[0].mxu0
  %v2691 = vadd.f32 0.0, %v2690
  %v2692 = vpop.f32.mrb[0].mxu0
  %v2693 = vpop.f32.mrb[0].mxu0
  %v2694 = vadd.f32 0.0, %v2693
  %v2695 = vpop.f32.mrb[0].mxu0
  %2696 = vmatprep.mubr.bf16.mxu0 0
  %2697 = vmatmul.mubr.bf16.gmra.mrb[0].mxu0 %v1803
  %v2698 = vpop.f32.mrb[0].mxu0
  %v2699 = vadd.f32 0.0, %v2698
  %v2700 = vpop.f32.mrb[0].mxu0
  %v2701 = vpop.f32.mrb[0].mxu0
  %v2702 = vadd.f32 0.0, %v2701
  %v2703 = vpop.f32.mrb[0].mxu0
  %2704 = vmatprep.mubr.bf16.mxu0 0
  %2705 = vmatmul.mubr.bf16.gmra.mrb[0].mxu0 %v1806
  %v2706 = vpop.f32.mrb[0].mxu0
  %v2707 = vadd.f32 0.0, %v2706
  %v2708 = vpop.f32.mrb[0].mxu0
  %v2709 = vpop.f32.mrb[0].mxu0
  %v2710 = vadd.f32 0.0, %v2709
  %v2711 = vpop.f32.mrb[0].mxu0
  %2712 = vmatprep.mubr.bf16.mxu0 0
  %2713 = vmatmul.mubr.bf16.gmra.mrb[0].mxu0 %v1809
  %v2714 = vpop.f32.mrb[0].mxu0
  %v2715 = vadd.f32 0.0, %v2714
  %v2716 = vpop.f32.mrb[0].mxu0
  %v2717 = vpop.f32.mrb[0].mxu0
  %v2718 = vadd.f32 0.0, %v2717
  %v2719 = vpop.f32.mrb[0].mxu0
  %2720 = vmatprep.mubr.bf16.mxu0 0
  %2721 = vmatmul.mubr.bf16.gmra.mrb[0].mxu0 %v1812
  %v2722 = vpop.f32.mrb[0].mxu0
  %v2723 = vadd.f32 0.0, %v2722
  %v2724 = vpop.f32.mrb[0].mxu0
  %v2725 = vpop.f32.mrb[0].mxu0
  %v2726 = vadd.f32 0.0, %v2725
  %v2727 = vpop.f32.mrb[0].mxu0
  %2728 = vmatprep.mubr.bf16.mxu0 0
  %2729 = vmatmul.mubr.bf16.gmra.mrb[0].mxu0 %v1815
  %v2730 = vpop.f32.mrb[0].mxu0
  %v2731 = vadd.f32 0.0, %v2730
  %v2732 = vpop.f32.mrb[0].mxu0
  %v2733 = vpop.f32.mrb[0].mxu0
  %v2734 = vadd.f32 0.0, %v2733
  %v2735 = vpop.f32.mrb[0].mxu0
  %2736 = vmatprep.mubr.bf16.mxu0 0
  %2737 = vmatmul.mubr.bf16.gmra.mrb[0].mxu0 %v1818
  %v2738 = vpop.f32.mrb[0].mxu0
  %v2739 = vadd.f32 0.0, %v2738
  %v2740 = vpop.f32.mrb[0].mxu0
  %v2741 = vpop.f32.mrb[0].mxu0
  %v2742 = vadd.f32 0.0, %v2741
  %v2743 = vpop.f32.mrb[0].mxu0
  %2744 = vmatprep.mubr.bf16.mxu0 0
  %2745 = vmatmul.mubr.bf16.gmra.mrb[0].mxu0 %v1821
  %v2746 = vpop.f32.mrb[0].mxu0
  %v2747 = vadd.f32 0.0, %v2746
  %v2748 = vpop.f32.mrb[0].mxu0
  %v2749 = vpop.f32.mrb[0].mxu0
  %v2750 = vadd.f32 0.0, %v2749
  %v2751 = vpop.f32.mrb[0].mxu0
  %2752 = vmatprep.mubr.bf16.mxu0 0
  %2753 = vmatmul.mubr.bf16.gmra.mrb[0].mxu0 %v1824
  %v2754 = vpop.f32.mrb[0].mxu0
  %v2755 = vadd.f32 0.0, %v2754
  %v2756 = vpop.f32.mrb[0].mxu0
  %v2757 = vpop.f32.mrb[0].mxu0
  %v2758 = vadd.f32 0.0, %v2757
  %v2759 = vpop.f32.mrb[0].mxu0
  %2760 = vmatprep.mubr.bf16.mxu0 0
  %2761 = vmatmul.mubr.bf16.gmra.mrb[0].mxu0 %v1827
  %v2762 = vpop.f32.mrb[0].mxu0
  %v2763 = vadd.f32 0.0, %v2762
  %v2764 = vpop.f32.mrb[0].mxu0
  %v2765 = vpop.f32.mrb[0].mxu0
  %v2766 = vadd.f32 0.0, %v2765
  %v2767 = vpop.f32.mrb[0].mxu0
  %2768 = vmatprep.mubr.bf16.mxu0 0
  %2769 = vmatmul.mubr.bf16.gmra.mrb[0].mxu0 %v1830
  %v2770 = vpop.f32.mrb[0].mxu0
  %v2771 = vadd.f32 0.0, %v2770
  %v2772 = vpop.f32.mrb[0].mxu0
  %v2773 = vpop.f32.mrb[0].mxu0
  %v2774 = vadd.f32 0.0, %v2773
  %v2775 = vpop.f32.mrb[0].mxu0
  %2776 = vmatprep.mubr.bf16.mxu0 0
  %2777 = vmatmul.mubr.bf16.gmra.mrb[0].mxu0 %v1833
  %v2778 = vpop.f32.mrb[0].mxu0
  %v2779 = vadd.f32 0.0, %v2778
  %v2780 = vpop.f32.mrb[0].mxu0
  %v2781 = vpop.f32.mrb[0].mxu0
  %v2782 = vadd.f32 0.0, %v2781
  %v2783 = vpop.f32.mrb[0].mxu0
  %2784 = vmatprep.mubr.bf16.mxu0 0
  %2785 = vmatmul.mubr.bf16.gmra.mrb[0].mxu0 %v1836
  %v2786 = vpop.f32.mrb[0].mxu0
  %v2787 = vadd.f32 0.0, %v2786
  %v2788 = vpop.f32.mrb[0].mxu0
  %v2789 = vpop.f32.mrb[0].mxu0
  %v2790 = vadd.f32 0.0, %v2789
  %v2791 = vpop.f32.mrb[0].mxu0
  %2792 = vmatprep.mubr.bf16.mxu0 0
  %2793 = vmatmul.mubr.bf16.gmra.mrb[0].mxu0 %v1839
  %v2794 = vpop.f32.mrb[0].mxu0
  %v2795 = vadd.f32 0.0, %v2794
  %v2796 = vpop.f32.mrb[0].mxu0
  %v2797 = vpop.f32.mrb[0].mxu0
  %v2798 = vadd.f32 0.0, %v2797
  %v2799 = vpop.f32.mrb[0].mxu0
  %2800 = vmatprep.mubr.bf16.mxu0 0
  %2801 = vmatmul.mubr.bf16.gmra.mrb[0].mxu0 %v1842
  %v2802 = vpop.f32.mrb[0].mxu0
  %v2803 = vadd.f32 0.0, %v2802
  %v2804 = vpop.f32.mrb[0].mxu0
  %v2805 = vpop.f32.mrb[0].mxu0
  %v2806 = vadd.f32 0.0, %v2805
  %v2807 = vpop.f32.mrb[0].mxu0
  %2808 = vmatprep.mubr.bf16.mxu0 0
  %2809 = vmatmul.mubr.bf16.gmra.mrb[0].mxu0 %v1845
  %v2810 = vpop.f32.mrb[0].mxu0
  %v2811 = vadd.f32 0.0, %v2810
  %v2812 = vpop.f32.mrb[0].mxu0
  %v2813 = vpop.f32.mrb[0].mxu0
  %v2814 = vadd.f32 0.0, %v2813
  %v2815 = vpop.f32.mrb[0].mxu0
  %2816 = vmatprep.mubr.bf16.mxu0 0
  %2817 = vmatmul.mubr.bf16.gmra.mrb[0].mxu0 %v1848
  %v2818 = vpop.f32.mrb[0].mxu0
  %v2819 = vadd.f32 0.0, %v2818
  %v2820 = vpop.f32.mrb[0].mxu0
  %v2821 = vpop.f32.mrb[0].mxu0
  %v2822 = vadd.f32 0.0, %v2821
  %v2823 = vpop.f32.mrb[0].mxu0
  %2824 = vmatprep.mubr.bf16.mxu0 0
  %2825 = vmatmul.mubr.bf16.gmra.mrb[0].mxu0 %v1851
  %v2826 = vpop.f32.mrb[0].mxu0
  %v2827 = vadd.f32 0.0, %v2826
  %v2828 = vpop.f32.mrb[0].mxu0
  %v2829 = vpop.f32.mrb[0].mxu0
  %v2830 = vadd.f32 0.0, %v2829
  %v2831 = vpop.f32.mrb[0].mxu0
  %2832 = vmatprep.mubr.bf16.mxu0 0
  %2833 = vmatmul.mubr.bf16.gmra.mrb[0].mxu0 %v1854
  %v2834 = vpop.f32.mrb[0].mxu0
  %v2835 = vadd.f32 0.0, %v2834
  %v2836 = vpop.f32.mrb[0].mxu0
  %v2837 = vpop.f32.mrb[0].mxu0
  %v2838 = vadd.f32 0.0, %v2837
  %v2839 = vpop.f32.mrb[0].mxu0
  %2840 = vmatprep.mubr.bf16.mxu0 0
  %2841 = vmatmul.mubr.bf16.gmra.mrb[0].mxu0 %v1857
  %v2842 = vpop.f32.mrb[0].mxu0
  %v2843 = vadd.f32 0.0, %v2842
  %v2844 = vpop.f32.mrb[0].mxu0
  %v2845 = vpop.f32.mrb[0].mxu0
  %v2846 = vadd.f32 0.0, %v2845
  %v2847 = vpop.f32.mrb[0].mxu0
  %2848 = vmatprep.mubr.bf16.mxu0 0
  %2849 = vmatmul.mubr.bf16.gmra.mrb[0].mxu0 %v2534
  %v2850 = vpop.f32.mrb[0].mxu0
  %v2851 = vadd.f32 0.0, %v2850
  %v2852 = vpop.f32.mrb[0].mxu0
  %v2853 = vpop.f32.mrb[0].mxu0
  %v2854 = vadd.f32 0.0, %v2853
  %v2855 = vpop.f32.mrb[0].mxu0
  %2856 = vdwg.mxu0
  %v2857 = vadd.f32 %v2230, %v2571
  %v2858 = vadd.f32 %v2233, %v2574
  %v2859 = vadd.f32 %v2238, %v2579
  %v2860 = vadd.f32 %v2241, %v2582
  %v2861 = vadd.f32 %v2246, %v2587
  %v2862 = vadd.f32 %v2249, %v2590
  %v2863 = vadd.f32 %v2254, %v2595
  %v2864 = vadd.f32 %v2257, %v2598
  %v2865 = vadd.f32 %v2262, %v2603
  %v2866 = vadd.f32 %v2265, %v2606
  %v2867 = vadd.f32 %v2270, %v2611
  %v2868 = vadd.f32 %v2273, %v2614
  %v2869 = vadd.f32 %v2278, %v2619
  %v2870 = vadd.f32 %v2281, %v2622
  %v2871 = vadd.f32 %v2286, %v2627
  %v2872 = vadd.f32 %v2289, %v2630
  %v2873 = vadd.f32 %v2294, %v2635
  %v2874 = vadd.f32 %v2297, %v2638
  %v2875 = vadd.f32 %v2302, %v2643
  %v2876 = vadd.f32 %v2305, %v2646
  %v2877 = vadd.f32 %v2310, %v2651
  %v2878 = vadd.f32 %v2313, %v2654
  %v2879 = vadd.f32 %v2318, %v2659
  %v2880 = vadd.f32 %v2321, %v2662
  %v2881 = vadd.f32 %v2326, %v2667
  %v2882 = vadd.f32 %v2329, %v2670
  %v2883 = vadd.f32 %v2334, %v2675
  %v2884 = vadd.f32 %v2337, %v2678
  %v2885 = vadd.f32 %v2342, %v2683
  %v2886 = vadd.f32 %v2345, %v2686
  %v2887 = vadd.f32 %v2350, %v2691
  %v2888 = vadd.f32 %v2353, %v2694
  %v2889 = vadd.f32 %v2358, %v2699
  %v2890 = vadd.f32 %v2361, %v2702
  %v2891 = vadd.f32 %v2366, %v2707
  %v2892 = vadd.f32 %v2369, %v2710
  %v2893 = vadd.f32 %v2374, %v2715
  %v2894 = vadd.f32 %v2377, %v2718
  %v2895 = vadd.f32 %v2382, %v2723
  %v2896 = vadd.f32 %v2385, %v2726
  %v2897 = vadd.f32 %v2390, %v2731
  %v2898 = vadd.f32 %v2393, %v2734
  %v2899 = vadd.f32 %v2398, %v2739
  %v2900 = vadd.f32 %v2401, %v2742
  %v2901 = vadd.f32 %v2406, %v2747
  %v2902 = vadd.f32 %v2409, %v2750
  %v2903 = vadd.f32 %v2414, %v2755
  %v2904 = vadd.f32 %v2417, %v2758
  %v2905 = vadd.f32 %v2422, %v2763
  %v2906 = vadd.f32 %v2425, %v2766
  %v2907 = vadd.f32 %v2430, %v2771
  %v2908 = vadd.f32 %v2433, %v2774
  %v2909 = vadd.f32 %v2438, %v2779
  %v2910 = vadd.f32 %v2441, %v2782
  %v2911 = vadd.f32 %v2446, %v2787
  %v2912 = vadd.f32 %v2449, %v2790
  %v2913 = vadd.f32 %v2454, %v2795
  %v2914 = vadd.f32 %v2457, %v2798
  %v2915 = vadd.f32 %v2462, %v2803
  %v2916 = vadd.f32 %v2465, %v2806
  %v2917 = vadd.f32 %v2470, %v2811
  %v2918 = vadd.f32 %v2473, %v2814
  %v2919 = vadd.f32 %v2478, %v2819
  %v2920 = vadd.f32 %v2481, %v2822
  %v2921 = vadd.f32 %v2486, %v2827
  %v2922 = vadd.f32 %v2489, %v2830
  %v2923 = vadd.f32 %v2494, %v2835
  %v2924 = vadd.f32 %v2497, %v2838
  %v2925 = vadd.f32 %v2502, %v2843
  %v2926 = vadd.f32 %v2505, %v2846
  %v2927 = vadd.f32 %v2510, %v2851
  %v2928 = vadd.f32 %v2513, %v2854
  %v2929 = vld [vmem:[%s4] sm:$0x1]
  %v2931 = vlaneseq
  %v2932 = vshrl.u32 %v2931, 7
  %v2933 = vsub.s32 0, %v2932
  %v2934 = vrot.slane %v2929, %v2933
  %v2936 = vadd.f32 %v2857, %v2934
  %v2937 = vadd.f32 %v2858, %v2934
  %v2938 = vadd.f32 %v2859, %v2934
  %v2939 = vadd.f32 %v2860, %v2934
  %v2940 = vadd.f32 %v2861, %v2934
  %v2941 = vadd.f32 %v2862, %v2934
  %v2942 = vadd.f32 %v2863, %v2934
  %v2943 = vadd.f32 %v2864, %v2934
  %v2944 = vadd.f32 %v2865, %v2934
  %v2945 = vadd.f32 %v2866, %v2934
  %v2946 = vadd.f32 %v2867, %v2934
  %v2947 = vadd.f32 %v2868, %v2934
  %v2948 = vadd.f32 %v2869, %v2934
  %v2949 = vadd.f32 %v2870, %v2934
  %v2950 = vadd.f32 %v2871, %v2934
  %v2951 = vadd.f32 %v2872, %v2934
  %v2952 = vadd.f32 %v2873, %v2934
  %v2953 = vadd.f32 %v2874, %v2934
  %v2954 = vadd.f32 %v2875, %v2934
  %v2955 = vadd.f32 %v2876, %v2934
  %v2956 = vadd.f32 %v2877, %v2934
  %v2957 = vadd.f32 %v2878, %v2934
  %v2958 = vadd.f32 %v2879, %v2934
  %v2959 = vadd.f32 %v2880, %v2934
  %v2960 = vadd.f32 %v2881, %v2934
  %v2961 = vadd.f32 %v2882, %v2934
  %v2962 = vadd.f32 %v2883, %v2934
  %v2963 = vadd.f32 %v2884, %v2934
  %v2964 = vadd.f32 %v2885, %v2934
  %v2965 = vadd.f32 %v2886, %v2934
  %v2966 = vadd.f32 %v2887, %v2934
  %v2967 = vadd.f32 %v2888, %v2934
  %v2968 = vadd.f32 %v2889, %v2934
  %v2969 = vadd.f32 %v2890, %v2934
  %v2970 = vadd.f32 %v2891, %v2934
  %v2971 = vadd.f32 %v2892, %v2934
  %v2972 = vadd.f32 %v2893, %v2934
  %v2973 = vadd.f32 %v2894, %v2934
  %v2974 = vadd.f32 %v2895, %v2934
  %v2975 = vadd.f32 %v2896, %v2934
  %v2976 = vadd.f32 %v2897, %v2934
  %v2977 = vadd.f32 %v2898, %v2934
  %v2978 = vadd.f32 %v2899, %v2934
  %v2979 = vadd.f32 %v2900, %v2934
  %v2980 = vadd.f32 %v2901, %v2934
  %v2981 = vadd.f32 %v2902, %v2934
  %v2982 = vadd.f32 %v2903, %v2934
  %v2983 = vadd.f32 %v2904, %v2934
  %v2984 = vadd.f32 %v2905, %v2934
  %v2985 = vadd.f32 %v2906, %v2934
  %v2986 = vadd.f32 %v2907, %v2934
  %v2987 = vadd.f32 %v2908, %v2934
  %v2988 = vadd.f32 %v2909, %v2934
  %v2989 = vadd.f32 %v2910, %v2934
  %v2990 = vadd.f32 %v2911, %v2934
  %v2991 = vadd.f32 %v2912, %v2934
  %v2992 = vadd.f32 %v2913, %v2934
  %v2993 = vadd.f32 %v2914, %v2934
  %v2994 = vadd.f32 %v2915, %v2934
  %v2995 = vadd.f32 %v2916, %v2934
  %v2996 = vadd.f32 %v2917, %v2934
  %v2997 = vadd.f32 %v2918, %v2934
  %v2998 = vadd.f32 %v2919, %v2934
  %v2999 = vadd.f32 %v2920, %v2934
  %v3000 = vadd.f32 %v2921, %v2934
  %v3001 = vadd.f32 %v2922, %v2934
  %v3002 = vadd.f32 %v2923, %v2934
  %v3003 = vadd.f32 %v2924, %v2934
  %v3004 = vadd.f32 %v2925, %v2934
  %v3005 = vadd.f32 %v2926, %v2934
  %v3006 = vadd.f32 %v2927, %v2934
  %v3007 = vadd.f32 %v2928, %v2934
  %v3008 = vmax.f32 %v2936, 0.0
  %v3009 = vmax.f32 %v2937, 0.0
  %v3010 = vmax.f32 %v2938, 0.0
  %v3011 = vmax.f32 %v2939, 0.0
  %v3012 = vmax.f32 %v2940, 0.0
  %v3013 = vmax.f32 %v2941, 0.0
  %v3014 = vmax.f32 %v2942, 0.0
  %v3015 = vmax.f32 %v2943, 0.0
  %v3016 = vmax.f32 %v2944, 0.0
  %v3017 = vmax.f32 %v2945, 0.0
  %v3018 = vmax.f32 %v2946, 0.0
  %v3019 = vmax.f32 %v2947, 0.0
  %v3020 = vmax.f32 %v2948, 0.0
  %v3021 = vmax.f32 %v2949, 0.0
  %v3022 = vmax.f32 %v2950, 0.0
  %v3023 = vmax.f32 %v2951, 0.0
  %v3024 = vmax.f32 %v2952, 0.0
  %v3025 = vmax.f32 %v2953, 0.0
  %v3026 = vmax.f32 %v2954, 0.0
  %v3027 = vmax.f32 %v2955, 0.0
  %v3028 = vmax.f32 %v2956, 0.0
  %v3029 = vmax.f32 %v2957, 0.0
  %v3030 = vmax.f32 %v2958, 0.0
  %v3031 = vmax.f32 %v2959, 0.0
  %v3032 = vmax.f32 %v2960, 0.0
  %v3033 = vmax.f32 %v2961, 0.0
  %v3034 = vmax.f32 %v2962, 0.0
  %v3035 = vmax.f32 %v2963, 0.0
  %v3036 = vmax.f32 %v2964, 0.0
  %v3037 = vmax.f32 %v2965, 0.0
  %v3038 = vmax.f32 %v2966, 0.0
  %v3039 = vmax.f32 %v2967, 0.0
  %v3040 = vmax.f32 %v2968, 0.0
  %v3041 = vmax.f32 %v2969, 0.0
  %v3042 = vmax.f32 %v2970, 0.0
  %v3043 = vmax.f32 %v2971, 0.0
  %v3044 = vmax.f32 %v2972, 0.0
  %v3045 = vmax.f32 %v2973, 0.0
  %v3046 = vmax.f32 %v2974, 0.0
  %v3047 = vmax.f32 %v2975, 0.0
  %v3048 = vmax.f32 %v2976, 0.0
  %v3049 = vmax.f32 %v2977, 0.0
  %v3050 = vmax.f32 %v2978, 0.0
  %v3051 = vmax.f32 %v2979, 0.0
  %v3052 = vmax.f32 %v2980, 0.0
  %v3053 = vmax.f32 %v2981, 0.0
  %v3054 = vmax.f32 %v2982, 0.0
  %v3055 = vmax.f32 %v2983, 0.0
  %v3056 = vmax.f32 %v2984, 0.0
  %v3057 = vmax.f32 %v2985, 0.0
  %v3058 = vmax.f32 %v2986, 0.0
  %v3059 = vmax.f32 %v2987, 0.0
  %v3060 = vmax.f32 %v2988, 0.0
  %v3061 = vmax.f32 %v2989, 0.0
  %v3062 = vmax.f32 %v2990, 0.0
  %v3063 = vmax.f32 %v2991, 0.0
  %v3064 = vmax.f32 %v2992, 0.0
  %v3065 = vmax.f32 %v2993, 0.0
  %v3066 = vmax.f32 %v2994, 0.0
  %v3067 = vmax.f32 %v2995, 0.0
  %v3068 = vmax.f32 %v2996, 0.0
  %v3069 = vmax.f32 %v2997, 0.0
  %v3070 = vmax.f32 %v2998, 0.0
  %v3071 = vmax.f32 %v2999, 0.0
  %v3072 = vmax.f32 %v3000, 0.0
  %v3073 = vmax.f32 %v3001, 0.0
  %v3074 = vmax.f32 %v3002, 0.0
  %v3075 = vmax.f32 %v3003, 0.0
  %v3076 = vmax.f32 %v3004, 0.0
  %v3077 = vmax.f32 %v3005, 0.0
  %v3078 = vmax.f32 %v3006, 0.0
  %v3079 = vmax.f32 %v3007, 0.0
  %v3080 = vpack.c.bf16 %v3009, %v3008
  %v3081 = vpack.c.bf16 %v3011, %v3010
  %v3082 = vpack.c.bf16 %v3013, %v3012
  %v3083 = vpack.c.bf16 %v3015, %v3014
  %v3084 = vpack.c.bf16 %v3017, %v3016
  %v3085 = vpack.c.bf16 %v3019, %v3018
  %v3086 = vpack.c.bf16 %v3021, %v3020
  %v3087 = vpack.c.bf16 %v3023, %v3022
  %v3088 = vpack.c.bf16 %v3025, %v3024
  %v3089 = vpack.c.bf16 %v3027, %v3026
  %v3090 = vpack.c.bf16 %v3029, %v3028
  %v3091 = vpack.c.bf16 %v3031, %v3030
  %v3092 = vpack.c.bf16 %v3033, %v3032
  %v3093 = vpack.c.bf16 %v3035, %v3034
  %v3094 = vpack.c.bf16 %v3037, %v3036
  %v3095 = vpack.c.bf16 %v3039, %v3038
  %v3096 = vpack.c.bf16 %v3041, %v3040
  %v3097 = vpack.c.bf16 %v3043, %v3042
  %v3098 = vpack.c.bf16 %v3045, %v3044
  %v3099 = vpack.c.bf16 %v3047, %v3046
  %v3100 = vpack.c.bf16 %v3049, %v3048
  %v3101 = vpack.c.bf16 %v3051, %v3050
  %v3102 = vpack.c.bf16 %v3053, %v3052
  %v3103 = vpack.c.bf16 %v3055, %v3054
  %v3104 = vpack.c.bf16 %v3057, %v3056
  %v3105 = vpack.c.bf16 %v3059, %v3058
  %v3106 = vpack.c.bf16 %v3061, %v3060
  %v3107 = vpack.c.bf16 %v3063, %v3062
  %v3108 = vpack.c.bf16 %v3065, %v3064
  %v3109 = vpack.c.bf16 %v3067, %v3066
  %v3110 = vpack.c.bf16 %v3069, %v3068
  %v3111 = vpack.c.bf16 %v3071, %v3070
  %v3112 = vpack.c.bf16 %v3073, %v3072
  %v3113 = vpack.c.bf16 %v3075, %v3074
  %v3114 = vpack.c.bf16 %v3077, %v3076
  %v3115 = vpack.c.bf16 %v3079, %v3078
  %v3116 = vld [vmem:[%s5] sm:$0xf]
  %v3117 = vld [vmem:[%s5 + $0x4] sm:$0xf]
  %v3118 = vld [vmem:[%s5 + $0x8] sm:$0xf]
  %v3119 = vld [vmem:[%s5 + $0xc] sm:$0xf]
  %s3120 = scalar_lea.vmem %s5, 16
  %v3121 = vld [vmem:[%s3120] sm:$0xf]
  %v3122 = vld [vmem:[%s3120 + $0x4] sm:$0xf]
  %v3123 = vld [vmem:[%s3120 + $0x8] sm:$0xf]
  %v3124 = vld [vmem:[%s3120 + $0xc] sm:$0xf]
  %v3129 = vunpack.c.l.b16 %v3121
  %v3130 = vunpack.c.l.b16 %v3122
  %v3131 = vunpack.c.l.b16 %v3123
  %v3132 = vunpack.c.l.b16 %v3124
  %v3133 = vpack.c.b16 %v3130, %v3129
  %v3134 = vpack.c.b16 %v3132, %v3131
  %v3138 = vsel %vm1750, %v3081, 0
  %3140 = vmatprep.subr.bf16.mxu0 0
  %3141 = vmatpush1.bf16.msra.mxu0 %v3133
  %3142 = vmatprep.subr.bf16.mxu0 0
  %3143 = vmatpush1.bf16.msra.mxu0 %v3134
  %3144 = vmatprep.subr.bf16.mxu0 0
  %3145 = vmatpush1.bf16.msra.mxu0 0
  %3146 = vmatprep.subr.bf16.mxu0 0
  %3147 = vmatpush1.bf16.msra.mxu0 0
  %3148 = vmatprep.subr.bf16.mxu0 0
  %3149 = vmatpush1.bf16.msra.mxu0 0
  %3150 = vmatprep.subr.bf16.mxu0 0
  %3151 = vmatpush1.bf16.msra.mxu0 0
  %3152 = vmatprep.subr.bf16.mxu0 0
  %3153 = vmatpush1.bf16.msra.mxu0 0
  %3154 = vmatprep.subr.bf16.mxu0 0
  %3155 = vmatpush1.bf16.msra.mxu0 0
  %3156 = vmatprep.subr.bf16.mxu0 0
  %3157 = vmatpush1.bf16.msra.mxu0 0
  %3158 = vmatprep.subr.bf16.mxu0 0
  %3159 = vmatpush1.bf16.msra.mxu0 0
  %3160 = vmatprep.subr.bf16.mxu0 0
  %3161 = vmatpush1.bf16.msra.mxu0 0
  %3162 = vmatprep.subr.bf16.mxu0 0
  %3163 = vmatpush1.bf16.msra.mxu0 0
  %3164 = vmatprep.subr.bf16.mxu0 0
  %3165 = vmatpush1.bf16.msra.mxu0 0
  %3166 = vmatprep.subr.bf16.mxu0 0
  %3167 = vmatpush1.bf16.msra.mxu0 0
  %3168 = vmatprep.subr.bf16.mxu0 0
  %3169 = vmatpush1.bf16.msra.mxu0 0
  %3170 = vmatprep.subr.bf16.mxu0 0
  %3171 = vmatpush1.bf16.msra.mxu0 0
  %3172 = vmatprep.mubr.bf16.mxu0 0
  %3173 = vmatmul.mubr.bf16.gmra.mrb[0].mxu0 %v3138
  %v3174 = vpop.f32.mrb[0].mxu0
  %v3175 = vadd.f32 0.0, %v3174
  %v3176 = vpop.f32.mrb[0].mxu0
  %v3177 = vpop.f32.mrb[0].mxu0
  %v3178 = vadd.f32 0.0, %v3177
  %v3179 = vpop.f32.mrb[0].mxu0
  %3180 = vdwg.mxu0
  %v3185 = vunpack.c.l.b16 %v3116
  %v3186 = vunpack.c.l.b16 %v3117
  %v3187 = vunpack.c.l.b16 %v3118
  %v3188 = vunpack.c.l.b16 %v3119
  %v3189 = vpack.c.b16 %v3186, %v3185
  %v3190 = vpack.c.b16 %v3188, %v3187
  %v3194 = vsel %vm1750, %v3080, 0
  %3196 = vmatprep.subr.bf16.mxu0 0
  %3197 = vmatpush1.bf16.msra.mxu0 %v3189
  %3198 = vmatprep.subr.bf16.mxu0 0
  %3199 = vmatpush1.bf16.msra.mxu0 %v3190
  %3200 = vmatprep.subr.bf16.mxu0 0
  %3201 = vmatpush1.bf16.msra.mxu0 0
  %3202 = vmatprep.subr.bf16.mxu0 0
  %3203 = vmatpush1.bf16.msra.mxu0 0
  %3204 = vmatprep.subr.bf16.mxu0 0
  %3205 = vmatpush1.bf16.msra.mxu0 0
  %3206 = vmatprep.subr.bf16.mxu0 0
  %3207 = vmatpush1.bf16.msra.mxu0 0
  %3208 = vmatprep.subr.bf16.mxu0 0
  %3209 = vmatpush1.bf16.msra.mxu0 0
  %3210 = vmatprep.subr.bf16.mxu0 0
  %3211 = vmatpush1.bf16.msra.mxu0 0
  %3212 = vmatprep.subr.bf16.mxu0 0
  %3213 = vmatpush1.bf16.msra.mxu0 0
  %3214 = vmatprep.subr.bf16.mxu0 0
  %3215 = vmatpush1.bf16.msra.mxu0 0
  %3216 = vmatprep.subr.bf16.mxu0 0
  %3217 = vmatpush1.bf16.msra.mxu0 0
  %3218 = vmatprep.subr.bf16.mxu0 0
  %3219 = vmatpush1.bf16.msra.mxu0 0
  %3220 = vmatprep.subr.bf16.mxu0 0
  %3221 = vmatpush1.bf16.msra.mxu0 0
  %3222 = vmatprep.subr.bf16.mxu0 0
  %3223 = vmatpush1.bf16.msra.mxu0 0
  %3224 = vmatprep.subr.bf16.mxu0 0
  %3225 = vmatpush1.bf16.msra.mxu0 0
  %3226 = vmatprep.subr.bf16.mxu0 0
  %3227 = vmatpush1.bf16.msra.mxu0 0
  %3228 = vmatprep.mubr.bf16.mxu0 0
  %3229 = vmatmul.mubr.bf16.gmra.mrb[0].mxu0 %v3194
  %v3230 = vpop.f32.mrb[0].mxu0
  %v3231 = vadd.f32 %v3175, %v3230
  %v3232 = vpop.f32.mrb[0].mxu0
  %v3233 = vpop.f32.mrb[0].mxu0
  %v3234 = vadd.f32 %v3178, %v3233
  %v3235 = vpop.f32.mrb[0].mxu0
  %3236 = vdwg.mxu0
  %s3237 = scalar_lea.vmem %s5, 32
  %v3238 = vld [vmem:[%s3237] sm:$0xf]
  %v3239 = vld [vmem:[%s3237 + $0x4] sm:$0xf]
  %v3240 = vld [vmem:[%s3237 + $0x8] sm:$0xf]
  %v3241 = vld [vmem:[%s3237 + $0xc] sm:$0xf]
  %v3246 = vunpack.c.l.b16 %v3238
  %v3247 = vunpack.c.l.b16 %v3239
  %v3248 = vunpack.c.l.b16 %v3240
  %v3249 = vunpack.c.l.b16 %v3241
  %v3250 = vpack.c.b16 %v3247, %v3246
  %v3251 = vpack.c.b16 %v3249, %v3248
  %v3255 = vsel %vm1750, %v3082, 0
  %3257 = vmatprep.subr.bf16.mxu0 0
  %3258 = vmatpush1.bf16.msra.mxu0 %v3250
  %3259 = vmatprep.subr.bf16.mxu0 0
  %3260 = vmatpush1.bf16.msra.mxu0 %v3251
  %3261 = vmatprep.subr.bf16.mxu0 0
  %3262 = vmatpush1.bf16.msra.mxu0 0
  %3263 = vmatprep.subr.bf16.mxu0 0
  %3264 = vmatpush1.bf16.msra.mxu0 0
  %3265 = vmatprep.subr.bf16.mxu0 0
  %3266 = vmatpush1.bf16.msra.mxu0 0
  %3267 = vmatprep.subr.bf16.mxu0 0
  %3268 = vmatpush1.bf16.msra.mxu0 0
  %3269 = vmatprep.subr.bf16.mxu0 0
  %3270 = vmatpush1.bf16.msra.mxu0 0
  %3271 = vmatprep.subr.bf16.mxu0 0
  %3272 = vmatpush1.bf16.msra.mxu0 0
  %3273 = vmatprep.subr.bf16.mxu0 0
  %3274 = vmatpush1.bf16.msra.mxu0 0
  %3275 = vmatprep.subr.bf16.mxu0 0
  %3276 = vmatpush1.bf16.msra.mxu0 0
  %3277 = vmatprep.subr.bf16.mxu0 0
  %3278 = vmatpush1.bf16.msra.mxu0 0
  %3279 = vmatprep.subr.bf16.mxu0 0
  %3280 = vmatpush1.bf16.msra.mxu0 0
  %3281 = vmatprep.subr.bf16.mxu0 0
  %3282 = vmatpush1.bf16.msra.mxu0 0
  %3283 = vmatprep.subr.bf16.mxu0 0
  %3284 = vmatpush1.bf16.msra.mxu0 0
  %3285 = vmatprep.subr.bf16.mxu0 0
  %3286 = vmatpush1.bf16.msra.mxu0 0
  %3287 = vmatprep.subr.bf16.mxu0 0
  %3288 = vmatpush1.bf16.msra.mxu0 0
  %3289 = vmatprep.mubr.bf16.mxu0 0
  %3290 = vmatmul.mubr.bf16.gmra.mrb[0].mxu0 %v3255
  %v3291 = vpop.f32.mrb[0].mxu0
  %v3292 = vadd.f32 0.0, %v3291
  %v3293 = vpop.f32.mrb[0].mxu0
  %v3294 = vpop.f32.mrb[0].mxu0
  %v3295 = vadd.f32 0.0, %v3294
  %v3296 = vpop.f32.mrb[0].mxu0
  %3297 = vdwg.mxu0
  %v3298 = vadd.f32 %v3231, %v3292
  %v3299 = vadd.f32 %v3234, %v3295
  %s3300 = scalar_lea.vmem %s5, 48
  %v3301 = vld [vmem:[%s3300] sm:$0xf]
  %v3302 = vld [vmem:[%s3300 + $0x4] sm:$0xf]
  %v3303 = vld [vmem:[%s3300 + $0x8] sm:$0xf]
  %v3304 = vld [vmem:[%s3300 + $0xc] sm:$0xf]
  %v3309 = vunpack.c.l.b16 %v3301
  %v3310 = vunpack.c.l.b16 %v3302
  %v3311 = vunpack.c.l.b16 %v3303
  %v3312 = vunpack.c.l.b16 %v3304
  %v3313 = vpack.c.b16 %v3310, %v3309
  %v3314 = vpack.c.b16 %v3312, %v3311
  %v3318 = vsel %vm1750, %v3083, 0
  %3320 = vmatprep.subr.bf16.mxu0 0
  %3321 = vmatpush1.bf16.msra.mxu0 %v3313
  %3322 = vmatprep.subr.bf16.mxu0 0
  %3323 = vmatpush1.bf16.msra.mxu0 %v3314
  %3324 = vmatprep.subr.bf16.mxu0 0
  %3325 = vmatpush1.bf16.msra.mxu0 0
  %3326 = vmatprep.subr.bf16.mxu0 0
  %3327 = vmatpush1.bf16.msra.mxu0 0
  %3328 = vmatprep.subr.bf16.mxu0 0
  %3329 = vmatpush1.bf16.msra.mxu0 0
  %3330 = vmatprep.subr.bf16.mxu0 0
  %3331 = vmatpush1.bf16.msra.mxu0 0
  %3332 = vmatprep.subr.bf16.mxu0 0
  %3333 = vmatpush1.bf16.msra.mxu0 0
  %3334 = vmatprep.subr.bf16.mxu0 0
  %3335 = vmatpush1.bf16.msra.mxu0 0
  %3336 = vmatprep.subr.bf16.mxu0 0
  %3337 = vmatpush1.bf16.msra.mxu0 0
  %3338 = vmatprep.subr.bf16.mxu0 0
  %3339 = vmatpush1.bf16.msra.mxu0 0
  %3340 = vmatprep.subr.bf16.mxu0 0
  %3341 = vmatpush1.bf16.msra.mxu0 0
  %3342 = vmatprep.subr.bf16.mxu0 0
  %3343 = vmatpush1.bf16.msra.mxu0 0
  %3344 = vmatprep.subr.bf16.mxu0 0
  %3345 = vmatpush1.bf16.msra.mxu0 0
  %3346 = vmatprep.subr.bf16.mxu0 0
  %3347 = vmatpush1.bf16.msra.mxu0 0
  %3348 = vmatprep.subr.bf16.mxu0 0
  %3349 = vmatpush1.bf16.msra.mxu0 0
  %3350 = vmatprep.subr.bf16.mxu0 0
  %3351 = vmatpush1.bf16.msra.mxu0 0
  %3352 = vmatprep.mubr.bf16.mxu0 0
  %3353 = vmatmul.mubr.bf16.gmra.mrb[0].mxu0 %v3318
  %v3354 = vpop.f32.mrb[0].mxu0
  %v3355 = vadd.f32 0.0, %v3354
  %v3356 = vpop.f32.mrb[0].mxu0
  %v3357 = vpop.f32.mrb[0].mxu0
  %v3358 = vadd.f32 0.0, %v3357
  %v3359 = vpop.f32.mrb[0].mxu0
  %3360 = vdwg.mxu0
  %v3361 = vadd.f32 %v3298, %v3355
  %v3362 = vadd.f32 %v3299, %v3358
  %s3363 = scalar_lea.vmem %s5, 64
  %v3364 = vld [vmem:[%s3363] sm:$0xf]
  %v3365 = vld [vmem:[%s3363 + $0x4] sm:$0xf]
  %v3366 = vld [vmem:[%s3363 + $0x8] sm:$0xf]
  %v3367 = vld [vmem:[%s3363 + $0xc] sm:$0xf]
  %v3372 = vunpack.c.l.b16 %v3364
  %v3373 = vunpack.c.l.b16 %v3365
  %v3374 = vunpack.c.l.b16 %v3366
  %v3375 = vunpack.c.l.b16 %v3367
  %v3376 = vpack.c.b16 %v3373, %v3372
  %v3377 = vpack.c.b16 %v3375, %v3374
  %v3381 = vsel %vm1750, %v3084, 0
  %3383 = vmatprep.subr.bf16.mxu0 0
  %3384 = vmatpush1.bf16.msra.mxu0 %v3376
  %3385 = vmatprep.subr.bf16.mxu0 0
  %3386 = vmatpush1.bf16.msra.mxu0 %v3377
  %3387 = vmatprep.subr.bf16.mxu0 0
  %3388 = vmatpush1.bf16.msra.mxu0 0
  %3389 = vmatprep.subr.bf16.mxu0 0
  %3390 = vmatpush1.bf16.msra.mxu0 0
  %3391 = vmatprep.subr.bf16.mxu0 0
  %3392 = vmatpush1.bf16.msra.mxu0 0
  %3393 = vmatprep.subr.bf16.mxu0 0
  %3394 = vmatpush1.bf16.msra.mxu0 0
  %3395 = vmatprep.subr.bf16.mxu0 0
  %3396 = vmatpush1.bf16.msra.mxu0 0
  %3397 = vmatprep.subr.bf16.mxu0 0
  %3398 = vmatpush1.bf16.msra.mxu0 0
  %3399 = vmatprep.subr.bf16.mxu0 0
  %3400 = vmatpush1.bf16.msra.mxu0 0
  %3401 = vmatprep.subr.bf16.mxu0 0
  %3402 = vmatpush1.bf16.msra.mxu0 0
  %3403 = vmatprep.subr.bf16.mxu0 0
  %3404 = vmatpush1.bf16.msra.mxu0 0
  %3405 = vmatprep.subr.bf16.mxu0 0
  %3406 = vmatpush1.bf16.msra.mxu0 0
  %3407 = vmatprep.subr.bf16.mxu0 0
  %3408 = vmatpush1.bf16.msra.mxu0 0
  %3409 = vmatprep.subr.bf16.mxu0 0
  %3410 = vmatpush1.bf16.msra.mxu0 0
  %3411 = vmatprep.subr.bf16.mxu0 0
  %3412 = vmatpush1.bf16.msra.mxu0 0
  %3413 = vmatprep.subr.bf16.mxu0 0
  %3414 = vmatpush1.bf16.msra.mxu0 0
  %3415 = vmatprep.mubr.bf16.mxu0 0
  %3416 = vmatmul.mubr.bf16.gmra.mrb[0].mxu0 %v3381
  %v3417 = vpop.f32.mrb[0].mxu0
  %v3418 = vadd.f32 0.0, %v3417
  %v3419 = vpop.f32.mrb[0].mxu0
  %v3420 = vpop.f32.mrb[0].mxu0
  %v3421 = vadd.f32 0.0, %v3420
  %v3422 = vpop.f32.mrb[0].mxu0
  %3423 = vdwg.mxu0
  %v3424 = vadd.f32 %v3361, %v3418
  %v3425 = vadd.f32 %v3362, %v3421
  %s3426 = scalar_lea.vmem %s5, 80
  %v3427 = vld [vmem:[%s3426] sm:$0xf]
  %v3428 = vld [vmem:[%s3426 + $0x4] sm:$0xf]
  %v3429 = vld [vmem:[%s3426 + $0x8] sm:$0xf]
  %v3430 = vld [vmem:[%s3426 + $0xc] sm:$0xf]
  %v3435 = vunpack.c.l.b16 %v3427
  %v3436 = vunpack.c.l.b16 %v3428
  %v3437 = vunpack.c.l.b16 %v3429
  %v3438 = vunpack.c.l.b16 %v3430
  %v3439 = vpack.c.b16 %v3436, %v3435
  %v3440 = vpack.c.b16 %v3438, %v3437
  %v3444 = vsel %vm1750, %v3085, 0
  %3446 = vmatprep.subr.bf16.mxu0 0
  %3447 = vmatpush1.bf16.msra.mxu0 %v3439
  %3448 = vmatprep.subr.bf16.mxu0 0
  %3449 = vmatpush1.bf16.msra.mxu0 %v3440
  %3450 = vmatprep.subr.bf16.mxu0 0
  %3451 = vmatpush1.bf16.msra.mxu0 0
  %3452 = vmatprep.subr.bf16.mxu0 0
  %3453 = vmatpush1.bf16.msra.mxu0 0
  %3454 = vmatprep.subr.bf16.mxu0 0
  %3455 = vmatpush1.bf16.msra.mxu0 0
  %3456 = vmatprep.subr.bf16.mxu0 0
  %3457 = vmatpush1.bf16.msra.mxu0 0
  %3458 = vmatprep.subr.bf16.mxu0 0
  %3459 = vmatpush1.bf16.msra.mxu0 0
  %3460 = vmatprep.subr.bf16.mxu0 0
  %3461 = vmatpush1.bf16.msra.mxu0 0
  %3462 = vmatprep.subr.bf16.mxu0 0
  %3463 = vmatpush1.bf16.msra.mxu0 0
  %3464 = vmatprep.subr.bf16.mxu0 0
  %3465 = vmatpush1.bf16.msra.mxu0 0
  %3466 = vmatprep.subr.bf16.mxu0 0
  %3467 = vmatpush1.bf16.msra.mxu0 0
  %3468 = vmatprep.subr.bf16.mxu0 0
  %3469 = vmatpush1.bf16.msra.mxu0 0
  %3470 = vmatprep.subr.bf16.mxu0 0
  %3471 = vmatpush1.bf16.msra.mxu0 0
  %3472 = vmatprep.subr.bf16.mxu0 0
  %3473 = vmatpush1.bf16.msra.mxu0 0
  %3474 = vmatprep.subr.bf16.mxu0 0
  %3475 = vmatpush1.bf16.msra.mxu0 0
  %3476 = vmatprep.subr.bf16.mxu0 0
  %3477 = vmatpush1.bf16.msra.mxu0 0
  %3478 = vmatprep.mubr.bf16.mxu0 0
  %3479 = vmatmul.mubr.bf16.gmra.mrb[0].mxu0 %v3444
  %v3480 = vpop.f32.mrb[0].mxu0
  %v3481 = vadd.f32 0.0, %v3480
  %v3482 = vpop.f32.mrb[0].mxu0
  %v3483 = vpop.f32.mrb[0].mxu0
  %v3484 = vadd.f32 0.0, %v3483
  %v3485 = vpop.f32.mrb[0].mxu0
  %3486 = vdwg.mxu0
  %v3487 = vadd.f32 %v3424, %v3481
  %v3488 = vadd.f32 %v3425, %v3484
  %s3489 = scalar_lea.vmem %s5, 96
  %v3490 = vld [vmem:[%s3489] sm:$0xf]
  %v3491 = vld [vmem:[%s3489 + $0x4] sm:$0xf]
  %v3492 = vld [vmem:[%s3489 + $0x8] sm:$0xf]
  %v3493 = vld [vmem:[%s3489 + $0xc] sm:$0xf]
  %v3498 = vunpack.c.l.b16 %v3490
  %v3499 = vunpack.c.l.b16 %v3491
  %v3500 = vunpack.c.l.b16 %v3492
  %v3501 = vunpack.c.l.b16 %v3493
  %v3502 = vpack.c.b16 %v3499, %v3498
  %v3503 = vpack.c.b16 %v3501, %v3500
  %v3507 = vsel %vm1750, %v3086, 0
  %3509 = vmatprep.subr.bf16.mxu0 0
  %3510 = vmatpush1.bf16.msra.mxu0 %v3502
  %3511 = vmatprep.subr.bf16.mxu0 0
  %3512 = vmatpush1.bf16.msra.mxu0 %v3503
  %3513 = vmatprep.subr.bf16.mxu0 0
  %3514 = vmatpush1.bf16.msra.mxu0 0
  %3515 = vmatprep.subr.bf16.mxu0 0
  %3516 = vmatpush1.bf16.msra.mxu0 0
  %3517 = vmatprep.subr.bf16.mxu0 0
  %3518 = vmatpush1.bf16.msra.mxu0 0
  %3519 = vmatprep.subr.bf16.mxu0 0
  %3520 = vmatpush1.bf16.msra.mxu0 0
  %3521 = vmatprep.subr.bf16.mxu0 0
  %3522 = vmatpush1.bf16.msra.mxu0 0
  %3523 = vmatprep.subr.bf16.mxu0 0
  %3524 = vmatpush1.bf16.msra.mxu0 0
  %3525 = vmatprep.subr.bf16.mxu0 0
  %3526 = vmatpush1.bf16.msra.mxu0 0
  %3527 = vmatprep.subr.bf16.mxu0 0
  %3528 = vmatpush1.bf16.msra.mxu0 0
  %3529 = vmatprep.subr.bf16.mxu0 0
  %3530 = vmatpush1.bf16.msra.mxu0 0
  %3531 = vmatprep.subr.bf16.mxu0 0
  %3532 = vmatpush1.bf16.msra.mxu0 0
  %3533 = vmatprep.subr.bf16.mxu0 0
  %3534 = vmatpush1.bf16.msra.mxu0 0
  %3535 = vmatprep.subr.bf16.mxu0 0
  %3536 = vmatpush1.bf16.msra.mxu0 0
  %3537 = vmatprep.subr.bf16.mxu0 0
  %3538 = vmatpush1.bf16.msra.mxu0 0
  %3539 = vmatprep.subr.bf16.mxu0 0
  %3540 = vmatpush1.bf16.msra.mxu0 0
  %3541 = vmatprep.mubr.bf16.mxu0 0
  %3542 = vmatmul.mubr.bf16.gmra.mrb[0].mxu0 %v3507
  %v3543 = vpop.f32.mrb[0].mxu0
  %v3544 = vadd.f32 0.0, %v3543
  %v3545 = vpop.f32.mrb[0].mxu0
  %v3546 = vpop.f32.mrb[0].mxu0
  %v3547 = vadd.f32 0.0, %v3546
  %v3548 = vpop.f32.mrb[0].mxu0
  %3549 = vdwg.mxu0
  %v3550 = vadd.f32 %v3487, %v3544
  %v3551 = vadd.f32 %v3488, %v3547
  %s3552 = scalar_lea.vmem %s5, 112
  %v3553 = vld [vmem:[%s3552] sm:$0xf]
  %v3554 = vld [vmem:[%s3552 + $0x4] sm:$0xf]
  %v3555 = vld [vmem:[%s3552 + $0x8] sm:$0xf]
  %v3556 = vld [vmem:[%s3552 + $0xc] sm:$0xf]
  %v3561 = vunpack.c.l.b16 %v3553
  %v3562 = vunpack.c.l.b16 %v3554
  %v3563 = vunpack.c.l.b16 %v3555
  %v3564 = vunpack.c.l.b16 %v3556
  %v3565 = vpack.c.b16 %v3562, %v3561
  %v3566 = vpack.c.b16 %v3564, %v3563
  %v3570 = vsel %vm1750, %v3087, 0
  %3572 = vmatprep.subr.bf16.mxu0 0
  %3573 = vmatpush1.bf16.msra.mxu0 %v3565
  %3574 = vmatprep.subr.bf16.mxu0 0
  %3575 = vmatpush1.bf16.msra.mxu0 %v3566
  %3576 = vmatprep.subr.bf16.mxu0 0
  %3577 = vmatpush1.bf16.msra.mxu0 0
  %3578 = vmatprep.subr.bf16.mxu0 0
  %3579 = vmatpush1.bf16.msra.mxu0 0
  %3580 = vmatprep.subr.bf16.mxu0 0
  %3581 = vmatpush1.bf16.msra.mxu0 0
  %3582 = vmatprep.subr.bf16.mxu0 0
  %3583 = vmatpush1.bf16.msra.mxu0 0
  %3584 = vmatprep.subr.bf16.mxu0 0
  %3585 = vmatpush1.bf16.msra.mxu0 0
  %3586 = vmatprep.subr.bf16.mxu0 0
  %3587 = vmatpush1.bf16.msra.mxu0 0
  %3588 = vmatprep.subr.bf16.mxu0 0
  %3589 = vmatpush1.bf16.msra.mxu0 0
  %3590 = vmatprep.subr.bf16.mxu0 0
  %3591 = vmatpush1.bf16.msra.mxu0 0
  %3592 = vmatprep.subr.bf16.mxu0 0
  %3593 = vmatpush1.bf16.msra.mxu0 0
  %3594 = vmatprep.subr.bf16.mxu0 0
  %3595 = vmatpush1.bf16.msra.mxu0 0
  %3596 = vmatprep.subr.bf16.mxu0 0
  %3597 = vmatpush1.bf16.msra.mxu0 0
  %3598 = vmatprep.subr.bf16.mxu0 0
  %3599 = vmatpush1.bf16.msra.mxu0 0
  %3600 = vmatprep.subr.bf16.mxu0 0
  %3601 = vmatpush1.bf16.msra.mxu0 0
  %3602 = vmatprep.subr.bf16.mxu0 0
  %3603 = vmatpush1.bf16.msra.mxu0 0
  %3604 = vmatprep.mubr.bf16.mxu0 0
  %3605 = vmatmul.mubr.bf16.gmra.mrb[0].mxu0 %v3570
  %v3606 = vpop.f32.mrb[0].mxu0
  %v3607 = vadd.f32 0.0, %v3606
  %v3608 = vpop.f32.mrb[0].mxu0
  %v3609 = vpop.f32.mrb[0].mxu0
  %v3610 = vadd.f32 0.0, %v3609
  %v3611 = vpop.f32.mrb[0].mxu0
  %3612 = vdwg.mxu0
  %v3613 = vadd.f32 %v3550, %v3607
  %v3614 = vadd.f32 %v3551, %v3610
  %s3615 = scalar_lea.vmem %s5, 128
  %v3616 = vld [vmem:[%s3615] sm:$0xf]
  %v3617 = vld [vmem:[%s3615 + $0x4] sm:$0xf]
  %v3618 = vld [vmem:[%s3615 + $0x8] sm:$0xf]
  %v3619 = vld [vmem:[%s3615 + $0xc] sm:$0xf]
  %v3624 = vunpack.c.l.b16 %v3616
  %v3625 = vunpack.c.l.b16 %v3617
  %v3626 = vunpack.c.l.b16 %v3618
  %v3627 = vunpack.c.l.b16 %v3619
  %v3628 = vpack.c.b16 %v3625, %v3624
  %v3629 = vpack.c.b16 %v3627, %v3626
  %v3633 = vsel %vm1750, %v3088, 0
  %3635 = vmatprep.subr.bf16.mxu0 0
  %3636 = vmatpush1.bf16.msra.mxu0 %v3628
  %3637 = vmatprep.subr.bf16.mxu0 0
  %3638 = vmatpush1.bf16.msra.mxu0 %v3629
  %3639 = vmatprep.subr.bf16.mxu0 0
  %3640 = vmatpush1.bf16.msra.mxu0 0
  %3641 = vmatprep.subr.bf16.mxu0 0
  %3642 = vmatpush1.bf16.msra.mxu0 0
  %3643 = vmatprep.subr.bf16.mxu0 0
  %3644 = vmatpush1.bf16.msra.mxu0 0
  %3645 = vmatprep.subr.bf16.mxu0 0
  %3646 = vmatpush1.bf16.msra.mxu0 0
  %3647 = vmatprep.subr.bf16.mxu0 0
  %3648 = vmatpush1.bf16.msra.mxu0 0
  %3649 = vmatprep.subr.bf16.mxu0 0
  %3650 = vmatpush1.bf16.msra.mxu0 0
  %3651 = vmatprep.subr.bf16.mxu0 0
  %3652 = vmatpush1.bf16.msra.mxu0 0
  %3653 = vmatprep.subr.bf16.mxu0 0
  %3654 = vmatpush1.bf16.msra.mxu0 0
  %3655 = vmatprep.subr.bf16.mxu0 0
  %3656 = vmatpush1.bf16.msra.mxu0 0
  %3657 = vmatprep.subr.bf16.mxu0 0
  %3658 = vmatpush1.bf16.msra.mxu0 0
  %3659 = vmatprep.subr.bf16.mxu0 0
  %3660 = vmatpush1.bf16.msra.mxu0 0
  %3661 = vmatprep.subr.bf16.mxu0 0
  %3662 = vmatpush1.bf16.msra.mxu0 0
  %3663 = vmatprep.subr.bf16.mxu0 0
  %3664 = vmatpush1.bf16.msra.mxu0 0
  %3665 = vmatprep.subr.bf16.mxu0 0
  %3666 = vmatpush1.bf16.msra.mxu0 0
  %3667 = vmatprep.mubr.bf16.mxu0 0
  %3668 = vmatmul.mubr.bf16.gmra.mrb[0].mxu0 %v3633
  %v3669 = vpop.f32.mrb[0].mxu0
  %v3670 = vadd.f32 0.0, %v3669
  %v3671 = vpop.f32.mrb[0].mxu0
  %v3672 = vpop.f32.mrb[0].mxu0
  %v3673 = vadd.f32 0.0, %v3672
  %v3674 = vpop.f32.mrb[0].mxu0
  %3675 = vdwg.mxu0
  %v3676 = vadd.f32 %v3613, %v3670
  %v3677 = vadd.f32 %v3614, %v3673
  %s3678 = scalar_lea.vmem %s5, 144
  %v3679 = vld [vmem:[%s3678] sm:$0xf]
  %v3680 = vld [vmem:[%s3678 + $0x4] sm:$0xf]
  %v3681 = vld [vmem:[%s3678 + $0x8] sm:$0xf]
  %v3682 = vld [vmem:[%s3678 + $0xc] sm:$0xf]
  %v3687 = vunpack.c.l.b16 %v3679
  %v3688 = vunpack.c.l.b16 %v3680
  %v3689 = vunpack.c.l.b16 %v3681
  %v3690 = vunpack.c.l.b16 %v3682
  %v3691 = vpack.c.b16 %v3688, %v3687
  %v3692 = vpack.c.b16 %v3690, %v3689
  %v3696 = vsel %vm1750, %v3089, 0
  %3698 = vmatprep.subr.bf16.mxu0 0
  %3699 = vmatpush1.bf16.msra.mxu0 %v3691
  %3700 = vmatprep.subr.bf16.mxu0 0
  %3701 = vmatpush1.bf16.msra.mxu0 %v3692
  %3702 = vmatprep.subr.bf16.mxu0 0
  %3703 = vmatpush1.bf16.msra.mxu0 0
  %3704 = vmatprep.subr.bf16.mxu0 0
  %3705 = vmatpush1.bf16.msra.mxu0 0
  %3706 = vmatprep.subr.bf16.mxu0 0
  %3707 = vmatpush1.bf16.msra.mxu0 0
  %3708 = vmatprep.subr.bf16.mxu0 0
  %3709 = vmatpush1.bf16.msra.mxu0 0
  %3710 = vmatprep.subr.bf16.mxu0 0
  %3711 = vmatpush1.bf16.msra.mxu0 0
  %3712 = vmatprep.subr.bf16.mxu0 0
  %3713 = vmatpush1.bf16.msra.mxu0 0
  %3714 = vmatprep.subr.bf16.mxu0 0
  %3715 = vmatpush1.bf16.msra.mxu0 0
  %3716 = vmatprep.subr.bf16.mxu0 0
  %3717 = vmatpush1.bf16.msra.mxu0 0
  %3718 = vmatprep.subr.bf16.mxu0 0
  %3719 = vmatpush1.bf16.msra.mxu0 0
  %3720 = vmatprep.subr.bf16.mxu0 0
  %3721 = vmatpush1.bf16.msra.mxu0 0
  %3722 = vmatprep.subr.bf16.mxu0 0
  %3723 = vmatpush1.bf16.msra.mxu0 0
  %3724 = vmatprep.subr.bf16.mxu0 0
  %3725 = vmatpush1.bf16.msra.mxu0 0
  %3726 = vmatprep.subr.bf16.mxu0 0
  %3727 = vmatpush1.bf16.msra.mxu0 0
  %3728 = vmatprep.subr.bf16.mxu0 0
  %3729 = vmatpush1.bf16.msra.mxu0 0
  %3730 = vmatprep.mubr.bf16.mxu0 0
  %3731 = vmatmul.mubr.bf16.gmra.mrb[0].mxu0 %v3696
  %v3732 = vpop.f32.mrb[0].mxu0
  %v3733 = vadd.f32 0.0, %v3732
  %v3734 = vpop.f32.mrb[0].mxu0
  %v3735 = vpop.f32.mrb[0].mxu0
  %v3736 = vadd.f32 0.0, %v3735
  %v3737 = vpop.f32.mrb[0].mxu0
  %3738 = vdwg.mxu0
  %v3739 = vadd.f32 %v3676, %v3733
  %v3740 = vadd.f32 %v3677, %v3736
  %s3741 = scalar_lea.vmem %s5, 160
  %v3742 = vld [vmem:[%s3741] sm:$0xf]
  %v3743 = vld [vmem:[%s3741 + $0x4] sm:$0xf]
  %v3744 = vld [vmem:[%s3741 + $0x8] sm:$0xf]
  %v3745 = vld [vmem:[%s3741 + $0xc] sm:$0xf]
  %v3750 = vunpack.c.l.b16 %v3742
  %v3751 = vunpack.c.l.b16 %v3743
  %v3752 = vunpack.c.l.b16 %v3744
  %v3753 = vunpack.c.l.b16 %v3745
  %v3754 = vpack.c.b16 %v3751, %v3750
  %v3755 = vpack.c.b16 %v3753, %v3752
  %v3759 = vsel %vm1750, %v3090, 0
  %3761 = vmatprep.subr.bf16.mxu0 0
  %3762 = vmatpush1.bf16.msra.mxu0 %v3754
  %3763 = vmatprep.subr.bf16.mxu0 0
  %3764 = vmatpush1.bf16.msra.mxu0 %v3755
  %3765 = vmatprep.subr.bf16.mxu0 0
  %3766 = vmatpush1.bf16.msra.mxu0 0
  %3767 = vmatprep.subr.bf16.mxu0 0
  %3768 = vmatpush1.bf16.msra.mxu0 0
  %3769 = vmatprep.subr.bf16.mxu0 0
  %3770 = vmatpush1.bf16.msra.mxu0 0
  %3771 = vmatprep.subr.bf16.mxu0 0
  %3772 = vmatpush1.bf16.msra.mxu0 0
  %3773 = vmatprep.subr.bf16.mxu0 0
  %3774 = vmatpush1.bf16.msra.mxu0 0
  %3775 = vmatprep.subr.bf16.mxu0 0
  %3776 = vmatpush1.bf16.msra.mxu0 0
  %3777 = vmatprep.subr.bf16.mxu0 0
  %3778 = vmatpush1.bf16.msra.mxu0 0
  %3779 = vmatprep.subr.bf16.mxu0 0
  %3780 = vmatpush1.bf16.msra.mxu0 0
  %3781 = vmatprep.subr.bf16.mxu0 0
  %3782 = vmatpush1.bf16.msra.mxu0 0
  %3783 = vmatprep.subr.bf16.mxu0 0
  %3784 = vmatpush1.bf16.msra.mxu0 0
  %3785 = vmatprep.subr.bf16.mxu0 0
  %3786 = vmatpush1.bf16.msra.mxu0 0
  %3787 = vmatprep.subr.bf16.mxu0 0
  %3788 = vmatpush1.bf16.msra.mxu0 0
  %3789 = vmatprep.subr.bf16.mxu0 0
  %3790 = vmatpush1.bf16.msra.mxu0 0
  %3791 = vmatprep.subr.bf16.mxu0 0
  %3792 = vmatpush1.bf16.msra.mxu0 0
  %3793 = vmatprep.mubr.bf16.mxu0 0
  %3794 = vmatmul.mubr.bf16.gmra.mrb[0].mxu0 %v3759
  %v3795 = vpop.f32.mrb[0].mxu0
  %v3796 = vadd.f32 0.0, %v3795
  %v3797 = vpop.f32.mrb[0].mxu0
  %v3798 = vpop.f32.mrb[0].mxu0
  %v3799 = vadd.f32 0.0, %v3798
  %v3800 = vpop.f32.mrb[0].mxu0
  %3801 = vdwg.mxu0
  %v3802 = vadd.f32 %v3739, %v3796
  %v3803 = vadd.f32 %v3740, %v3799
  %s3804 = scalar_lea.vmem %s5, 176
  %v3805 = vld [vmem:[%s3804] sm:$0xf]
  %v3806 = vld [vmem:[%s3804 + $0x4] sm:$0xf]
  %v3807 = vld [vmem:[%s3804 + $0x8] sm:$0xf]
  %v3808 = vld [vmem:[%s3804 + $0xc] sm:$0xf]
  %v3813 = vunpack.c.l.b16 %v3805
  %v3814 = vunpack.c.l.b16 %v3806
  %v3815 = vunpack.c.l.b16 %v3807
  %v3816 = vunpack.c.l.b16 %v3808
  %v3817 = vpack.c.b16 %v3814, %v3813
  %v3818 = vpack.c.b16 %v3816, %v3815
  %v3822 = vsel %vm1750, %v3091, 0
  %3824 = vmatprep.subr.bf16.mxu0 0
  %3825 = vmatpush1.bf16.msra.mxu0 %v3817
  %3826 = vmatprep.subr.bf16.mxu0 0
  %3827 = vmatpush1.bf16.msra.mxu0 %v3818
  %3828 = vmatprep.subr.bf16.mxu0 0
  %3829 = vmatpush1.bf16.msra.mxu0 0
  %3830 = vmatprep.subr.bf16.mxu0 0
  %3831 = vmatpush1.bf16.msra.mxu0 0
  %3832 = vmatprep.subr.bf16.mxu0 0
  %3833 = vmatpush1.bf16.msra.mxu0 0
  %3834 = vmatprep.subr.bf16.mxu0 0
  %3835 = vmatpush1.bf16.msra.mxu0 0
  %3836 = vmatprep.subr.bf16.mxu0 0
  %3837 = vmatpush1.bf16.msra.mxu0 0
  %3838 = vmatprep.subr.bf16.mxu0 0
  %3839 = vmatpush1.bf16.msra.mxu0 0
  %3840 = vmatprep.subr.bf16.mxu0 0
  %3841 = vmatpush1.bf16.msra.mxu0 0
  %3842 = vmatprep.subr.bf16.mxu0 0
  %3843 = vmatpush1.bf16.msra.mxu0 0
  %3844 = vmatprep.subr.bf16.mxu0 0
  %3845 = vmatpush1.bf16.msra.mxu0 0
  %3846 = vmatprep.subr.bf16.mxu0 0
  %3847 = vmatpush1.bf16.msra.mxu0 0
  %3848 = vmatprep.subr.bf16.mxu0 0
  %3849 = vmatpush1.bf16.msra.mxu0 0
  %3850 = vmatprep.subr.bf16.mxu0 0
  %3851 = vmatpush1.bf16.msra.mxu0 0
  %3852 = vmatprep.subr.bf16.mxu0 0
  %3853 = vmatpush1.bf16.msra.mxu0 0
  %3854 = vmatprep.subr.bf16.mxu0 0
  %3855 = vmatpush1.bf16.msra.mxu0 0
  %3856 = vmatprep.mubr.bf16.mxu0 0
  %3857 = vmatmul.mubr.bf16.gmra.mrb[0].mxu0 %v3822
  %v3858 = vpop.f32.mrb[0].mxu0
  %v3859 = vadd.f32 0.0, %v3858
  %v3860 = vpop.f32.mrb[0].mxu0
  %v3861 = vpop.f32.mrb[0].mxu0
  %v3862 = vadd.f32 0.0, %v3861
  %v3863 = vpop.f32.mrb[0].mxu0
  %3864 = vdwg.mxu0
  %v3865 = vadd.f32 %v3802, %v3859
  %v3866 = vadd.f32 %v3803, %v3862
  %s3867 = scalar_lea.vmem %s5, 192
  %v3868 = vld [vmem:[%s3867] sm:$0xf]
  %v3869 = vld [vmem:[%s3867 + $0x4] sm:$0xf]
  %v3870 = vld [vmem:[%s3867 + $0x8] sm:$0xf]
  %v3871 = vld [vmem:[%s3867 + $0xc] sm:$0xf]
  %v3876 = vunpack.c.l.b16 %v3868
  %v3877 = vunpack.c.l.b16 %v3869
  %v3878 = vunpack.c.l.b16 %v3870
  %v3879 = vunpack.c.l.b16 %v3871
  %v3880 = vpack.c.b16 %v3877, %v3876
  %v3881 = vpack.c.b16 %v3879, %v3878
  %v3885 = vsel %vm1750, %v3092, 0
  %3887 = vmatprep.subr.bf16.mxu0 0
  %3888 = vmatpush1.bf16.msra.mxu0 %v3880
  %3889 = vmatprep.subr.bf16.mxu0 0
  %3890 = vmatpush1.bf16.msra.mxu0 %v3881
  %3891 = vmatprep.subr.bf16.mxu0 0
  %3892 = vmatpush1.bf16.msra.mxu0 0
  %3893 = vmatprep.subr.bf16.mxu0 0
  %3894 = vmatpush1.bf16.msra.mxu0 0
  %3895 = vmatprep.subr.bf16.mxu0 0
  %3896 = vmatpush1.bf16.msra.mxu0 0
  %3897 = vmatprep.subr.bf16.mxu0 0
  %3898 = vmatpush1.bf16.msra.mxu0 0
  %3899 = vmatprep.subr.bf16.mxu0 0
  %3900 = vmatpush1.bf16.msra.mxu0 0
  %3901 = vmatprep.subr.bf16.mxu0 0
  %3902 = vmatpush1.bf16.msra.mxu0 0
  %3903 = vmatprep.subr.bf16.mxu0 0
  %3904 = vmatpush1.bf16.msra.mxu0 0
  %3905 = vmatprep.subr.bf16.mxu0 0
  %3906 = vmatpush1.bf16.msra.mxu0 0
  %3907 = vmatprep.subr.bf16.mxu0 0
  %3908 = vmatpush1.bf16.msra.mxu0 0
  %3909 = vmatprep.subr.bf16.mxu0 0
  %3910 = vmatpush1.bf16.msra.mxu0 0
  %3911 = vmatprep.subr.bf16.mxu0 0
  %3912 = vmatpush1.bf16.msra.mxu0 0
  %3913 = vmatprep.subr.bf16.mxu0 0
  %3914 = vmatpush1.bf16.msra.mxu0 0
  %3915 = vmatprep.subr.bf16.mxu0 0
  %3916 = vmatpush1.bf16.msra.mxu0 0
  %3917 = vmatprep.subr.bf16.mxu0 0
  %3918 = vmatpush1.bf16.msra.mxu0 0
  %3919 = vmatprep.mubr.bf16.mxu0 0
  %3920 = vmatmul.mubr.bf16.gmra.mrb[0].mxu0 %v3885
  %v3921 = vpop.f32.mrb[0].mxu0
  %v3922 = vadd.f32 0.0, %v3921
  %v3923 = vpop.f32.mrb[0].mxu0
  %v3924 = vpop.f32.mrb[0].mxu0
  %v3925 = vadd.f32 0.0, %v3924
  %v3926 = vpop.f32.mrb[0].mxu0
  %3927 = vdwg.mxu0
  %v3928 = vadd.f32 %v3865, %v3922
  %v3929 = vadd.f32 %v3866, %v3925
  %s3930 = scalar_lea.vmem %s5, 208
  %v3931 = vld [vmem:[%s3930] sm:$0xf]
  %v3932 = vld [vmem:[%s3930 + $0x4] sm:$0xf]
  %v3933 = vld [vmem:[%s3930 + $0x8] sm:$0xf]
  %v3934 = vld [vmem:[%s3930 + $0xc] sm:$0xf]
  %v3939 = vunpack.c.l.b16 %v3931
  %v3940 = vunpack.c.l.b16 %v3932
  %v3941 = vunpack.c.l.b16 %v3933
  %v3942 = vunpack.c.l.b16 %v3934
  %v3943 = vpack.c.b16 %v3940, %v3939
  %v3944 = vpack.c.b16 %v3942, %v3941
  %v3948 = vsel %vm1750, %v3093, 0
  %3950 = vmatprep.subr.bf16.mxu0 0
  %3951 = vmatpush1.bf16.msra.mxu0 %v3943
  %3952 = vmatprep.subr.bf16.mxu0 0
  %3953 = vmatpush1.bf16.msra.mxu0 %v3944
  %3954 = vmatprep.subr.bf16.mxu0 0
  %3955 = vmatpush1.bf16.msra.mxu0 0
  %3956 = vmatprep.subr.bf16.mxu0 0
  %3957 = vmatpush1.bf16.msra.mxu0 0
  %3958 = vmatprep.subr.bf16.mxu0 0
  %3959 = vmatpush1.bf16.msra.mxu0 0
  %3960 = vmatprep.subr.bf16.mxu0 0
  %3961 = vmatpush1.bf16.msra.mxu0 0
  %3962 = vmatprep.subr.bf16.mxu0 0
  %3963 = vmatpush1.bf16.msra.mxu0 0
  %3964 = vmatprep.subr.bf16.mxu0 0
  %3965 = vmatpush1.bf16.msra.mxu0 0
  %3966 = vmatprep.subr.bf16.mxu0 0
  %3967 = vmatpush1.bf16.msra.mxu0 0
  %3968 = vmatprep.subr.bf16.mxu0 0
  %3969 = vmatpush1.bf16.msra.mxu0 0
  %3970 = vmatprep.subr.bf16.mxu0 0
  %3971 = vmatpush1.bf16.msra.mxu0 0
  %3972 = vmatprep.subr.bf16.mxu0 0
  %3973 = vmatpush1.bf16.msra.mxu0 0
  %3974 = vmatprep.subr.bf16.mxu0 0
  %3975 = vmatpush1.bf16.msra.mxu0 0
  %3976 = vmatprep.subr.bf16.mxu0 0
  %3977 = vmatpush1.bf16.msra.mxu0 0
  %3978 = vmatprep.subr.bf16.mxu0 0
  %3979 = vmatpush1.bf16.msra.mxu0 0
  %3980 = vmatprep.subr.bf16.mxu0 0
  %3981 = vmatpush1.bf16.msra.mxu0 0
  %3982 = vmatprep.mubr.bf16.mxu0 0
  %3983 = vmatmul.mubr.bf16.gmra.mrb[0].mxu0 %v3948
  %v3984 = vpop.f32.mrb[0].mxu0
  %v3985 = vadd.f32 0.0, %v3984
  %v3986 = vpop.f32.mrb[0].mxu0
  %v3987 = vpop.f32.mrb[0].mxu0
  %v3988 = vadd.f32 0.0, %v3987
  %v3989 = vpop.f32.mrb[0].mxu0
  %3990 = vdwg.mxu0
  %v3991 = vadd.f32 %v3928, %v3985
  %v3992 = vadd.f32 %v3929, %v3988
  %s3993 = scalar_lea.vmem %s5, 224
  %v3994 = vld [vmem:[%s3993] sm:$0xf]
  %v3995 = vld [vmem:[%s3993 + $0x4] sm:$0xf]
  %v3996 = vld [vmem:[%s3993 + $0x8] sm:$0xf]
  %v3997 = vld [vmem:[%s3993 + $0xc] sm:$0xf]
  %v4002 = vunpack.c.l.b16 %v3994
  %v4003 = vunpack.c.l.b16 %v3995
  %v4004 = vunpack.c.l.b16 %v3996
  %v4005 = vunpack.c.l.b16 %v3997
  %v4006 = vpack.c.b16 %v4003, %v4002
  %v4007 = vpack.c.b16 %v4005, %v4004
  %v4011 = vsel %vm1750, %v3094, 0
  %4013 = vmatprep.subr.bf16.mxu0 0
  %4014 = vmatpush1.bf16.msra.mxu0 %v4006
  %4015 = vmatprep.subr.bf16.mxu0 0
  %4016 = vmatpush1.bf16.msra.mxu0 %v4007
  %4017 = vmatprep.subr.bf16.mxu0 0
  %4018 = vmatpush1.bf16.msra.mxu0 0
  %4019 = vmatprep.subr.bf16.mxu0 0
  %4020 = vmatpush1.bf16.msra.mxu0 0
  %4021 = vmatprep.subr.bf16.mxu0 0
  %4022 = vmatpush1.bf16.msra.mxu0 0
  %4023 = vmatprep.subr.bf16.mxu0 0
  %4024 = vmatpush1.bf16.msra.mxu0 0
  %4025 = vmatprep.subr.bf16.mxu0 0
  %4026 = vmatpush1.bf16.msra.mxu0 0
  %4027 = vmatprep.subr.bf16.mxu0 0
  %4028 = vmatpush1.bf16.msra.mxu0 0
  %4029 = vmatprep.subr.bf16.mxu0 0
  %4030 = vmatpush1.bf16.msra.mxu0 0
  %4031 = vmatprep.subr.bf16.mxu0 0
  %4032 = vmatpush1.bf16.msra.mxu0 0
  %4033 = vmatprep.subr.bf16.mxu0 0
  %4034 = vmatpush1.bf16.msra.mxu0 0
  %4035 = vmatprep.subr.bf16.mxu0 0
  %4036 = vmatpush1.bf16.msra.mxu0 0
  %4037 = vmatprep.subr.bf16.mxu0 0
  %4038 = vmatpush1.bf16.msra.mxu0 0
  %4039 = vmatprep.subr.bf16.mxu0 0
  %4040 = vmatpush1.bf16.msra.mxu0 0
  %4041 = vmatprep.subr.bf16.mxu0 0
  %4042 = vmatpush1.bf16.msra.mxu0 0
  %4043 = vmatprep.subr.bf16.mxu0 0
  %4044 = vmatpush1.bf16.msra.mxu0 0
  %4045 = vmatprep.mubr.bf16.mxu0 0
  %4046 = vmatmul.mubr.bf16.gmra.mrb[0].mxu0 %v4011
  %v4047 = vpop.f32.mrb[0].mxu0
  %v4048 = vadd.f32 0.0, %v4047
  %v4049 = vpop.f32.mrb[0].mxu0
  %v4050 = vpop.f32.mrb[0].mxu0
  %v4051 = vadd.f32 0.0, %v4050
  %v4052 = vpop.f32.mrb[0].mxu0
  %4053 = vdwg.mxu0
  %v4054 = vadd.f32 %v3991, %v4048
  %v4055 = vadd.f32 %v3992, %v4051
  %s4056 = scalar_lea.vmem %s5, 240
  %v4057 = vld [vmem:[%s4056] sm:$0xf]
  %v4058 = vld [vmem:[%s4056 + $0x4] sm:$0xf]
  %v4059 = vld [vmem:[%s4056 + $0x8] sm:$0xf]
  %v4060 = vld [vmem:[%s4056 + $0xc] sm:$0xf]
  %v4065 = vunpack.c.l.b16 %v4057
  %v4066 = vunpack.c.l.b16 %v4058
  %v4067 = vunpack.c.l.b16 %v4059
  %v4068 = vunpack.c.l.b16 %v4060
  %v4069 = vpack.c.b16 %v4066, %v4065
  %v4070 = vpack.c.b16 %v4068, %v4067
  %v4074 = vsel %vm1750, %v3095, 0
  %4076 = vmatprep.subr.bf16.mxu0 0
  %4077 = vmatpush1.bf16.msra.mxu0 %v4069
  %4078 = vmatprep.subr.bf16.mxu0 0
  %4079 = vmatpush1.bf16.msra.mxu0 %v4070
  %4080 = vmatprep.subr.bf16.mxu0 0
  %4081 = vmatpush1.bf16.msra.mxu0 0
  %4082 = vmatprep.subr.bf16.mxu0 0
  %4083 = vmatpush1.bf16.msra.mxu0 0
  %4084 = vmatprep.subr.bf16.mxu0 0
  %4085 = vmatpush1.bf16.msra.mxu0 0
  %4086 = vmatprep.subr.bf16.mxu0 0
  %4087 = vmatpush1.bf16.msra.mxu0 0
  %4088 = vmatprep.subr.bf16.mxu0 0
  %4089 = vmatpush1.bf16.msra.mxu0 0
  %4090 = vmatprep.subr.bf16.mxu0 0
  %4091 = vmatpush1.bf16.msra.mxu0 0
  %4092 = vmatprep.subr.bf16.mxu0 0
  %4093 = vmatpush1.bf16.msra.mxu0 0
  %4094 = vmatprep.subr.bf16.mxu0 0
  %4095 = vmatpush1.bf16.msra.mxu0 0
  %4096 = vmatprep.subr.bf16.mxu0 0
  %4097 = vmatpush1.bf16.msra.mxu0 0
  %4098 = vmatprep.subr.bf16.mxu0 0
  %4099 = vmatpush1.bf16.msra.mxu0 0
  %4100 = vmatprep.subr.bf16.mxu0 0
  %4101 = vmatpush1.bf16.msra.mxu0 0
  %4102 = vmatprep.subr.bf16.mxu0 0
  %4103 = vmatpush1.bf16.msra.mxu0 0
  %4104 = vmatprep.subr.bf16.mxu0 0
  %4105 = vmatpush1.bf16.msra.mxu0 0
  %4106 = vmatprep.subr.bf16.mxu0 0
  %4107 = vmatpush1.bf16.msra.mxu0 0
  %4108 = vmatprep.mubr.bf16.mxu0 0
  %4109 = vmatmul.mubr.bf16.gmra.mrb[0].mxu0 %v4074
  %v4110 = vpop.f32.mrb[0].mxu0
  %v4111 = vadd.f32 0.0, %v4110
  %v4112 = vpop.f32.mrb[0].mxu0
  %v4113 = vpop.f32.mrb[0].mxu0
  %v4114 = vadd.f32 0.0, %v4113
  %v4115 = vpop.f32.mrb[0].mxu0
  %4116 = vdwg.mxu0
  %v4117 = vadd.f32 %v4054, %v4111
  %v4118 = vadd.f32 %v4055, %v4114
  %s4119 = scalar_lea.vmem %s5, 256
  %v4120 = vld [vmem:[%s4119] sm:$0xf]
  %v4121 = vld [vmem:[%s4119 + $0x4] sm:$0xf]
  %v4122 = vld [vmem:[%s4119 + $0x8] sm:$0xf]
  %v4123 = vld [vmem:[%s4119 + $0xc] sm:$0xf]
  %v4128 = vunpack.c.l.b16 %v4120
  %v4129 = vunpack.c.l.b16 %v4121
  %v4130 = vunpack.c.l.b16 %v4122
  %v4131 = vunpack.c.l.b16 %v4123
  %v4132 = vpack.c.b16 %v4129, %v4128
  %v4133 = vpack.c.b16 %v4131, %v4130
  %v4137 = vsel %vm1750, %v3096, 0
  %4139 = vmatprep.subr.bf16.mxu0 0
  %4140 = vmatpush1.bf16.msra.mxu0 %v4132
  %4141 = vmatprep.subr.bf16.mxu0 0
  %4142 = vmatpush1.bf16.msra.mxu0 %v4133
  %4143 = vmatprep.subr.bf16.mxu0 0
  %4144 = vmatpush1.bf16.msra.mxu0 0
  %4145 = vmatprep.subr.bf16.mxu0 0
  %4146 = vmatpush1.bf16.msra.mxu0 0
  %4147 = vmatprep.subr.bf16.mxu0 0
  %4148 = vmatpush1.bf16.msra.mxu0 0
  %4149 = vmatprep.subr.bf16.mxu0 0
  %4150 = vmatpush1.bf16.msra.mxu0 0
  %4151 = vmatprep.subr.bf16.mxu0 0
  %4152 = vmatpush1.bf16.msra.mxu0 0
  %4153 = vmatprep.subr.bf16.mxu0 0
  %4154 = vmatpush1.bf16.msra.mxu0 0
  %4155 = vmatprep.subr.bf16.mxu0 0
  %4156 = vmatpush1.bf16.msra.mxu0 0
  %4157 = vmatprep.subr.bf16.mxu0 0
  %4158 = vmatpush1.bf16.msra.mxu0 0
  %4159 = vmatprep.subr.bf16.mxu0 0
  %4160 = vmatpush1.bf16.msra.mxu0 0
  %4161 = vmatprep.subr.bf16.mxu0 0
  %4162 = vmatpush1.bf16.msra.mxu0 0
  %4163 = vmatprep.subr.bf16.mxu0 0
  %4164 = vmatpush1.bf16.msra.mxu0 0
  %4165 = vmatprep.subr.bf16.mxu0 0
  %4166 = vmatpush1.bf16.msra.mxu0 0
  %4167 = vmatprep.subr.bf16.mxu0 0
  %4168 = vmatpush1.bf16.msra.mxu0 0
  %4169 = vmatprep.subr.bf16.mxu0 0
  %4170 = vmatpush1.bf16.msra.mxu0 0
  %4171 = vmatprep.mubr.bf16.mxu0 0
  %4172 = vmatmul.mubr.bf16.gmra.mrb[0].mxu0 %v4137
  %v4173 = vpop.f32.mrb[0].mxu0
  %v4174 = vadd.f32 0.0, %v4173
  %v4175 = vpop.f32.mrb[0].mxu0
  %v4176 = vpop.f32.mrb[0].mxu0
  %v4177 = vadd.f32 0.0, %v4176
  %v4178 = vpop.f32.mrb[0].mxu0
  %4179 = vdwg.mxu0
  %v4180 = vadd.f32 %v4117, %v4174
  %v4181 = vadd.f32 %v4118, %v4177
  %s4182 = scalar_lea.vmem %s5, 272
  %v4183 = vld [vmem:[%s4182] sm:$0xf]
  %v4184 = vld [vmem:[%s4182 + $0x4] sm:$0xf]
  %v4185 = vld [vmem:[%s4182 + $0x8] sm:$0xf]
  %v4186 = vld [vmem:[%s4182 + $0xc] sm:$0xf]
  %v4191 = vunpack.c.l.b16 %v4183
  %v4192 = vunpack.c.l.b16 %v4184
  %v4193 = vunpack.c.l.b16 %v4185
  %v4194 = vunpack.c.l.b16 %v4186
  %v4195 = vpack.c.b16 %v4192, %v4191
  %v4196 = vpack.c.b16 %v4194, %v4193
  %v4200 = vsel %vm1750, %v3097, 0
  %4202 = vmatprep.subr.bf16.mxu0 0
  %4203 = vmatpush1.bf16.msra.mxu0 %v4195
  %4204 = vmatprep.subr.bf16.mxu0 0
  %4205 = vmatpush1.bf16.msra.mxu0 %v4196
  %4206 = vmatprep.subr.bf16.mxu0 0
  %4207 = vmatpush1.bf16.msra.mxu0 0
  %4208 = vmatprep.subr.bf16.mxu0 0
  %4209 = vmatpush1.bf16.msra.mxu0 0
  %4210 = vmatprep.subr.bf16.mxu0 0
  %4211 = vmatpush1.bf16.msra.mxu0 0
  %4212 = vmatprep.subr.bf16.mxu0 0
  %4213 = vmatpush1.bf16.msra.mxu0 0
  %4214 = vmatprep.subr.bf16.mxu0 0
  %4215 = vmatpush1.bf16.msra.mxu0 0
  %4216 = vmatprep.subr.bf16.mxu0 0
  %4217 = vmatpush1.bf16.msra.mxu0 0
  %4218 = vmatprep.subr.bf16.mxu0 0
  %4219 = vmatpush1.bf16.msra.mxu0 0
  %4220 = vmatprep.subr.bf16.mxu0 0
  %4221 = vmatpush1.bf16.msra.mxu0 0
  %4222 = vmatprep.subr.bf16.mxu0 0
  %4223 = vmatpush1.bf16.msra.mxu0 0
  %4224 = vmatprep.subr.bf16.mxu0 0
  %4225 = vmatpush1.bf16.msra.mxu0 0
  %4226 = vmatprep.subr.bf16.mxu0 0
  %4227 = vmatpush1.bf16.msra.mxu0 0
  %4228 = vmatprep.subr.bf16.mxu0 0
  %4229 = vmatpush1.bf16.msra.mxu0 0
  %4230 = vmatprep.subr.bf16.mxu0 0
  %4231 = vmatpush1.bf16.msra.mxu0 0
  %4232 = vmatprep.subr.bf16.mxu0 0
  %4233 = vmatpush1.bf16.msra.mxu0 0
  %4234 = vmatprep.mubr.bf16.mxu0 0
  %4235 = vmatmul.mubr.bf16.gmra.mrb[0].mxu0 %v4200
  %v4236 = vpop.f32.mrb[0].mxu0
  %v4237 = vadd.f32 0.0, %v4236
  %v4238 = vpop.f32.mrb[0].mxu0
  %v4239 = vpop.f32.mrb[0].mxu0
  %v4240 = vadd.f32 0.0, %v4239
  %v4241 = vpop.f32.mrb[0].mxu0
  %4242 = vdwg.mxu0
  %v4243 = vadd.f32 %v4180, %v4237
  %v4244 = vadd.f32 %v4181, %v4240
  %s4245 = scalar_lea.vmem %s5, 288
  %v4246 = vld [vmem:[%s4245] sm:$0xf]
  %v4247 = vld [vmem:[%s4245 + $0x4] sm:$0xf]
  %v4248 = vld [vmem:[%s4245 + $0x8] sm:$0xf]
  %v4249 = vld [vmem:[%s4245 + $0xc] sm:$0xf]
  %v4254 = vunpack.c.l.b16 %v4246
  %v4255 = vunpack.c.l.b16 %v4247
  %v4256 = vunpack.c.l.b16 %v4248
  %v4257 = vunpack.c.l.b16 %v4249
  %v4258 = vpack.c.b16 %v4255, %v4254
  %v4259 = vpack.c.b16 %v4257, %v4256
  %v4263 = vsel %vm1750, %v3098, 0
  %4265 = vmatprep.subr.bf16.mxu0 0
  %4266 = vmatpush1.bf16.msra.mxu0 %v4258
  %4267 = vmatprep.subr.bf16.mxu0 0
  %4268 = vmatpush1.bf16.msra.mxu0 %v4259
  %4269 = vmatprep.subr.bf16.mxu0 0
  %4270 = vmatpush1.bf16.msra.mxu0 0
  %4271 = vmatprep.subr.bf16.mxu0 0
  %4272 = vmatpush1.bf16.msra.mxu0 0
  %4273 = vmatprep.subr.bf16.mxu0 0
  %4274 = vmatpush1.bf16.msra.mxu0 0
  %4275 = vmatprep.subr.bf16.mxu0 0
  %4276 = vmatpush1.bf16.msra.mxu0 0
  %4277 = vmatprep.subr.bf16.mxu0 0
  %4278 = vmatpush1.bf16.msra.mxu0 0
  %4279 = vmatprep.subr.bf16.mxu0 0
  %4280 = vmatpush1.bf16.msra.mxu0 0
  %4281 = vmatprep.subr.bf16.mxu0 0
  %4282 = vmatpush1.bf16.msra.mxu0 0
  %4283 = vmatprep.subr.bf16.mxu0 0
  %4284 = vmatpush1.bf16.msra.mxu0 0
  %4285 = vmatprep.subr.bf16.mxu0 0
  %4286 = vmatpush1.bf16.msra.mxu0 0
  %4287 = vmatprep.subr.bf16.mxu0 0
  %4288 = vmatpush1.bf16.msra.mxu0 0
  %4289 = vmatprep.subr.bf16.mxu0 0
  %4290 = vmatpush1.bf16.msra.mxu0 0
  %4291 = vmatprep.subr.bf16.mxu0 0
  %4292 = vmatpush1.bf16.msra.mxu0 0
  %4293 = vmatprep.subr.bf16.mxu0 0
  %4294 = vmatpush1.bf16.msra.mxu0 0
  %4295 = vmatprep.subr.bf16.mxu0 0
  %4296 = vmatpush1.bf16.msra.mxu0 0
  %4297 = vmatprep.mubr.bf16.mxu0 0
  %4298 = vmatmul.mubr.bf16.gmra.mrb[0].mxu0 %v4263
  %v4299 = vpop.f32.mrb[0].mxu0
  %v4300 = vadd.f32 0.0, %v4299
  %v4301 = vpop.f32.mrb[0].mxu0
  %v4302 = vpop.f32.mrb[0].mxu0
  %v4303 = vadd.f32 0.0, %v4302
  %v4304 = vpop.f32.mrb[0].mxu0
  %4305 = vdwg.mxu0
  %v4306 = vadd.f32 %v4243, %v4300
  %v4307 = vadd.f32 %v4244, %v4303
  %s4308 = scalar_lea.vmem %s5, 304
  %v4309 = vld [vmem:[%s4308] sm:$0xf]
  %v4310 = vld [vmem:[%s4308 + $0x4] sm:$0xf]
  %v4311 = vld [vmem:[%s4308 + $0x8] sm:$0xf]
  %v4312 = vld [vmem:[%s4308 + $0xc] sm:$0xf]
  %v4317 = vunpack.c.l.b16 %v4309
  %v4318 = vunpack.c.l.b16 %v4310
  %v4319 = vunpack.c.l.b16 %v4311
  %v4320 = vunpack.c.l.b16 %v4312
  %v4321 = vpack.c.b16 %v4318, %v4317
  %v4322 = vpack.c.b16 %v4320, %v4319
  %v4326 = vsel %vm1750, %v3099, 0
  %4328 = vmatprep.subr.bf16.mxu0 0
  %4329 = vmatpush1.bf16.msra.mxu0 %v4321
  %4330 = vmatprep.subr.bf16.mxu0 0
  %4331 = vmatpush1.bf16.msra.mxu0 %v4322
  %4332 = vmatprep.subr.bf16.mxu0 0
  %4333 = vmatpush1.bf16.msra.mxu0 0
  %4334 = vmatprep.subr.bf16.mxu0 0
  %4335 = vmatpush1.bf16.msra.mxu0 0
  %4336 = vmatprep.subr.bf16.mxu0 0
  %4337 = vmatpush1.bf16.msra.mxu0 0
  %4338 = vmatprep.subr.bf16.mxu0 0
  %4339 = vmatpush1.bf16.msra.mxu0 0
  %4340 = vmatprep.subr.bf16.mxu0 0
  %4341 = vmatpush1.bf16.msra.mxu0 0
  %4342 = vmatprep.subr.bf16.mxu0 0
  %4343 = vmatpush1.bf16.msra.mxu0 0
  %4344 = vmatprep.subr.bf16.mxu0 0
  %4345 = vmatpush1.bf16.msra.mxu0 0
  %4346 = vmatprep.subr.bf16.mxu0 0
  %4347 = vmatpush1.bf16.msra.mxu0 0
  %4348 = vmatprep.subr.bf16.mxu0 0
  %4349 = vmatpush1.bf16.msra.mxu0 0
  %4350 = vmatprep.subr.bf16.mxu0 0
  %4351 = vmatpush1.bf16.msra.mxu0 0
  %4352 = vmatprep.subr.bf16.mxu0 0
  %4353 = vmatpush1.bf16.msra.mxu0 0
  %4354 = vmatprep.subr.bf16.mxu0 0
  %4355 = vmatpush1.bf16.msra.mxu0 0
  %4356 = vmatprep.subr.bf16.mxu0 0
  %4357 = vmatpush1.bf16.msra.mxu0 0
  %4358 = vmatprep.subr.bf16.mxu0 0
  %4359 = vmatpush1.bf16.msra.mxu0 0
  %4360 = vmatprep.mubr.bf16.mxu0 0
  %4361 = vmatmul.mubr.bf16.gmra.mrb[0].mxu0 %v4326
  %v4362 = vpop.f32.mrb[0].mxu0
  %v4363 = vadd.f32 0.0, %v4362
  %v4364 = vpop.f32.mrb[0].mxu0
  %v4365 = vpop.f32.mrb[0].mxu0
  %v4366 = vadd.f32 0.0, %v4365
  %v4367 = vpop.f32.mrb[0].mxu0
  %4368 = vdwg.mxu0
  %v4369 = vadd.f32 %v4306, %v4363
  %v4370 = vadd.f32 %v4307, %v4366
  %s4371 = scalar_lea.vmem %s5, 320
  %v4372 = vld [vmem:[%s4371] sm:$0xf]
  %v4373 = vld [vmem:[%s4371 + $0x4] sm:$0xf]
  %v4374 = vld [vmem:[%s4371 + $0x8] sm:$0xf]
  %v4375 = vld [vmem:[%s4371 + $0xc] sm:$0xf]
  %v4380 = vunpack.c.l.b16 %v4372
  %v4381 = vunpack.c.l.b16 %v4373
  %v4382 = vunpack.c.l.b16 %v4374
  %v4383 = vunpack.c.l.b16 %v4375
  %v4384 = vpack.c.b16 %v4381, %v4380
  %v4385 = vpack.c.b16 %v4383, %v4382
  %v4389 = vsel %vm1750, %v3100, 0
  %4391 = vmatprep.subr.bf16.mxu0 0
  %4392 = vmatpush1.bf16.msra.mxu0 %v4384
  %4393 = vmatprep.subr.bf16.mxu0 0
  %4394 = vmatpush1.bf16.msra.mxu0 %v4385
  %4395 = vmatprep.subr.bf16.mxu0 0
  %4396 = vmatpush1.bf16.msra.mxu0 0
  %4397 = vmatprep.subr.bf16.mxu0 0
  %4398 = vmatpush1.bf16.msra.mxu0 0
  %4399 = vmatprep.subr.bf16.mxu0 0
  %4400 = vmatpush1.bf16.msra.mxu0 0
  %4401 = vmatprep.subr.bf16.mxu0 0
  %4402 = vmatpush1.bf16.msra.mxu0 0
  %4403 = vmatprep.subr.bf16.mxu0 0
  %4404 = vmatpush1.bf16.msra.mxu0 0
  %4405 = vmatprep.subr.bf16.mxu0 0
  %4406 = vmatpush1.bf16.msra.mxu0 0
  %4407 = vmatprep.subr.bf16.mxu0 0
  %4408 = vmatpush1.bf16.msra.mxu0 0
  %4409 = vmatprep.subr.bf16.mxu0 0
  %4410 = vmatpush1.bf16.msra.mxu0 0
  %4411 = vmatprep.subr.bf16.mxu0 0
  %4412 = vmatpush1.bf16.msra.mxu0 0
  %4413 = vmatprep.subr.bf16.mxu0 0
  %4414 = vmatpush1.bf16.msra.mxu0 0
  %4415 = vmatprep.subr.bf16.mxu0 0
  %4416 = vmatpush1.bf16.msra.mxu0 0
  %4417 = vmatprep.subr.bf16.mxu0 0
  %4418 = vmatpush1.bf16.msra.mxu0 0
  %4419 = vmatprep.subr.bf16.mxu0 0
  %4420 = vmatpush1.bf16.msra.mxu0 0
  %4421 = vmatprep.subr.bf16.mxu0 0
  %4422 = vmatpush1.bf16.msra.mxu0 0
  %4423 = vmatprep.mubr.bf16.mxu0 0
  %4424 = vmatmul.mubr.bf16.gmra.mrb[0].mxu0 %v4389
  %v4425 = vpop.f32.mrb[0].mxu0
  %v4426 = vadd.f32 0.0, %v4425
  %v4427 = vpop.f32.mrb[0].mxu0
  %v4428 = vpop.f32.mrb[0].mxu0
  %v4429 = vadd.f32 0.0, %v4428
  %v4430 = vpop.f32.mrb[0].mxu0
  %4431 = vdwg.mxu0
  %v4432 = vadd.f32 %v4369, %v4426
  %v4433 = vadd.f32 %v4370, %v4429
  %s4434 = scalar_lea.vmem %s5, 336
  %v4435 = vld [vmem:[%s4434] sm:$0xf]
  %v4436 = vld [vmem:[%s4434 + $0x4] sm:$0xf]
  %v4437 = vld [vmem:[%s4434 + $0x8] sm:$0xf]
  %v4438 = vld [vmem:[%s4434 + $0xc] sm:$0xf]
  %v4443 = vunpack.c.l.b16 %v4435
  %v4444 = vunpack.c.l.b16 %v4436
  %v4445 = vunpack.c.l.b16 %v4437
  %v4446 = vunpack.c.l.b16 %v4438
  %v4447 = vpack.c.b16 %v4444, %v4443
  %v4448 = vpack.c.b16 %v4446, %v4445
  %v4452 = vsel %vm1750, %v3101, 0
  %4454 = vmatprep.subr.bf16.mxu0 0
  %4455 = vmatpush1.bf16.msra.mxu0 %v4447
  %4456 = vmatprep.subr.bf16.mxu0 0
  %4457 = vmatpush1.bf16.msra.mxu0 %v4448
  %4458 = vmatprep.subr.bf16.mxu0 0
  %4459 = vmatpush1.bf16.msra.mxu0 0
  %4460 = vmatprep.subr.bf16.mxu0 0
  %4461 = vmatpush1.bf16.msra.mxu0 0
  %4462 = vmatprep.subr.bf16.mxu0 0
  %4463 = vmatpush1.bf16.msra.mxu0 0
  %4464 = vmatprep.subr.bf16.mxu0 0
  %4465 = vmatpush1.bf16.msra.mxu0 0
  %4466 = vmatprep.subr.bf16.mxu0 0
  %4467 = vmatpush1.bf16.msra.mxu0 0
  %4468 = vmatprep.subr.bf16.mxu0 0
  %4469 = vmatpush1.bf16.msra.mxu0 0
  %4470 = vmatprep.subr.bf16.mxu0 0
  %4471 = vmatpush1.bf16.msra.mxu0 0
  %4472 = vmatprep.subr.bf16.mxu0 0
  %4473 = vmatpush1.bf16.msra.mxu0 0
  %4474 = vmatprep.subr.bf16.mxu0 0
  %4475 = vmatpush1.bf16.msra.mxu0 0
  %4476 = vmatprep.subr.bf16.mxu0 0
  %4477 = vmatpush1.bf16.msra.mxu0 0
  %4478 = vmatprep.subr.bf16.mxu0 0
  %4479 = vmatpush1.bf16.msra.mxu0 0
  %4480 = vmatprep.subr.bf16.mxu0 0
  %4481 = vmatpush1.bf16.msra.mxu0 0
  %4482 = vmatprep.subr.bf16.mxu0 0
  %4483 = vmatpush1.bf16.msra.mxu0 0
  %4484 = vmatprep.subr.bf16.mxu0 0
  %4485 = vmatpush1.bf16.msra.mxu0 0
  %4486 = vmatprep.mubr.bf16.mxu0 0
  %4487 = vmatmul.mubr.bf16.gmra.mrb[0].mxu0 %v4452
  %v4488 = vpop.f32.mrb[0].mxu0
  %v4489 = vadd.f32 0.0, %v4488
  %v4490 = vpop.f32.mrb[0].mxu0
  %v4491 = vpop.f32.mrb[0].mxu0
  %v4492 = vadd.f32 0.0, %v4491
  %v4493 = vpop.f32.mrb[0].mxu0
  %4494 = vdwg.mxu0
  %v4495 = vadd.f32 %v4432, %v4489
  %v4496 = vadd.f32 %v4433, %v4492
  %s4497 = scalar_lea.vmem %s5, 352
  %v4498 = vld [vmem:[%s4497] sm:$0xf]
  %v4499 = vld [vmem:[%s4497 + $0x4] sm:$0xf]
  %v4500 = vld [vmem:[%s4497 + $0x8] sm:$0xf]
  %v4501 = vld [vmem:[%s4497 + $0xc] sm:$0xf]
  %v4506 = vunpack.c.l.b16 %v4498
  %v4507 = vunpack.c.l.b16 %v4499
  %v4508 = vunpack.c.l.b16 %v4500
  %v4509 = vunpack.c.l.b16 %v4501
  %v4510 = vpack.c.b16 %v4507, %v4506
  %v4511 = vpack.c.b16 %v4509, %v4508
  %v4515 = vsel %vm1750, %v3102, 0
  %4517 = vmatprep.subr.bf16.mxu0 0
  %4518 = vmatpush1.bf16.msra.mxu0 %v4510
  %4519 = vmatprep.subr.bf16.mxu0 0
  %4520 = vmatpush1.bf16.msra.mxu0 %v4511
  %4521 = vmatprep.subr.bf16.mxu0 0
  %4522 = vmatpush1.bf16.msra.mxu0 0
  %4523 = vmatprep.subr.bf16.mxu0 0
  %4524 = vmatpush1.bf16.msra.mxu0 0
  %4525 = vmatprep.subr.bf16.mxu0 0
  %4526 = vmatpush1.bf16.msra.mxu0 0
  %4527 = vmatprep.subr.bf16.mxu0 0
  %4528 = vmatpush1.bf16.msra.mxu0 0
  %4529 = vmatprep.subr.bf16.mxu0 0
  %4530 = vmatpush1.bf16.msra.mxu0 0
  %4531 = vmatprep.subr.bf16.mxu0 0
  %4532 = vmatpush1.bf16.msra.mxu0 0
  %4533 = vmatprep.subr.bf16.mxu0 0
  %4534 = vmatpush1.bf16.msra.mxu0 0
  %4535 = vmatprep.subr.bf16.mxu0 0
  %4536 = vmatpush1.bf16.msra.mxu0 0
  %4537 = vmatprep.subr.bf16.mxu0 0
  %4538 = vmatpush1.bf16.msra.mxu0 0
  %4539 = vmatprep.subr.bf16.mxu0 0
  %4540 = vmatpush1.bf16.msra.mxu0 0
  %4541 = vmatprep.subr.bf16.mxu0 0
  %4542 = vmatpush1.bf16.msra.mxu0 0
  %4543 = vmatprep.subr.bf16.mxu0 0
  %4544 = vmatpush1.bf16.msra.mxu0 0
  %4545 = vmatprep.subr.bf16.mxu0 0
  %4546 = vmatpush1.bf16.msra.mxu0 0
  %4547 = vmatprep.subr.bf16.mxu0 0
  %4548 = vmatpush1.bf16.msra.mxu0 0
  %4549 = vmatprep.mubr.bf16.mxu0 0
  %4550 = vmatmul.mubr.bf16.gmra.mrb[0].mxu0 %v4515
  %v4551 = vpop.f32.mrb[0].mxu0
  %v4552 = vadd.f32 0.0, %v4551
  %v4553 = vpop.f32.mrb[0].mxu0
  %v4554 = vpop.f32.mrb[0].mxu0
  %v4555 = vadd.f32 0.0, %v4554
  %v4556 = vpop.f32.mrb[0].mxu0
  %4557 = vdwg.mxu0
  %v4558 = vadd.f32 %v4495, %v4552
  %v4559 = vadd.f32 %v4496, %v4555
  %s4560 = scalar_lea.vmem %s5, 368
  %v4561 = vld [vmem:[%s4560] sm:$0xf]
  %v4562 = vld [vmem:[%s4560 + $0x4] sm:$0xf]
  %v4563 = vld [vmem:[%s4560 + $0x8] sm:$0xf]
  %v4564 = vld [vmem:[%s4560 + $0xc] sm:$0xf]
  %v4569 = vunpack.c.l.b16 %v4561
  %v4570 = vunpack.c.l.b16 %v4562
  %v4571 = vunpack.c.l.b16 %v4563
  %v4572 = vunpack.c.l.b16 %v4564
  %v4573 = vpack.c.b16 %v4570, %v4569
  %v4574 = vpack.c.b16 %v4572, %v4571
  %v4578 = vsel %vm1750, %v3103, 0
  %4580 = vmatprep.subr.bf16.mxu0 0
  %4581 = vmatpush1.bf16.msra.mxu0 %v4573
  %4582 = vmatprep.subr.bf16.mxu0 0
  %4583 = vmatpush1.bf16.msra.mxu0 %v4574
  %4584 = vmatprep.subr.bf16.mxu0 0
  %4585 = vmatpush1.bf16.msra.mxu0 0
  %4586 = vmatprep.subr.bf16.mxu0 0
  %4587 = vmatpush1.bf16.msra.mxu0 0
  %4588 = vmatprep.subr.bf16.mxu0 0
  %4589 = vmatpush1.bf16.msra.mxu0 0
  %4590 = vmatprep.subr.bf16.mxu0 0
  %4591 = vmatpush1.bf16.msra.mxu0 0
  %4592 = vmatprep.subr.bf16.mxu0 0
  %4593 = vmatpush1.bf16.msra.mxu0 0
  %4594 = vmatprep.subr.bf16.mxu0 0
  %4595 = vmatpush1.bf16.msra.mxu0 0
  %4596 = vmatprep.subr.bf16.mxu0 0
  %4597 = vmatpush1.bf16.msra.mxu0 0
  %4598 = vmatprep.subr.bf16.mxu0 0
  %4599 = vmatpush1.bf16.msra.mxu0 0
  %4600 = vmatprep.subr.bf16.mxu0 0
  %4601 = vmatpush1.bf16.msra.mxu0 0
  %4602 = vmatprep.subr.bf16.mxu0 0
  %4603 = vmatpush1.bf16.msra.mxu0 0
  %4604 = vmatprep.subr.bf16.mxu0 0
  %4605 = vmatpush1.bf16.msra.mxu0 0
  %4606 = vmatprep.subr.bf16.mxu0 0
  %4607 = vmatpush1.bf16.msra.mxu0 0
  %4608 = vmatprep.subr.bf16.mxu0 0
  %4609 = vmatpush1.bf16.msra.mxu0 0
  %4610 = vmatprep.subr.bf16.mxu0 0
  %4611 = vmatpush1.bf16.msra.mxu0 0
  %4612 = vmatprep.mubr.bf16.mxu0 0
  %4613 = vmatmul.mubr.bf16.gmra.mrb[0].mxu0 %v4578
  %v4614 = vpop.f32.mrb[0].mxu0
  %v4615 = vadd.f32 0.0, %v4614
  %v4616 = vpop.f32.mrb[0].mxu0
  %v4617 = vpop.f32.mrb[0].mxu0
  %v4618 = vadd.f32 0.0, %v4617
  %v4619 = vpop.f32.mrb[0].mxu0
  %4620 = vdwg.mxu0
  %v4621 = vadd.f32 %v4558, %v4615
  %v4622 = vadd.f32 %v4559, %v4618
  %s4623 = scalar_lea.vmem %s5, 384
  %v4624 = vld [vmem:[%s4623] sm:$0xf]
  %v4625 = vld [vmem:[%s4623 + $0x4] sm:$0xf]
  %v4626 = vld [vmem:[%s4623 + $0x8] sm:$0xf]
  %v4627 = vld [vmem:[%s4623 + $0xc] sm:$0xf]
  %v4632 = vunpack.c.l.b16 %v4624
  %v4633 = vunpack.c.l.b16 %v4625
  %v4634 = vunpack.c.l.b16 %v4626
  %v4635 = vunpack.c.l.b16 %v4627
  %v4636 = vpack.c.b16 %v4633, %v4632
  %v4637 = vpack.c.b16 %v4635, %v4634
  %v4641 = vsel %vm1750, %v3104, 0
  %4643 = vmatprep.subr.bf16.mxu0 0
  %4644 = vmatpush1.bf16.msra.mxu0 %v4636
  %4645 = vmatprep.subr.bf16.mxu0 0
  %4646 = vmatpush1.bf16.msra.mxu0 %v4637
  %4647 = vmatprep.subr.bf16.mxu0 0
  %4648 = vmatpush1.bf16.msra.mxu0 0
  %4649 = vmatprep.subr.bf16.mxu0 0
  %4650 = vmatpush1.bf16.msra.mxu0 0
  %4651 = vmatprep.subr.bf16.mxu0 0
  %4652 = vmatpush1.bf16.msra.mxu0 0
  %4653 = vmatprep.subr.bf16.mxu0 0
  %4654 = vmatpush1.bf16.msra.mxu0 0
  %4655 = vmatprep.subr.bf16.mxu0 0
  %4656 = vmatpush1.bf16.msra.mxu0 0
  %4657 = vmatprep.subr.bf16.mxu0 0
  %4658 = vmatpush1.bf16.msra.mxu0 0
  %4659 = vmatprep.subr.bf16.mxu0 0
  %4660 = vmatpush1.bf16.msra.mxu0 0
  %4661 = vmatprep.subr.bf16.mxu0 0
  %4662 = vmatpush1.bf16.msra.mxu0 0
  %4663 = vmatprep.subr.bf16.mxu0 0
  %4664 = vmatpush1.bf16.msra.mxu0 0
  %4665 = vmatprep.subr.bf16.mxu0 0
  %4666 = vmatpush1.bf16.msra.mxu0 0
  %4667 = vmatprep.subr.bf16.mxu0 0
  %4668 = vmatpush1.bf16.msra.mxu0 0
  %4669 = vmatprep.subr.bf16.mxu0 0
  %4670 = vmatpush1.bf16.msra.mxu0 0
  %4671 = vmatprep.subr.bf16.mxu0 0
  %4672 = vmatpush1.bf16.msra.mxu0 0
  %4673 = vmatprep.subr.bf16.mxu0 0
  %4674 = vmatpush1.bf16.msra.mxu0 0
  %4675 = vmatprep.mubr.bf16.mxu0 0
  %4676 = vmatmul.mubr.bf16.gmra.mrb[0].mxu0 %v4641
  %v4677 = vpop.f32.mrb[0].mxu0
  %v4678 = vadd.f32 0.0, %v4677
  %v4679 = vpop.f32.mrb[0].mxu0
  %v4680 = vpop.f32.mrb[0].mxu0
  %v4681 = vadd.f32 0.0, %v4680
  %v4682 = vpop.f32.mrb[0].mxu0
  %4683 = vdwg.mxu0
  %v4684 = vadd.f32 %v4621, %v4678
  %v4685 = vadd.f32 %v4622, %v4681
  %s4686 = scalar_lea.vmem %s5, 400
  %v4687 = vld [vmem:[%s4686] sm:$0xf]
  %v4688 = vld [vmem:[%s4686 + $0x4] sm:$0xf]
  %v4689 = vld [vmem:[%s4686 + $0x8] sm:$0xf]
  %v4690 = vld [vmem:[%s4686 + $0xc] sm:$0xf]
  %v4695 = vunpack.c.l.b16 %v4687
  %v4696 = vunpack.c.l.b16 %v4688
  %v4697 = vunpack.c.l.b16 %v4689
  %v4698 = vunpack.c.l.b16 %v4690
  %v4699 = vpack.c.b16 %v4696, %v4695
  %v4700 = vpack.c.b16 %v4698, %v4697
  %v4704 = vsel %vm1750, %v3105, 0
  %4706 = vmatprep.subr.bf16.mxu0 0
  %4707 = vmatpush1.bf16.msra.mxu0 %v4699
  %4708 = vmatprep.subr.bf16.mxu0 0
  %4709 = vmatpush1.bf16.msra.mxu0 %v4700
  %4710 = vmatprep.subr.bf16.mxu0 0
  %4711 = vmatpush1.bf16.msra.mxu0 0
  %4712 = vmatprep.subr.bf16.mxu0 0
  %4713 = vmatpush1.bf16.msra.mxu0 0
  %4714 = vmatprep.subr.bf16.mxu0 0
  %4715 = vmatpush1.bf16.msra.mxu0 0
  %4716 = vmatprep.subr.bf16.mxu0 0
  %4717 = vmatpush1.bf16.msra.mxu0 0
  %4718 = vmatprep.subr.bf16.mxu0 0
  %4719 = vmatpush1.bf16.msra.mxu0 0
  %4720 = vmatprep.subr.bf16.mxu0 0
  %4721 = vmatpush1.bf16.msra.mxu0 0
  %4722 = vmatprep.subr.bf16.mxu0 0
  %4723 = vmatpush1.bf16.msra.mxu0 0
  %4724 = vmatprep.subr.bf16.mxu0 0
  %4725 = vmatpush1.bf16.msra.mxu0 0
  %4726 = vmatprep.subr.bf16.mxu0 0
  %4727 = vmatpush1.bf16.msra.mxu0 0
  %4728 = vmatprep.subr.bf16.mxu0 0
  %4729 = vmatpush1.bf16.msra.mxu0 0
  %4730 = vmatprep.subr.bf16.mxu0 0
  %4731 = vmatpush1.bf16.msra.mxu0 0
  %4732 = vmatprep.subr.bf16.mxu0 0
  %4733 = vmatpush1.bf16.msra.mxu0 0
  %4734 = vmatprep.subr.bf16.mxu0 0
  %4735 = vmatpush1.bf16.msra.mxu0 0
  %4736 = vmatprep.subr.bf16.mxu0 0
  %4737 = vmatpush1.bf16.msra.mxu0 0
  %4738 = vmatprep.mubr.bf16.mxu0 0
  %4739 = vmatmul.mubr.bf16.gmra.mrb[0].mxu0 %v4704
  %v4740 = vpop.f32.mrb[0].mxu0
  %v4741 = vadd.f32 0.0, %v4740
  %v4742 = vpop.f32.mrb[0].mxu0
  %v4743 = vpop.f32.mrb[0].mxu0
  %v4744 = vadd.f32 0.0, %v4743
  %v4745 = vpop.f32.mrb[0].mxu0
  %4746 = vdwg.mxu0
  %v4747 = vadd.f32 %v4684, %v4741
  %v4748 = vadd.f32 %v4685, %v4744
  %s4749 = scalar_lea.vmem %s5, 416
  %v4750 = vld [vmem:[%s4749] sm:$0xf]
  %v4751 = vld [vmem:[%s4749 + $0x4] sm:$0xf]
  %v4752 = vld [vmem:[%s4749 + $0x8] sm:$0xf]
  %v4753 = vld [vmem:[%s4749 + $0xc] sm:$0xf]
  %v4758 = vunpack.c.l.b16 %v4750
  %v4759 = vunpack.c.l.b16 %v4751
  %v4760 = vunpack.c.l.b16 %v4752
  %v4761 = vunpack.c.l.b16 %v4753
  %v4762 = vpack.c.b16 %v4759, %v4758
  %v4763 = vpack.c.b16 %v4761, %v4760
  %v4767 = vsel %vm1750, %v3106, 0
  %4769 = vmatprep.subr.bf16.mxu0 0
  %4770 = vmatpush1.bf16.msra.mxu0 %v4762
  %4771 = vmatprep.subr.bf16.mxu0 0
  %4772 = vmatpush1.bf16.msra.mxu0 %v4763
  %4773 = vmatprep.subr.bf16.mxu0 0
  %4774 = vmatpush1.bf16.msra.mxu0 0
  %4775 = vmatprep.subr.bf16.mxu0 0
  %4776 = vmatpush1.bf16.msra.mxu0 0
  %4777 = vmatprep.subr.bf16.mxu0 0
  %4778 = vmatpush1.bf16.msra.mxu0 0
  %4779 = vmatprep.subr.bf16.mxu0 0
  %4780 = vmatpush1.bf16.msra.mxu0 0
  %4781 = vmatprep.subr.bf16.mxu0 0
  %4782 = vmatpush1.bf16.msra.mxu0 0
  %4783 = vmatprep.subr.bf16.mxu0 0
  %4784 = vmatpush1.bf16.msra.mxu0 0
  %4785 = vmatprep.subr.bf16.mxu0 0
  %4786 = vmatpush1.bf16.msra.mxu0 0
  %4787 = vmatprep.subr.bf16.mxu0 0
  %4788 = vmatpush1.bf16.msra.mxu0 0
  %4789 = vmatprep.subr.bf16.mxu0 0
  %4790 = vmatpush1.bf16.msra.mxu0 0
  %4791 = vmatprep.subr.bf16.mxu0 0
  %4792 = vmatpush1.bf16.msra.mxu0 0
  %4793 = vmatprep.subr.bf16.mxu0 0
  %4794 = vmatpush1.bf16.msra.mxu0 0
  %4795 = vmatprep.subr.bf16.mxu0 0
  %4796 = vmatpush1.bf16.msra.mxu0 0
  %4797 = vmatprep.subr.bf16.mxu0 0
  %4798 = vmatpush1.bf16.msra.mxu0 0
  %4799 = vmatprep.subr.bf16.mxu0 0
  %4800 = vmatpush1.bf16.msra.mxu0 0
  %4801 = vmatprep.mubr.bf16.mxu0 0
  %4802 = vmatmul.mubr.bf16.gmra.mrb[0].mxu0 %v4767
  %v4803 = vpop.f32.mrb[0].mxu0
  %v4804 = vadd.f32 0.0, %v4803
  %v4805 = vpop.f32.mrb[0].mxu0
  %v4806 = vpop.f32.mrb[0].mxu0
  %v4807 = vadd.f32 0.0, %v4806
  %v4808 = vpop.f32.mrb[0].mxu0
  %4809 = vdwg.mxu0
  %v4810 = vadd.f32 %v4747, %v4804
  %v4811 = vadd.f32 %v4748, %v4807
  %s4812 = scalar_lea.vmem %s5, 432
  %v4813 = vld [vmem:[%s4812] sm:$0xf]
  %v4814 = vld [vmem:[%s4812 + $0x4] sm:$0xf]
  %v4815 = vld [vmem:[%s4812 + $0x8] sm:$0xf]
  %v4816 = vld [vmem:[%s4812 + $0xc] sm:$0xf]
  %v4821 = vunpack.c.l.b16 %v4813
  %v4822 = vunpack.c.l.b16 %v4814
  %v4823 = vunpack.c.l.b16 %v4815
  %v4824 = vunpack.c.l.b16 %v4816
  %v4825 = vpack.c.b16 %v4822, %v4821
  %v4826 = vpack.c.b16 %v4824, %v4823
  %v4830 = vsel %vm1750, %v3107, 0
  %4832 = vmatprep.subr.bf16.mxu0 0
  %4833 = vmatpush1.bf16.msra.mxu0 %v4825
  %4834 = vmatprep.subr.bf16.mxu0 0
  %4835 = vmatpush1.bf16.msra.mxu0 %v4826
  %4836 = vmatprep.subr.bf16.mxu0 0
  %4837 = vmatpush1.bf16.msra.mxu0 0
  %4838 = vmatprep.subr.bf16.mxu0 0
  %4839 = vmatpush1.bf16.msra.mxu0 0
  %4840 = vmatprep.subr.bf16.mxu0 0
  %4841 = vmatpush1.bf16.msra.mxu0 0
  %4842 = vmatprep.subr.bf16.mxu0 0
  %4843 = vmatpush1.bf16.msra.mxu0 0
  %4844 = vmatprep.subr.bf16.mxu0 0
  %4845 = vmatpush1.bf16.msra.mxu0 0
  %4846 = vmatprep.subr.bf16.mxu0 0
  %4847 = vmatpush1.bf16.msra.mxu0 0
  %4848 = vmatprep.subr.bf16.mxu0 0
  %4849 = vmatpush1.bf16.msra.mxu0 0
  %4850 = vmatprep.subr.bf16.mxu0 0
  %4851 = vmatpush1.bf16.msra.mxu0 0
  %4852 = vmatprep.subr.bf16.mxu0 0
  %4853 = vmatpush1.bf16.msra.mxu0 0
  %4854 = vmatprep.subr.bf16.mxu0 0
  %4855 = vmatpush1.bf16.msra.mxu0 0
  %4856 = vmatprep.subr.bf16.mxu0 0
  %4857 = vmatpush1.bf16.msra.mxu0 0
  %4858 = vmatprep.subr.bf16.mxu0 0
  %4859 = vmatpush1.bf16.msra.mxu0 0
  %4860 = vmatprep.subr.bf16.mxu0 0
  %4861 = vmatpush1.bf16.msra.mxu0 0
  %4862 = vmatprep.subr.bf16.mxu0 0
  %4863 = vmatpush1.bf16.msra.mxu0 0
  %4864 = vmatprep.mubr.bf16.mxu0 0
  %4865 = vmatmul.mubr.bf16.gmra.mrb[0].mxu0 %v4830
  %v4866 = vpop.f32.mrb[0].mxu0
  %v4867 = vadd.f32 0.0, %v4866
  %v4868 = vpop.f32.mrb[0].mxu0
  %v4869 = vpop.f32.mrb[0].mxu0
  %v4870 = vadd.f32 0.0, %v4869
  %v4871 = vpop.f32.mrb[0].mxu0
  %4872 = vdwg.mxu0
  %v4873 = vadd.f32 %v4810, %v4867
  %v4874 = vadd.f32 %v4811, %v4870
  %s4875 = scalar_lea.vmem %s5, 448
  %v4876 = vld [vmem:[%s4875] sm:$0xf]
  %v4877 = vld [vmem:[%s4875 + $0x4] sm:$0xf]
  %v4878 = vld [vmem:[%s4875 + $0x8] sm:$0xf]
  %v4879 = vld [vmem:[%s4875 + $0xc] sm:$0xf]
  %v4884 = vunpack.c.l.b16 %v4876
  %v4885 = vunpack.c.l.b16 %v4877
  %v4886 = vunpack.c.l.b16 %v4878
  %v4887 = vunpack.c.l.b16 %v4879
  %v4888 = vpack.c.b16 %v4885, %v4884
  %v4889 = vpack.c.b16 %v4887, %v4886
  %v4893 = vsel %vm1750, %v3108, 0
  %4895 = vmatprep.subr.bf16.mxu0 0
  %4896 = vmatpush1.bf16.msra.mxu0 %v4888
  %4897 = vmatprep.subr.bf16.mxu0 0
  %4898 = vmatpush1.bf16.msra.mxu0 %v4889
  %4899 = vmatprep.subr.bf16.mxu0 0
  %4900 = vmatpush1.bf16.msra.mxu0 0
  %4901 = vmatprep.subr.bf16.mxu0 0
  %4902 = vmatpush1.bf16.msra.mxu0 0
  %4903 = vmatprep.subr.bf16.mxu0 0
  %4904 = vmatpush1.bf16.msra.mxu0 0
  %4905 = vmatprep.subr.bf16.mxu0 0
  %4906 = vmatpush1.bf16.msra.mxu0 0
  %4907 = vmatprep.subr.bf16.mxu0 0
  %4908 = vmatpush1.bf16.msra.mxu0 0
  %4909 = vmatprep.subr.bf16.mxu0 0
  %4910 = vmatpush1.bf16.msra.mxu0 0
  %4911 = vmatprep.subr.bf16.mxu0 0
  %4912 = vmatpush1.bf16.msra.mxu0 0
  %4913 = vmatprep.subr.bf16.mxu0 0
  %4914 = vmatpush1.bf16.msra.mxu0 0
  %4915 = vmatprep.subr.bf16.mxu0 0
  %4916 = vmatpush1.bf16.msra.mxu0 0
  %4917 = vmatprep.subr.bf16.mxu0 0
  %4918 = vmatpush1.bf16.msra.mxu0 0
  %4919 = vmatprep.subr.bf16.mxu0 0
  %4920 = vmatpush1.bf16.msra.mxu0 0
  %4921 = vmatprep.subr.bf16.mxu0 0
  %4922 = vmatpush1.bf16.msra.mxu0 0
  %4923 = vmatprep.subr.bf16.mxu0 0
  %4924 = vmatpush1.bf16.msra.mxu0 0
  %4925 = vmatprep.subr.bf16.mxu0 0
  %4926 = vmatpush1.bf16.msra.mxu0 0
  %4927 = vmatprep.mubr.bf16.mxu0 0
  %4928 = vmatmul.mubr.bf16.gmra.mrb[0].mxu0 %v4893
  %v4929 = vpop.f32.mrb[0].mxu0
  %v4930 = vadd.f32 0.0, %v4929
  %v4931 = vpop.f32.mrb[0].mxu0
  %v4932 = vpop.f32.mrb[0].mxu0
  %v4933 = vadd.f32 0.0, %v4932
  %v4934 = vpop.f32.mrb[0].mxu0
  %4935 = vdwg.mxu0
  %v4936 = vadd.f32 %v4873, %v4930
  %v4937 = vadd.f32 %v4874, %v4933
  %s4938 = scalar_lea.vmem %s5, 464
  %v4939 = vld [vmem:[%s4938] sm:$0xf]
  %v4940 = vld [vmem:[%s4938 + $0x4] sm:$0xf]
  %v4941 = vld [vmem:[%s4938 + $0x8] sm:$0xf]
  %v4942 = vld [vmem:[%s4938 + $0xc] sm:$0xf]
  %v4947 = vunpack.c.l.b16 %v4939
  %v4948 = vunpack.c.l.b16 %v4940
  %v4949 = vunpack.c.l.b16 %v4941
  %v4950 = vunpack.c.l.b16 %v4942
  %v4951 = vpack.c.b16 %v4948, %v4947
  %v4952 = vpack.c.b16 %v4950, %v4949
  %v4956 = vsel %vm1750, %v3109, 0
  %4958 = vmatprep.subr.bf16.mxu0 0
  %4959 = vmatpush1.bf16.msra.mxu0 %v4951
  %4960 = vmatprep.subr.bf16.mxu0 0
  %4961 = vmatpush1.bf16.msra.mxu0 %v4952
  %4962 = vmatprep.subr.bf16.mxu0 0
  %4963 = vmatpush1.bf16.msra.mxu0 0
  %4964 = vmatprep.subr.bf16.mxu0 0
  %4965 = vmatpush1.bf16.msra.mxu0 0
  %4966 = vmatprep.subr.bf16.mxu0 0
  %4967 = vmatpush1.bf16.msra.mxu0 0
  %4968 = vmatprep.subr.bf16.mxu0 0
  %4969 = vmatpush1.bf16.msra.mxu0 0
  %4970 = vmatprep.subr.bf16.mxu0 0
  %4971 = vmatpush1.bf16.msra.mxu0 0
  %4972 = vmatprep.subr.bf16.mxu0 0
  %4973 = vmatpush1.bf16.msra.mxu0 0
  %4974 = vmatprep.subr.bf16.mxu0 0
  %4975 = vmatpush1.bf16.msra.mxu0 0
  %4976 = vmatprep.subr.bf16.mxu0 0
  %4977 = vmatpush1.bf16.msra.mxu0 0
  %4978 = vmatprep.subr.bf16.mxu0 0
  %4979 = vmatpush1.bf16.msra.mxu0 0
  %4980 = vmatprep.subr.bf16.mxu0 0
  %4981 = vmatpush1.bf16.msra.mxu0 0
  %4982 = vmatprep.subr.bf16.mxu0 0
  %4983 = vmatpush1.bf16.msra.mxu0 0
  %4984 = vmatprep.subr.bf16.mxu0 0
  %4985 = vmatpush1.bf16.msra.mxu0 0
  %4986 = vmatprep.subr.bf16.mxu0 0
  %4987 = vmatpush1.bf16.msra.mxu0 0
  %4988 = vmatprep.subr.bf16.mxu0 0
  %4989 = vmatpush1.bf16.msra.mxu0 0
  %4990 = vmatprep.mubr.bf16.mxu0 0
  %4991 = vmatmul.mubr.bf16.gmra.mrb[0].mxu0 %v4956
  %v4992 = vpop.f32.mrb[0].mxu0
  %v4993 = vadd.f32 0.0, %v4992
  %v4994 = vpop.f32.mrb[0].mxu0
  %v4995 = vpop.f32.mrb[0].mxu0
  %v4996 = vadd.f32 0.0, %v4995
  %v4997 = vpop.f32.mrb[0].mxu0
  %4998 = vdwg.mxu0
  %v4999 = vadd.f32 %v4936, %v4993
  %v5000 = vadd.f32 %v4937, %v4996
  %s5001 = scalar_lea.vmem %s5, 480
  %v5002 = vld [vmem:[%s5001] sm:$0xf]
  %v5003 = vld [vmem:[%s5001 + $0x4] sm:$0xf]
  %v5004 = vld [vmem:[%s5001 + $0x8] sm:$0xf]
  %v5005 = vld [vmem:[%s5001 + $0xc] sm:$0xf]
  %v5010 = vunpack.c.l.b16 %v5002
  %v5011 = vunpack.c.l.b16 %v5003
  %v5012 = vunpack.c.l.b16 %v5004
  %v5013 = vunpack.c.l.b16 %v5005
  %v5014 = vpack.c.b16 %v5011, %v5010
  %v5015 = vpack.c.b16 %v5013, %v5012
  %v5019 = vsel %vm1750, %v3110, 0
  %5021 = vmatprep.subr.bf16.mxu0 0
  %5022 = vmatpush1.bf16.msra.mxu0 %v5014
  %5023 = vmatprep.subr.bf16.mxu0 0
  %5024 = vmatpush1.bf16.msra.mxu0 %v5015
  %5025 = vmatprep.subr.bf16.mxu0 0
  %5026 = vmatpush1.bf16.msra.mxu0 0
  %5027 = vmatprep.subr.bf16.mxu0 0
  %5028 = vmatpush1.bf16.msra.mxu0 0
  %5029 = vmatprep.subr.bf16.mxu0 0
  %5030 = vmatpush1.bf16.msra.mxu0 0
  %5031 = vmatprep.subr.bf16.mxu0 0
  %5032 = vmatpush1.bf16.msra.mxu0 0
  %5033 = vmatprep.subr.bf16.mxu0 0
  %5034 = vmatpush1.bf16.msra.mxu0 0
  %5035 = vmatprep.subr.bf16.mxu0 0
  %5036 = vmatpush1.bf16.msra.mxu0 0
  %5037 = vmatprep.subr.bf16.mxu0 0
  %5038 = vmatpush1.bf16.msra.mxu0 0
  %5039 = vmatprep.subr.bf16.mxu0 0
  %5040 = vmatpush1.bf16.msra.mxu0 0
  %5041 = vmatprep.subr.bf16.mxu0 0
  %5042 = vmatpush1.bf16.msra.mxu0 0
  %5043 = vmatprep.subr.bf16.mxu0 0
  %5044 = vmatpush1.bf16.msra.mxu0 0
  %5045 = vmatprep.subr.bf16.mxu0 0
  %5046 = vmatpush1.bf16.msra.mxu0 0
  %5047 = vmatprep.subr.bf16.mxu0 0
  %5048 = vmatpush1.bf16.msra.mxu0 0
  %5049 = vmatprep.subr.bf16.mxu0 0
  %5050 = vmatpush1.bf16.msra.mxu0 0
  %5051 = vmatprep.subr.bf16.mxu0 0
  %5052 = vmatpush1.bf16.msra.mxu0 0
  %5053 = vmatprep.mubr.bf16.mxu0 0
  %5054 = vmatmul.mubr.bf16.gmra.mrb[0].mxu0 %v5019
  %v5055 = vpop.f32.mrb[0].mxu0
  %v5056 = vadd.f32 0.0, %v5055
  %v5057 = vpop.f32.mrb[0].mxu0
  %v5058 = vpop.f32.mrb[0].mxu0
  %v5059 = vadd.f32 0.0, %v5058
  %v5060 = vpop.f32.mrb[0].mxu0
  %5061 = vdwg.mxu0
  %v5062 = vadd.f32 %v4999, %v5056
  %v5063 = vadd.f32 %v5000, %v5059
  %s5064 = scalar_lea.vmem %s5, 496
  %v5065 = vld [vmem:[%s5064] sm:$0xf]
  %v5066 = vld [vmem:[%s5064 + $0x4] sm:$0xf]
  %v5067 = vld [vmem:[%s5064 + $0x8] sm:$0xf]
  %v5068 = vld [vmem:[%s5064 + $0xc] sm:$0xf]
  %v5073 = vunpack.c.l.b16 %v5065
  %v5074 = vunpack.c.l.b16 %v5066
  %v5075 = vunpack.c.l.b16 %v5067
  %v5076 = vunpack.c.l.b16 %v5068
  %v5077 = vpack.c.b16 %v5074, %v5073
  %v5078 = vpack.c.b16 %v5076, %v5075
  %v5082 = vsel %vm1750, %v3111, 0
  %5084 = vmatprep.subr.bf16.mxu0 0
  %5085 = vmatpush1.bf16.msra.mxu0 %v5077
  %5086 = vmatprep.subr.bf16.mxu0 0
  %5087 = vmatpush1.bf16.msra.mxu0 %v5078
  %5088 = vmatprep.subr.bf16.mxu0 0
  %5089 = vmatpush1.bf16.msra.mxu0 0
  %5090 = vmatprep.subr.bf16.mxu0 0
  %5091 = vmatpush1.bf16.msra.mxu0 0
  %5092 = vmatprep.subr.bf16.mxu0 0
  %5093 = vmatpush1.bf16.msra.mxu0 0
  %5094 = vmatprep.subr.bf16.mxu0 0
  %5095 = vmatpush1.bf16.msra.mxu0 0
  %5096 = vmatprep.subr.bf16.mxu0 0
  %5097 = vmatpush1.bf16.msra.mxu0 0
  %5098 = vmatprep.subr.bf16.mxu0 0
  %5099 = vmatpush1.bf16.msra.mxu0 0
  %5100 = vmatprep.subr.bf16.mxu0 0
  %5101 = vmatpush1.bf16.msra.mxu0 0
  %5102 = vmatprep.subr.bf16.mxu0 0
  %5103 = vmatpush1.bf16.msra.mxu0 0
  %5104 = vmatprep.subr.bf16.mxu0 0
  %5105 = vmatpush1.bf16.msra.mxu0 0
  %5106 = vmatprep.subr.bf16.mxu0 0
  %5107 = vmatpush1.bf16.msra.mxu0 0
  %5108 = vmatprep.subr.bf16.mxu0 0
  %5109 = vmatpush1.bf16.msra.mxu0 0
  %5110 = vmatprep.subr.bf16.mxu0 0
  %5111 = vmatpush1.bf16.msra.mxu0 0
  %5112 = vmatprep.subr.bf16.mxu0 0
  %5113 = vmatpush1.bf16.msra.mxu0 0
  %5114 = vmatprep.subr.bf16.mxu0 0
  %5115 = vmatpush1.bf16.msra.mxu0 0
  %5116 = vmatprep.mubr.bf16.mxu0 0
  %5117 = vmatmul.mubr.bf16.gmra.mrb[0].mxu0 %v5082
  %v5118 = vpop.f32.mrb[0].mxu0
  %v5119 = vadd.f32 0.0, %v5118
  %v5120 = vpop.f32.mrb[0].mxu0
  %v5121 = vpop.f32.mrb[0].mxu0
  %v5122 = vadd.f32 0.0, %v5121
  %v5123 = vpop.f32.mrb[0].mxu0
  %5124 = vdwg.mxu0
  %v5125 = vadd.f32 %v5062, %v5119
  %v5126 = vadd.f32 %v5063, %v5122
  %s5127 = scalar_lea.vmem %s5, 512
  %v5128 = vld [vmem:[%s5127] sm:$0xf]
  %v5129 = vld [vmem:[%s5127 + $0x4] sm:$0xf]
  %v5130 = vld [vmem:[%s5127 + $0x8] sm:$0xf]
  %v5131 = vld [vmem:[%s5127 + $0xc] sm:$0xf]
  %v5136 = vunpack.c.l.b16 %v5128
  %v5137 = vunpack.c.l.b16 %v5129
  %v5138 = vunpack.c.l.b16 %v5130
  %v5139 = vunpack.c.l.b16 %v5131
  %v5140 = vpack.c.b16 %v5137, %v5136
  %v5141 = vpack.c.b16 %v5139, %v5138
  %v5145 = vsel %vm1750, %v3112, 0
  %5147 = vmatprep.subr.bf16.mxu0 0
  %5148 = vmatpush1.bf16.msra.mxu0 %v5140
  %5149 = vmatprep.subr.bf16.mxu0 0
  %5150 = vmatpush1.bf16.msra.mxu0 %v5141
  %5151 = vmatprep.subr.bf16.mxu0 0
  %5152 = vmatpush1.bf16.msra.mxu0 0
  %5153 = vmatprep.subr.bf16.mxu0 0
  %5154 = vmatpush1.bf16.msra.mxu0 0
  %5155 = vmatprep.subr.bf16.mxu0 0
  %5156 = vmatpush1.bf16.msra.mxu0 0
  %5157 = vmatprep.subr.bf16.mxu0 0
  %5158 = vmatpush1.bf16.msra.mxu0 0
  %5159 = vmatprep.subr.bf16.mxu0 0
  %5160 = vmatpush1.bf16.msra.mxu0 0
  %5161 = vmatprep.subr.bf16.mxu0 0
  %5162 = vmatpush1.bf16.msra.mxu0 0
  %5163 = vmatprep.subr.bf16.mxu0 0
  %5164 = vmatpush1.bf16.msra.mxu0 0
  %5165 = vmatprep.subr.bf16.mxu0 0
  %5166 = vmatpush1.bf16.msra.mxu0 0
  %5167 = vmatprep.subr.bf16.mxu0 0
  %5168 = vmatpush1.bf16.msra.mxu0 0
  %5169 = vmatprep.subr.bf16.mxu0 0
  %5170 = vmatpush1.bf16.msra.mxu0 0
  %5171 = vmatprep.subr.bf16.mxu0 0
  %5172 = vmatpush1.bf16.msra.mxu0 0
  %5173 = vmatprep.subr.bf16.mxu0 0
  %5174 = vmatpush1.bf16.msra.mxu0 0
  %5175 = vmatprep.subr.bf16.mxu0 0
  %5176 = vmatpush1.bf16.msra.mxu0 0
  %5177 = vmatprep.subr.bf16.mxu0 0
  %5178 = vmatpush1.bf16.msra.mxu0 0
  %5179 = vmatprep.mubr.bf16.mxu0 0
  %5180 = vmatmul.mubr.bf16.gmra.mrb[0].mxu0 %v5145
  %v5181 = vpop.f32.mrb[0].mxu0
  %v5182 = vadd.f32 0.0, %v5181
  %v5183 = vpop.f32.mrb[0].mxu0
  %v5184 = vpop.f32.mrb[0].mxu0
  %v5185 = vadd.f32 0.0, %v5184
  %v5186 = vpop.f32.mrb[0].mxu0
  %5187 = vdwg.mxu0
  %v5188 = vadd.f32 %v5125, %v5182
  %v5189 = vadd.f32 %v5126, %v5185
  %s5190 = scalar_lea.vmem %s5, 528
  %v5191 = vld [vmem:[%s5190] sm:$0xf]
  %v5192 = vld [vmem:[%s5190 + $0x4] sm:$0xf]
  %v5193 = vld [vmem:[%s5190 + $0x8] sm:$0xf]
  %v5194 = vld [vmem:[%s5190 + $0xc] sm:$0xf]
  %v5199 = vunpack.c.l.b16 %v5191
  %v5200 = vunpack.c.l.b16 %v5192
  %v5201 = vunpack.c.l.b16 %v5193
  %v5202 = vunpack.c.l.b16 %v5194
  %v5203 = vpack.c.b16 %v5200, %v5199
  %v5204 = vpack.c.b16 %v5202, %v5201
  %v5208 = vsel %vm1750, %v3113, 0
  %5210 = vmatprep.subr.bf16.mxu0 0
  %5211 = vmatpush1.bf16.msra.mxu0 %v5203
  %5212 = vmatprep.subr.bf16.mxu0 0
  %5213 = vmatpush1.bf16.msra.mxu0 %v5204
  %5214 = vmatprep.subr.bf16.mxu0 0
  %5215 = vmatpush1.bf16.msra.mxu0 0
  %5216 = vmatprep.subr.bf16.mxu0 0
  %5217 = vmatpush1.bf16.msra.mxu0 0
  %5218 = vmatprep.subr.bf16.mxu0 0
  %5219 = vmatpush1.bf16.msra.mxu0 0
  %5220 = vmatprep.subr.bf16.mxu0 0
  %5221 = vmatpush1.bf16.msra.mxu0 0
  %5222 = vmatprep.subr.bf16.mxu0 0
  %5223 = vmatpush1.bf16.msra.mxu0 0
  %5224 = vmatprep.subr.bf16.mxu0 0
  %5225 = vmatpush1.bf16.msra.mxu0 0
  %5226 = vmatprep.subr.bf16.mxu0 0
  %5227 = vmatpush1.bf16.msra.mxu0 0
  %5228 = vmatprep.subr.bf16.mxu0 0
  %5229 = vmatpush1.bf16.msra.mxu0 0
  %5230 = vmatprep.subr.bf16.mxu0 0
  %5231 = vmatpush1.bf16.msra.mxu0 0
  %5232 = vmatprep.subr.bf16.mxu0 0
  %5233 = vmatpush1.bf16.msra.mxu0 0
  %5234 = vmatprep.subr.bf16.mxu0 0
  %5235 = vmatpush1.bf16.msra.mxu0 0
  %5236 = vmatprep.subr.bf16.mxu0 0
  %5237 = vmatpush1.bf16.msra.mxu0 0
  %5238 = vmatprep.subr.bf16.mxu0 0
  %5239 = vmatpush1.bf16.msra.mxu0 0
  %5240 = vmatprep.subr.bf16.mxu0 0
  %5241 = vmatpush1.bf16.msra.mxu0 0
  %5242 = vmatprep.mubr.bf16.mxu0 0
  %5243 = vmatmul.mubr.bf16.gmra.mrb[0].mxu0 %v5208
  %v5244 = vpop.f32.mrb[0].mxu0
  %v5245 = vadd.f32 0.0, %v5244
  %v5246 = vpop.f32.mrb[0].mxu0
  %v5247 = vpop.f32.mrb[0].mxu0
  %v5248 = vadd.f32 0.0, %v5247
  %v5249 = vpop.f32.mrb[0].mxu0
  %5250 = vdwg.mxu0
  %v5251 = vadd.f32 %v5188, %v5245
  %v5252 = vadd.f32 %v5189, %v5248
  %s5253 = scalar_lea.vmem %s5, 544
  %v5254 = vld [vmem:[%s5253] sm:$0xf]
  %v5255 = vld [vmem:[%s5253 + $0x4] sm:$0xf]
  %v5256 = vld [vmem:[%s5253 + $0x8] sm:$0xf]
  %v5257 = vld [vmem:[%s5253 + $0xc] sm:$0xf]
  %v5262 = vunpack.c.l.b16 %v5254
  %v5263 = vunpack.c.l.b16 %v5255
  %v5264 = vunpack.c.l.b16 %v5256
  %v5265 = vunpack.c.l.b16 %v5257
  %v5266 = vpack.c.b16 %v5263, %v5262
  %v5267 = vpack.c.b16 %v5265, %v5264
  %v5271 = vsel %vm1750, %v3114, 0
  %5273 = vmatprep.subr.bf16.mxu0 0
  %5274 = vmatpush1.bf16.msra.mxu0 %v5266
  %5275 = vmatprep.subr.bf16.mxu0 0
  %5276 = vmatpush1.bf16.msra.mxu0 %v5267
  %5277 = vmatprep.subr.bf16.mxu0 0
  %5278 = vmatpush1.bf16.msra.mxu0 0
  %5279 = vmatprep.subr.bf16.mxu0 0
  %5280 = vmatpush1.bf16.msra.mxu0 0
  %5281 = vmatprep.subr.bf16.mxu0 0
  %5282 = vmatpush1.bf16.msra.mxu0 0
  %5283 = vmatprep.subr.bf16.mxu0 0
  %5284 = vmatpush1.bf16.msra.mxu0 0
  %5285 = vmatprep.subr.bf16.mxu0 0
  %5286 = vmatpush1.bf16.msra.mxu0 0
  %5287 = vmatprep.subr.bf16.mxu0 0
  %5288 = vmatpush1.bf16.msra.mxu0 0
  %5289 = vmatprep.subr.bf16.mxu0 0
  %5290 = vmatpush1.bf16.msra.mxu0 0
  %5291 = vmatprep.subr.bf16.mxu0 0
  %5292 = vmatpush1.bf16.msra.mxu0 0
  %5293 = vmatprep.subr.bf16.mxu0 0
  %5294 = vmatpush1.bf16.msra.mxu0 0
  %5295 = vmatprep.subr.bf16.mxu0 0
  %5296 = vmatpush1.bf16.msra.mxu0 0
  %5297 = vmatprep.subr.bf16.mxu0 0
  %5298 = vmatpush1.bf16.msra.mxu0 0
  %5299 = vmatprep.subr.bf16.mxu0 0
  %5300 = vmatpush1.bf16.msra.mxu0 0
  %5301 = vmatprep.subr.bf16.mxu0 0
  %5302 = vmatpush1.bf16.msra.mxu0 0
  %5303 = vmatprep.subr.bf16.mxu0 0
  %5304 = vmatpush1.bf16.msra.mxu0 0
  %5305 = vmatprep.mubr.bf16.mxu0 0
  %5306 = vmatmul.mubr.bf16.gmra.mrb[0].mxu0 %v5271
  %v5307 = vpop.f32.mrb[0].mxu0
  %v5308 = vadd.f32 0.0, %v5307
  %v5309 = vpop.f32.mrb[0].mxu0
  %v5310 = vpop.f32.mrb[0].mxu0
  %v5311 = vadd.f32 0.0, %v5310
  %v5312 = vpop.f32.mrb[0].mxu0
  %5313 = vdwg.mxu0
  %v5314 = vadd.f32 %v5251, %v5308
  %v5315 = vadd.f32 %v5252, %v5311
  %s5316 = scalar_lea.vmem %s5, 560
  %v5317 = vld [vmem:[%s5316] sm:$0xf]
  %v5318 = vld [vmem:[%s5316 + $0x4] sm:$0xf]
  %v5319 = vld [vmem:[%s5316 + $0x8] sm:$0xf]
  %v5320 = vld [vmem:[%s5316 + $0xc] sm:$0xf]
  %v5325 = vunpack.c.l.b16 %v5317
  %v5326 = vunpack.c.l.b16 %v5318
  %v5327 = vunpack.c.l.b16 %v5319
  %v5328 = vunpack.c.l.b16 %v5320
  %v5329 = vpack.c.b16 %v5326, %v5325
  %v5330 = vpack.c.b16 %v5328, %v5327
  %v5334 = vsel %vm1750, %v3115, 0
  %5336 = vmatprep.subr.bf16.mxu0 0
  %5337 = vmatpush1.bf16.msra.mxu0 %v5329
  %5338 = vmatprep.subr.bf16.mxu0 0
  %5339 = vmatpush1.bf16.msra.mxu0 %v5330
  %5340 = vmatprep.subr.bf16.mxu0 0
  %5341 = vmatpush1.bf16.msra.mxu0 0
  %5342 = vmatprep.subr.bf16.mxu0 0
  %5343 = vmatpush1.bf16.msra.mxu0 0
  %5344 = vmatprep.subr.bf16.mxu0 0
  %5345 = vmatpush1.bf16.msra.mxu0 0
  %5346 = vmatprep.subr.bf16.mxu0 0
  %5347 = vmatpush1.bf16.msra.mxu0 0
  %5348 = vmatprep.subr.bf16.mxu0 0
  %5349 = vmatpush1.bf16.msra.mxu0 0
  %5350 = vmatprep.subr.bf16.mxu0 0
  %5351 = vmatpush1.bf16.msra.mxu0 0
  %5352 = vmatprep.subr.bf16.mxu0 0
  %5353 = vmatpush1.bf16.msra.mxu0 0
  %5354 = vmatprep.subr.bf16.mxu0 0
  %5355 = vmatpush1.bf16.msra.mxu0 0
  %5356 = vmatprep.subr.bf16.mxu0 0
  %5357 = vmatpush1.bf16.msra.mxu0 0
  %5358 = vmatprep.subr.bf16.mxu0 0
  %5359 = vmatpush1.bf16.msra.mxu0 0
  %5360 = vmatprep.subr.bf16.mxu0 0
  %5361 = vmatpush1.bf16.msra.mxu0 0
  %5362 = vmatprep.subr.bf16.mxu0 0
  %5363 = vmatpush1.bf16.msra.mxu0 0
  %5364 = vmatprep.subr.bf16.mxu0 0
  %5365 = vmatpush1.bf16.msra.mxu0 0
  %5366 = vmatprep.subr.bf16.mxu0 0
  %5367 = vmatpush1.bf16.msra.mxu0 0
  %5368 = vmatprep.mubr.bf16.mxu0 0
  %5369 = vmatmul.mubr.bf16.gmra.mrb[0].mxu0 %v5334
  %v5370 = vpop.f32.mrb[0].mxu0
  %v5371 = vadd.f32 0.0, %v5370
  %v5372 = vpop.f32.mrb[0].mxu0
  %v5373 = vpop.f32.mrb[0].mxu0
  %v5374 = vadd.f32 0.0, %v5373
  %v5375 = vpop.f32.mrb[0].mxu0
  %5376 = vdwg.mxu0
  %v5377 = vadd.f32 %v5314, %v5371
  %v5378 = vadd.f32 %v5315, %v5374
  %v5379 = vld [vmem:[%s6] sm:$0x1]
  %v5381 = vlaneseq
  %v5382 = vshrl.u32 %v5381, 7
  %v5383 = vsub.s32 0, %v5382
  %v5384 = vrot.slane %v5379, %v5383
  %v5386 = vadd.f32 %v5377, %v5384
  %v5387 = vadd.f32 %v5378, %v5384
  %5388 = vst [vmem:[%s7] sm:$0xff] %v5386
  %5389 = vst [vmem:[%s7 + $0x8] sm:$0xff] %v5387
  %v5390 = vlaneseq
  %v5391 = vand.u32 %v5390, 127
  %vm5392 = vcmp.lt.s32.totalorder %v5391, 8
  %v5393 = vsel %vm5392, %v5386, -1e+30
  %v5394 = vsel %vm5392, %v5387, -1e+30
  %5395 = vmax.xlane.f32.xlu0 %v5393
  %v5396 = vpop.xlane.xlu0 %5395
  %5397 = vmax.xlane.f32.xlu0 %v5394
  %v5398 = vpop.xlane.xlu0 %5397
  %v5399 = vsub.f32 %v5393, %v5396
  %v5400 = vsub.f32 %v5394, %v5398
  %v5401 = vmul.f32 %v5399, 1.442695
  %v5402 = vpow.pop %v5401
  %v5403 = vmul.f32 %v5400, 1.442695
  %v5404 = vpow.pop %v5403
  %5405 = vadd.xlane.f32.xlu0 %v5402
  %v5406 = vpop.xlane.xlu0 %5405
  %5407 = vadd.xlane.f32.xlu0 %v5404
  %v5408 = vpop.xlane.xlu0 %5407
  %v5409 = vlog2.pop %v5406
  %v5410 = vmul.f32 %v5409, 0.6931472
  %v5411 = vlog2.pop %v5408
  %v5412 = vmul.f32 %v5411, 0.6931472
  %v5413 = vsub.f32 %v5399, %v5410
  %v5414 = vsub.f32 %v5400, %v5412
  %5415 = vst [vmem:[%s8] sm:$0xff] %v5413
  %5416 = vst [vmem:[%s8 + $0x8] sm:$0xff] %v5414
  // Predicated region
  $region30: #{cnn_a_forward.1} parent=0 // pred_check
    _
  $region31: #{cnn_a_forward.1} parent=0 // pred_check_branch
    %5418 = sbr.rel (0) target = $region33
  $region32: #{cnn_a_forward.1} parent=0 // pred_region
    _
  $region33: #{cnn_a_forward.1} parent=0 // pred_fallthru
    _
  // Predicated region
  $region34: #{cnn_a_forward.1} parent=0 // pred_check
    _
  $region35: #{cnn_a_forward.1} parent=0 // pred_check_branch
    %5420 = sbr.rel (0) target = $region37
  $region36: #{cnn_a_forward.1} parent=0 // pred_region
    _
  $region37: #{cnn_a_forward.1} parent=0 // pred_fallthru
    _
  // Predicated region
  $region38: #{cnn_a_forward.1} parent=0 // pred_check
    _
  $region39: #{cnn_a_forward.1} parent=0 // pred_check_branch
    %5422 = sbr.rel (0) target = $region41
  $region40: #{cnn_a_forward.1} parent=0 // pred_region
    _
  $region41: #{cnn_a_forward.1} parent=0 // pred_fallthru
    _
  // Predicated region
  $region42: #{cnn_a_forward.1} parent=0 // pred_check
    _
  $region43: #{cnn_a_forward.1} parent=0 // pred_check_branch
    %5424 = sbr.rel (0) target = $region45
  $region44: #{cnn_a_forward.1} parent=0 // pred_region
    _
  $region45: #{cnn_a_forward.1} parent=0 // pred_fallthru
    _

</llo_original>
